<compile_context>
chip_gen: v6e
topology: v6e:2x2x1
jax: 0.10.0
libtpu: 0.0.40
codegen_flags: <defaults>
</compile_context>

<pallas_src>
import math
import functools

import jax
import jax.numpy as jnp
from jax.experimental import pallas as pl
from jax.experimental.pallas import tpu as pltpu


# ---------------------------------------------------------------------------
# VMEM budget (generation aware)
# ---------------------------------------------------------------------------

def _vmem_limit_bytes():
    try:
        cap = pltpu.get_tpu_info().vmem_capacity_bytes
        # ~75% of physical VMEM, capped at 96 MiB (v5e/v6e), ~48 MiB on v7x.
        return int(min(96 * 1024 * 1024, (cap * 3) // 4))
    except Exception:
        return 48 * 1024 * 1024  # safe everywhere


VMEM_LIMIT = _vmem_limit_bytes()


# ---------------------------------------------------------------------------
# Tiling helper
# ---------------------------------------------------------------------------

def _pick_tile(dim, target, align):
    """Largest multiple of `align` that divides `dim`, capped at `target`.
    Falls back to the full dim (always a legal block) if none exists."""
    if dim <= target:
        return dim
    t = (target // align) * align
    while t >= align:
        if dim % t == 0:
            return t
        t -= align
    return dim


def _bf16(x):
    return x if x.dtype == jnp.bfloat16 else x.astype(jnp.bfloat16)


# ---------------------------------------------------------------------------
# Linear kernels (bf16 in, f32 accumulate)
# ---------------------------------------------------------------------------

def _linear_kernel(x_ref, w_ref, b_ref, o_ref, acc_ref, *, relu):
    @pl.when(pl.program_id(2) == 0)
    def _init():
        acc_ref[...] = jnp.zeros_like(acc_ref)

    acc_ref[...] += jnp.dot(x_ref[...], w_ref[...],
                            preferred_element_type=jnp.float32)

    @pl.when(pl.program_id(2) == pl.num_programs(2) - 1)
    def _done():
        y = acc_ref[...] + b_ref[...]
        if relu:
            y = jnp.maximum(y, 0.0)
        o_ref[...] = y.astype(o_ref.dtype)


def linear(x, w, b, relu=False, out_dtype=jnp.bfloat16, *, tm=256, tn=512, tk=512):
    """y = x @ w + b (optional fused ReLU). x: (M, K), w: (K, N), b: (N,)."""
    x = _bf16(x)
    w = _bf16(w)
    b = b.astype(jnp.float32)
    M, K = x.shape
    N = w.shape[1]
    tm = _pick_tile(M, tm, 8)
    tn = _pick_tile(N, tn, 128)
    tk = _pick_tile(K, tk, 128)
    grid = (M // tm, N // tn, K // tk)
    cost = pl.CostEstimate(flops=2 * M * N * K, transcendentals=0,
                           bytes_accessed=2 * (M * K + K * N + M * N) + 4 * N)
    return pl.pallas_call(
        functools.partial(_linear_kernel, relu=relu),
        out_shape=jax.ShapeDtypeStruct((M, N), out_dtype),
        grid=grid,
        in_specs=[
            pl.BlockSpec((tm, tk), lambda i, j, k: (i, k)),
            pl.BlockSpec((tk, tn), lambda i, j, k: (k, j)),
            pl.BlockSpec((1, tn), lambda i, j, k: (0, j)),
        ],
        out_specs=pl.BlockSpec((tm, tn), lambda i, j, k: (i, j)),
        scratch_shapes=[pltpu.VMEM((tm, tn), jnp.float32)],
        compiler_params=pltpu.CompilerParams(
            dimension_semantics=("parallel", "parallel", "arbitrary"),
            vmem_limit_bytes=VMEM_LIMIT),
        cost_estimate=cost,
    )(x, w, b.reshape(1, N))


def _linear_add_ln_kernel(x_ref, w_ref, b_ref, r_ref, g_ref, bt_ref,
                          o_ref, acc_ref, *, eps):
    @pl.when(pl.program_id(1) == 0)
    def _init():
        acc_ref[...] = jnp.zeros_like(acc_ref)

    acc_ref[...] += jnp.dot(x_ref[...], w_ref[...],
                            preferred_element_type=jnp.float32)

    @pl.when(pl.program_id(1) == pl.num_programs(1) - 1)
    def _done():
        y = acc_ref[...] + b_ref[...] + r_ref[...].astype(jnp.float32)
        mu = jnp.mean(y, axis=-1, keepdims=True)
        var = jnp.mean(jnp.square(y - mu), axis=-1, keepdims=True)
        out = (y - mu) * jax.lax.rsqrt(var + eps) * g_ref[...] + bt_ref[...]
        o_ref[...] = out.astype(o_ref.dtype)


def linear_add_layernorm(x, w, b, res, gamma, beta, eps=1e-5,
                         out_dtype=jnp.bfloat16, *, tm=256, tk=512):
    """LayerNorm(res + x @ w + b) over the last dim.  x: (M, K), w: (K, D)."""
    x = _bf16(x)
    w = _bf16(w)
    res = _bf16(res)
    M, K = x.shape
    D = w.shape[1]
    tm = _pick_tile(M, tm, 8)
    tk = _pick_tile(K, tk, 128)
    grid = (M // tm, K // tk)
    cost = pl.CostEstimate(flops=2 * M * K * D + 8 * M * D, transcendentals=0,
                           bytes_accessed=2 * (M * K + K * D + 3 * M * D) + 12 * D)
    return pl.pallas_call(
        functools.partial(_linear_add_ln_kernel, eps=eps),
        out_shape=jax.ShapeDtypeStruct((M, D), out_dtype),
        grid=grid,
        in_specs=[
            pl.BlockSpec((tm, tk), lambda i, k: (i, k)),
            pl.BlockSpec((tk, D), lambda i, k: (k, 0)),
            pl.BlockSpec((1, D), lambda i, k: (0, 0)),
            pl.BlockSpec((tm, D), lambda i, k: (i, 0)),
            pl.BlockSpec((1, D), lambda i, k: (0, 0)),
            pl.BlockSpec((1, D), lambda i, k: (0, 0)),
        ],
        out_specs=pl.BlockSpec((tm, D), lambda i, k: (i, 0)),
        scratch_shapes=[pltpu.VMEM((tm, D), jnp.float32)],
        compiler_params=pltpu.CompilerParams(
            dimension_semantics=("parallel", "arbitrary"),
            vmem_limit_bytes=VMEM_LIMIT),
        cost_estimate=cost,
    )(x, w, b.astype(jnp.float32).reshape(1, D), res,
      gamma.astype(jnp.float32).reshape(1, D),
      beta.astype(jnp.float32).reshape(1, D))


def _ln_kernel(x_ref, g_ref, b_ref, o_ref, *, eps):
    x = x_ref[...].astype(jnp.float32)
    mu = jnp.mean(x, axis=-1, keepdims=True)
    var = jnp.mean(jnp.square(x - mu), axis=-1, keepdims=True)
    out = (x - mu) * jax.lax.rsqrt(var + eps) * g_ref[...] + b_ref[...]
    o_ref[...] = out.astype(o_ref.dtype)


def layernorm(x, gamma, beta, eps=1e-5, out_dtype=jnp.bfloat16, *, tm=1024):
    """Row-tiled LayerNorm over the last dim.  x: (M, D)."""
    M, D = x.shape
    tm = _pick_tile(M, tm, 8)
    return pl.pallas_call(
        functools.partial(_ln_kernel, eps=eps),
        out_shape=jax.ShapeDtypeStruct((M, D), out_dtype),
        grid=(M // tm,),
        in_specs=[
            pl.BlockSpec((tm, D), lambda i: (i, 0)),
            pl.BlockSpec((1, D), lambda i: (0, 0)),
            pl.BlockSpec((1, D), lambda i: (0, 0)),
        ],
        out_specs=pl.BlockSpec((tm, D), lambda i: (i, 0)),
        compiler_params=pltpu.CompilerParams(
            dimension_semantics=("parallel",),
            vmem_limit_bytes=VMEM_LIMIT),
    )(x, gamma.astype(jnp.float32).reshape(1, D),
      beta.astype(jnp.float32).reshape(1, D))


# ---------------------------------------------------------------------------
# Flash attention (online softmax, in-kernel causal mask)
# ---------------------------------------------------------------------------

_NEG_INF = -1e30  # finite "minus infinity" to avoid NaN in (s - max)


def _flash_attn_kernel(q_ref, k_ref, v_ref, o_ref, m_sc, l_sc, acc_sc,
                       *, causal, tq, tk):
    qi = pl.program_id(1)
    ki = pl.program_id(2)

    @pl.when(ki == 0)
    def _init():
        m_sc[...] = jnp.full(m_sc.shape, _NEG_INF, jnp.float32)
        l_sc[...] = jnp.zeros(l_sc.shape, jnp.float32)
        acc_sc[...] = jnp.zeros(acc_sc.shape, jnp.float32)

    def _compute():
        q = q_ref[...]                                    # (tq, Dh) bf16 (pre-scaled)
        k = k_ref[...]                                    # (tk, Dh) bf16
        v = v_ref[...]                                    # (tk, Dh) bf16
        # QK^T contracting the last axes (no explicit transpose).
        s = jax.lax.dot_general(q, k, (((1,), (1,)), ((), ())),
                                preferred_element_type=jnp.float32)  # (tq, tk)
        if causal:
            q_idx = qi * tq + jax.lax.broadcasted_iota(jnp.int32, (tq, tk), 0)
            k_idx = ki * tk + jax.lax.broadcasted_iota(jnp.int32, (tq, tk), 1)
            s = jnp.where(k_idx <= q_idx, s, _NEG_INF)
        m_prev = m_sc[...]
        m_new = jnp.maximum(m_prev, jnp.max(s, axis=-1, keepdims=True))
        alpha = jnp.exp(m_prev - m_new)
        p = jnp.exp(s - m_new)
        l_sc[...] = alpha * l_sc[...] + jnp.sum(p, axis=-1, keepdims=True)
        acc_sc[...] = alpha * acc_sc[...] + jax.lax.dot_general(
            p.astype(v.dtype), v, (((1,), (0,)), ((), ())),
            preferred_element_type=jnp.float32)
        m_sc[...] = m_new

    if causal:
        # Skip Sk tiles that are entirely above the diagonal.
        @pl.when(ki * tk < qi * tq + tq)
        def _():
            _compute()
    else:
        _compute()

    @pl.when(ki == pl.num_programs(2) - 1)
    def _done():
        inv = pl.reciprocal(l_sc[...], approx=True)
        o_ref[...] = (acc_sc[...] * inv).astype(o_ref.dtype)


def flash_attention(q, k, v, *, causal):
    """q: (B*H, Sq, Dh), k/v: (B*H, Sk, Dh), all bf16. 1/sqrt(Dh) is folded
    into the q projection weights, so no in-kernel scaling."""
    BH, Sq, Dh = q.shape
    Sk = k.shape[1]
    tq = _pick_tile(Sq, 256, 8)
    tk = _pick_tile(Sk, 512, 8)
    grid = (BH, Sq // tq, Sk // tk)
    cost = pl.CostEstimate(
        flops=4 * BH * Sq * Sk * Dh,
        transcendentals=BH * Sq * Sk,
        bytes_accessed=2 * BH * (2 * Sq * Dh + 2 * Sk * Dh))
    return pl.pallas_call(
        functools.partial(_flash_attn_kernel, causal=causal, tq=tq, tk=tk),
        out_shape=jax.ShapeDtypeStruct((BH, Sq, Dh), jnp.bfloat16),
        grid=grid,
        in_specs=[
            pl.BlockSpec((None, tq, Dh), lambda bh, qi, ki: (bh, qi, 0)),
            pl.BlockSpec((None, tk, Dh), lambda bh, qi, ki: (bh, ki, 0)),
            pl.BlockSpec((None, tk, Dh), lambda bh, qi, ki: (bh, ki, 0)),
        ],
        out_specs=pl.BlockSpec((None, tq, Dh), lambda bh, qi, ki: (bh, qi, 0)),
        scratch_shapes=[
            pltpu.VMEM((tq, 1), jnp.float32),    # running max
            pltpu.VMEM((tq, 1), jnp.float32),    # running denom
            pltpu.VMEM((tq, Dh), jnp.float32),   # output accumulator
        ],
        compiler_params=pltpu.CompilerParams(
            dimension_semantics=("parallel", "parallel", "arbitrary"),
            vmem_limit_bytes=VMEM_LIMIT),
        cost_estimate=cost,
    )(q, k, v)


# ---------------------------------------------------------------------------
# Model glue (reshapes / parameter plumbing in plain JAX)
# ---------------------------------------------------------------------------

def self_attention_ctx(x_flat, p, B, S, nhead, causal):
    """Fused-QKV self-attention; x_flat: (B*S, D) bf16 -> (B*S, D) bf16."""
    D = x_flat.shape[1]
    Dh = D // nhead
    qkv = linear(x_flat, p["w_qkv"], p["b_qkv"])                    # (B*S, 3D) bf16
    qkv = (qkv.reshape(B, S, 3, nhead, Dh)
              .transpose(2, 0, 3, 1, 4)                             # (3,B,H,S,Dh)
              .reshape(3, B * nhead, S, Dh))
    q, k, v = qkv[0], qkv[1], qkv[2]
    ctx = flash_attention(q, k, v, causal=causal)                   # (B*H,S,Dh)
    return (ctx.reshape(B, nhead, S, Dh)
               .transpose(0, 2, 1, 3)
               .reshape(B * S, D))


def cross_attention_ctx(y_flat, memory_flat, p, B, St, Ss, nhead):
    """Fused-KV cross-attention (no mask); returns (B*St, D) bf16."""
    D = y_flat.shape[1]
    Dh = D // nhead
    q = linear(y_flat, p["wq"], p["bq"])                            # (B*St, D)
    q = (q.reshape(B, St, nhead, Dh)
          .transpose(0, 2, 1, 3)
          .reshape(B * nhead, St, Dh))
    kv = linear(memory_flat, p["w_kv"], p["b_kv"])                  # (B*Ss, 2D)
    kv = (kv.reshape(B, Ss, 2, nhead, Dh)
            .transpose(2, 0, 3, 1, 4)
            .reshape(2, B * nhead, Ss, Dh))
    k, v = kv[0], kv[1]
    ctx = flash_attention(q, k, v, causal=False)
    return (ctx.reshape(B, nhead, St, Dh)
               .transpose(0, 2, 1, 3)
               .reshape(B * St, D))


def encoder_layer(x_flat, p, B, S, nhead):
    ctx = self_attention_ctx(x_flat, p["self_attn"], B, S, nhead, causal=False)
    x_flat = linear_add_layernorm(ctx, p["self_attn"]["wo"], p["self_attn"]["bo"],
                                  x_flat, p["ln1_g"], p["ln1_b"])
    h = linear(x_flat, p["ff"]["w1"], p["ff"]["b1"], relu=True)
    x_flat = linear_add_layernorm(h, p["ff"]["w2"], p["ff"]["b2"],
                                  x_flat, p["ln2_g"], p["ln2_b"])
    return x_flat


def decoder_layer(y_flat, memory_flat, p, B, St, Ss, nhead):
    ctx = self_attention_ctx(y_flat, p["self_attn"], B, St, nhead, causal=True)
    y_flat = linear_add_layernorm(ctx, p["self_attn"]["wo"], p["self_attn"]["bo"],
                                  y_flat, p["ln1_g"], p["ln1_b"])
    ctx = cross_attention_ctx(y_flat, memory_flat, p["cross_attn"],
                              B, St, Ss, nhead)
    y_flat = linear_add_layernorm(ctx, p["cross_attn"]["wo"], p["cross_attn"]["bo"],
                                  y_flat, p["ln2_g"], p["ln2_b"])
    h = linear(y_flat, p["ff"]["w1"], p["ff"]["b1"], relu=True)
    y_flat = linear_add_layernorm(h, p["ff"]["w2"], p["ff"]["b2"],
                                  y_flat, p["ln3_g"], p["ln3_b"])
    return y_flat


def positional_encoding_table(max_len, d_model):
    position = jnp.arange(max_len, dtype=jnp.float32)[:, None]
    div_term = jnp.exp(jnp.arange(0, d_model, 2, dtype=jnp.float32)
                       * (-math.log(10000.0) / d_model))
    pe = jnp.zeros((max_len, d_model), dtype=jnp.float32)
    pe = pe.at[:, 0::2].set(jnp.sin(position * div_term))
    pe = pe.at[:, 1::2].set(jnp.cos(position * div_term))
    return pe


def transformer_forward(params, src, tgt, *, d_model, nhead):
    B, Ss = src.shape
    _, St = tgt.shape
    pe = params["pe"]

    # Embedding lookup + scale + positional encoding (XLA glue; dropout = id).
    src_emb = jnp.take(params["src_emb"], src, axis=0) * math.sqrt(d_model)
    src_emb = (src_emb + pe[None, :Ss, :]).astype(jnp.bfloat16)
    tgt_emb = jnp.take(params["tgt_emb"], tgt, axis=0) * math.sqrt(d_model)
    tgt_emb = (tgt_emb + pe[None, :St, :]).astype(jnp.bfloat16)

    x = src_emb.reshape(B * Ss, d_model)
    for lp in params["encoder"]:
        x = encoder_layer(x, lp, B, Ss, nhead)
    memory = layernorm(x, params["enc_norm_g"], params["enc_norm_b"])

    y = tgt_emb.reshape(B * St, d_model)
    for lp in params["decoder"]:
        y = decoder_layer(y, memory, lp, B, St, Ss, nhead)
    y = layernorm(y, params["dec_norm_g"], params["dec_norm_b"])

    out = linear(y, params["fc_out_w"], params["fc_out_b"],
                 out_dtype=jnp.float32)
    return out.reshape(B, St, -1)


# ---------------------------------------------------------------------------
# Deterministic parameter initialization (weights bf16, 1/sqrt(Dh) folded
# into the q projections; biases / LN params / embeddings f32)
# ---------------------------------------------------------------------------

def init_params(key, *, src_vocab, tgt_vocab, d_model, nhead,
                num_encoder_layers, num_decoder_layers, dim_feedforward,
                max_len=5000):
    keys = iter(jax.random.split(key, 1024))
    dh = d_model // nhead
    q_scale = 1.0 / math.sqrt(dh)

    def w32(shape, scale=0.02):
        return jax.random.normal(next(keys), shape, dtype=jnp.float32) * scale

    def wb(shape, scale=0.02):
        return w32(shape, scale).astype(jnp.bfloat16)

    def zeros(n):
        return jnp.zeros((n,), jnp.float32)

    def ones(n):
        return jnp.ones((n,), jnp.float32)

    def self_attn_params():
        wqkv = w32((d_model, 3 * d_model))
        wqkv = wqkv.at[:, :d_model].multiply(q_scale)   # fold 1/sqrt(Dh) into q
        return {
            "w_qkv": wqkv.astype(jnp.bfloat16), "b_qkv": zeros(3 * d_model),
            "wo": wb((d_model, d_model)), "bo": zeros(d_model),
        }

    def cross_attn_params():
        return {
            "wq": (w32((d_model, d_model)) * q_scale).astype(jnp.bfloat16),
            "bq": zeros(d_model),
            "w_kv": wb((d_model, 2 * d_model)), "b_kv": zeros(2 * d_model),
            "wo": wb((d_model, d_model)), "bo": zeros(d_model),
        }

    def ff_params():
        return {
            "w1": wb((d_model, dim_feedforward)), "b1": zeros(dim_feedforward),
            "w2": wb((dim_feedforward, d_model)), "b2": zeros(d_model),
        }

    def enc_layer():
        return {
            "self_attn": self_attn_params(), "ff": ff_params(),
            "ln1_g": ones(d_model), "ln1_b": zeros(d_model),
            "ln2_g": ones(d_model), "ln2_b": zeros(d_model),
        }

    def dec_layer():
        return {
            "self_attn": self_attn_params(), "cross_attn": cross_attn_params(),
            "ff": ff_params(),
            "ln1_g": ones(d_model), "ln1_b": zeros(d_model),
            "ln2_g": ones(d_model), "ln2_b": zeros(d_model),
            "ln3_g": ones(d_model), "ln3_b": zeros(d_model),
        }

    return {
        "src_emb": w32((src_vocab, d_model), scale=1.0),
        "tgt_emb": w32((tgt_vocab, d_model), scale=1.0),
        "pe": positional_encoding_table(max_len, d_model),
        "encoder": [enc_layer() for _ in range(num_encoder_layers)],
        "decoder": [dec_layer() for _ in range(num_decoder_layers)],
        "enc_norm_g": ones(d_model), "enc_norm_b": zeros(d_model),
        "dec_norm_g": ones(d_model), "dec_norm_b": zeros(d_model),
        "fc_out_w": wb((d_model, tgt_vocab)),
        "fc_out_b": zeros(tgt_vocab),
    }


# ---------------------------------------------------------------------------
# Demo
# ---------------------------------------------------------------------------

if __name__ == "__main__":
    # Small, consistent config: vocab=64, d_model=32, nhead=4, 2 enc + 2 dec
    # layers, ffn=64, batch=2, seq=8.
    SRC_VOCAB, TGT_VOCAB = 64, 64
    D_MODEL, NHEAD = 32, 4
    N_ENC, N_DEC = 2, 2
    D_FF = 64
    B, S_SRC, S_TGT = 2, 8, 8

    key = jax.random.PRNGKey(0)
    k_param, k_src, k_tgt = jax.random.split(key, 3)

    params = init_params(
        k_param, src_vocab=SRC_VOCAB, tgt_vocab=TGT_VOCAB, d_model=D_MODEL,
        nhead=NHEAD, num_encoder_layers=N_ENC, num_decoder_layers=N_DEC,
        dim_feedforward=D_FF, max_len=64)

    src = jax.random.randint(k_src, (B, S_SRC), 0, SRC_VOCAB, dtype=jnp.int32)
    tgt = jax.random.randint(k_tgt, (B, S_TGT), 0, TGT_VOCAB, dtype=jnp.int32)

    fwd = jax.jit(functools.partial(transformer_forward,
                                    d_model=D_MODEL, nhead=NHEAD))
    out = fwd(params, src, tgt)
    jax.block_until_ready(out)

    assert out.shape == (B, S_TGT, TGT_VOCAB), out.shape
    assert bool(jnp.all(jnp.isfinite(out)))
    print("KERNEL_OK")
</pallas_src>

<mosaic_0001>
module attributes {stable_mosaic.version = 11 : i64} {
  func.func @_linear_kernel(%arg0: i32, %arg1: i32, %arg2: i32, %arg3: memref<16x32xbf16, #tpu.memory_space<vmem>>, %arg4: memref<32x96xbf16, #tpu.memory_space<vmem>>, %arg5: memref<1x96xf32, #tpu.memory_space<vmem>>, %arg6: memref<16x96xbf16, #tpu.memory_space<vmem>>, %arg7: memref<16x96xf32, #tpu.memory_space<vmem>>) attributes {dimension_semantics = [#tpu.dimension_semantics<parallel>, #tpu.dimension_semantics<parallel>, #tpu.dimension_semantics<arbitrary>], iteration_bounds = array<i64: 1, 1, 1>, scalar_prefetch = 0 : i64, scratch_operands = 1 : i64, tpu.core_type = #tpu.core_type<tc>, window_params = [{transform_indices = @transform_0, window_bounds = array<i64: 16, 32>}, {transform_indices = @transform_1, window_bounds = array<i64: 32, 96>}, {transform_indices = @transform_2, window_bounds = array<i64: 1, 96>}, {transform_indices = @transform_3, window_bounds = array<i64: 16, 96>}]} {
    %c0_i32 = arith.constant 0 : i32
    %0 = arith.cmpi eq, %arg2, %c0_i32 : i32
    %1 = arith.extui %0 : i1 to i32
    %c0_i32_0 = arith.constant 0 : i32
    %2 = arith.cmpi ne, %1, %c0_i32_0 : i32
    scf.if %2 {
      %cst_10 = arith.constant 0.000000e+00 : f32
      %12 = vector.broadcast %cst_10 : f32 to vector<16x96xf32>
      %c0_11 = arith.constant 0 : index
      %c0_12 = arith.constant 0 : index
      %13 = vector.load %arg7[%c0_11, %c0_12] : memref<16x96xf32, #tpu.memory_space<vmem>>, vector<16x96xf32>
      tpu.vector_store %arg7[%c0_11, %c0_12], %12 {strides = array<i32>} : memref<16x96xf32, #tpu.memory_space<vmem>>, vector<16x96xf32>,
    } else {
    }
    %c0 = arith.constant 0 : index
    %c0_1 = arith.constant 0 : index
    %3 = vector.load %arg7[%c0, %c0_1] : memref<16x96xf32, #tpu.memory_space<vmem>>, vector<16x96xf32>
    %c0_2 = arith.constant 0 : index
    %c0_3 = arith.constant 0 : index
    %4 = vector.load %arg3[%c0_2, %c0_3] : memref<16x32xbf16, #tpu.memory_space<vmem>>, vector<16x32xbf16>
    %c0_4 = arith.constant 0 : index
    %c0_5 = arith.constant 0 : index
    %5 = vector.load %arg4[%c0_4, %c0_5] : memref<32x96xbf16, #tpu.memory_space<vmem>>, vector<32x96xbf16>
    %cst = arith.constant dense<0.000000e+00> : vector<16x96xf32>
    %6 = tpu.matmul %4, %5, %cst {dimension_numbers = #tpu.dot_dimension_numbers<[1], [0], [0], [1], [0, 0, 1, 1], [], []>} : vector<16x32xbf16>, vector<32x96xbf16>, vector<16x96xf32> -> vector<16x96xf32>
    %7 = arith.addf %3, %6 : vector<16x96xf32>
    %c0_6 = arith.constant 0 : index
    %c0_7 = arith.constant 0 : index
    %8 = vector.load %arg7[%c0_6, %c0_7] : memref<16x96xf32, #tpu.memory_space<vmem>>, vector<16x96xf32>
    tpu.vector_store %arg7[%c0_6, %c0_7], %7 {strides = array<i32>} : memref<16x96xf32, #tpu.memory_space<vmem>>, vector<16x96xf32>,
    %c0_i32_8 = arith.constant 0 : i32
    %9 = arith.cmpi eq, %arg2, %c0_i32_8 : i32
    %10 = arith.extui %9 : i1 to i32
    %c0_i32_9 = arith.constant 0 : i32
    %11 = arith.cmpi ne, %10, %c0_i32_9 : i32
    scf.if %11 {
      %c0_10 = arith.constant 0 : index
      %c0_11 = arith.constant 0 : index
      %12 = vector.load %arg7[%c0_10, %c0_11] : memref<16x96xf32, #tpu.memory_space<vmem>>, vector<16x96xf32>
      %c0_12 = arith.constant 0 : index
      %c0_13 = arith.constant 0 : index
      %13 = vector.load %arg5[%c0_12, %c0_13] : memref<1x96xf32, #tpu.memory_space<vmem>>, vector<1x96xf32>
      %14 = vector.broadcast %13 : vector<1x96xf32> to vector<16x96xf32>
      %15 = arith.addf %12, %14 : vector<16x96xf32>
      %16 = arith.truncf %15 : vector<16x96xf32> to vector<16x96xbf16>
      %c0_14 = arith.constant 0 : index
      %c0_15 = arith.constant 0 : index
      %17 = vector.load %arg6[%c0_14, %c0_15] : memref<16x96xbf16, #tpu.memory_space<vmem>>, vector<16x96xbf16>
      tpu.vector_store %arg6[%c0_14, %c0_15], %16 {strides = array<i32>} : memref<16x96xbf16, #tpu.memory_space<vmem>>, vector<16x96xbf16>,
    } else {
    }
    return
  }
  func.func @transform_0(%arg0: i32, %arg1: i32, %arg2: i32) -> (i32, i32) {
    %c0_i32 = arith.constant 0 : i32
    return %arg0, %arg2 : i32, i32
  }
  func.func @transform_1(%arg0: i32, %arg1: i32, %arg2: i32) -> (i32, i32) {
    %c0_i32 = arith.constant 0 : i32
    return %arg2, %arg1 : i32, i32
  }
  func.func @transform_2(%arg0: i32, %arg1: i32, %arg2: i32) -> (i32, i32) {
    %c0_i32 = arith.constant 0 : i32
    %c0_i32_0 = arith.constant 0 : i32
    return %c0_i32, %arg1 : i32, i32
  }
  func.func @transform_3(%arg0: i32, %arg1: i32, %arg2: i32) -> (i32, i32) {
    %c0_i32 = arith.constant 0 : i32
    return %arg0, %arg1 : i32, i32
  }
}

module attributes {stable_mosaic.version = 11 : i64} {
  func.func @_flash_attn_kernel(%arg0: i32, %arg1: i32, %arg2: i32, %arg3: memref<1x8x8xbf16, #tpu.memory_space<vmem>>, %arg4: memref<1x8x8xbf16, #tpu.memory_space<vmem>>, %arg5: memref<1x8x8xbf16, #tpu.memory_space<vmem>>, %arg6: memref<1x8x8xbf16, #tpu.memory_space<vmem>>, %arg7: memref<8x1xf32, #tpu.memory_space<vmem>>, %arg8: memref<8x1xf32, #tpu.memory_space<vmem>>, %arg9: memref<8x8xf32, #tpu.memory_space<vmem>>) attributes {dimension_semantics = [#tpu.dimension_semantics<parallel>, #tpu.dimension_semantics<parallel>, #tpu.dimension_semantics<arbitrary>], iteration_bounds = array<i64: 8, 1, 1>, scalar_prefetch = 0 : i64, scratch_operands = 3 : i64, tpu.core_type = #tpu.core_type<tc>, window_params = [{transform_indices = @transform_0, window_bounds = array<i64: 1, 8, 8>}, {transform_indices = @transform_1, window_bounds = array<i64: 1, 8, 8>}, {transform_indices = @transform_2, window_bounds = array<i64: 1, 8, 8>}, {transform_indices = @transform_3, window_bounds = array<i64: 1, 8, 8>}]} {
    %c0_i32 = arith.constant 0 : i32
    %0 = arith.cmpi eq, %arg2, %c0_i32 : i32
    %1 = arith.extui %0 : i1 to i32
    %c0_i32_0 = arith.constant 0 : i32
    %2 = arith.cmpi ne, %1, %c0_i32_0 : i32
    scf.if %2 {
      %cst = arith.constant -1.000000e+30 : f32
      %12 = vector.broadcast %cst : f32 to vector<8x1xf32>
      %c0 = arith.constant 0 : index
      %c0_6 = arith.constant 0 : index
      %13 = vector.load %arg7[%c0, %c0_6] : memref<8x1xf32, #tpu.memory_space<vmem>>, vector<8x1xf32>
      tpu.vector_store %arg7[%c0, %c0_6], %12 {strides = array<i32>} : memref<8x1xf32, #tpu.memory_space<vmem>>, vector<8x1xf32>,
      %cst_7 = arith.constant 0.000000e+00 : f32
      %14 = vector.broadcast %cst_7 : f32 to vector<8x1xf32>
      %c0_8 = arith.constant 0 : index
      %c0_9 = arith.constant 0 : index
      %15 = vector.load %arg8[%c0_8, %c0_9] : memref<8x1xf32, #tpu.memory_space<vmem>>, vector<8x1xf32>
      tpu.vector_store %arg8[%c0_8, %c0_9], %14 {strides = array<i32>} : memref<8x1xf32, #tpu.memory_space<vmem>>, vector<8x1xf32>,
      %cst_10 = arith.constant 0.000000e+00 : f32
      %16 = vector.broadcast %cst_10 : f32 to vector<8x8xf32>
      %c0_11 = arith.constant 0 : index
      %c0_12 = arith.constant 0 : index
      %17 = vector.load %arg9[%c0_11, %c0_12] : memref<8x8xf32, #tpu.memory_space<vmem>>, vector<8x8xf32>
      tpu.vector_store %arg9[%c0_11, %c0_12], %16 {strides = array<i32>} : memref<8x8xf32, #tpu.memory_space<vmem>>, vector<8x8xf32>,
    } else {
    }
    %c8_i32 = arith.constant 8 : i32
    %3 = arith.muli %arg2, %c8_i32 : i32
    %c8_i32_1 = arith.constant 8 : i32
    %4 = arith.muli %arg1, %c8_i32_1 : i32
    %c8_i32_2 = arith.constant 8 : i32
    %5 = arith.addi %4, %c8_i32_2 : i32
    %6 = arith.cmpi slt, %3, %5 : i32
    %7 = arith.extui %6 : i1 to i32
    %c0_i32_3 = arith.constant 0 : i32
    %8 = arith.cmpi ne, %7, %c0_i32_3 : i32
    scf.if %8 {
      %c0 = arith.constant 0 : index
      %c0_6 = arith.constant 0 : index
      %c0_7 = arith.constant 0 : index
      %12 = vector.load %arg3[%c0, %c0_6, %c0_7] : memref<1x8x8xbf16, #tpu.memory_space<vmem>>, vector<1x8x8xbf16>
      %13 = vector.shape_cast %12 : vector<1x8x8xbf16> to vector<8x8xbf16>
      %c0_8 = arith.constant 0 : index
      %c0_9 = arith.constant 0 : index
      %c0_10 = arith.constant 0 : index
      %14 = vector.load %arg4[%c0_8, %c0_9, %c0_10] : memref<1x8x8xbf16, #tpu.memory_space<vmem>>, vector<1x8x8xbf16>
      %15 = vector.shape_cast %14 : vector<1x8x8xbf16> to vector<8x8xbf16>
      %c0_11 = arith.constant 0 : index
      %c0_12 = arith.constant 0 : index
      %c0_13 = arith.constant 0 : index
      %16 = vector.load %arg5[%c0_11, %c0_12, %c0_13] : memref<1x8x8xbf16, #tpu.memory_space<vmem>>, vector<1x8x8xbf16>
      %17 = vector.shape_cast %16 : vector<1x8x8xbf16> to vector<8x8xbf16>
      %cst = arith.constant dense<0.000000e+00> : vector<8x8xf32>
      %18 = tpu.matmul %13, %15, %cst {dimension_numbers = #tpu.dot_dimension_numbers<[1], [1], [0], [0], [0, 0, 1, 0], [], []>} : vector<8x8xbf16>, vector<8x8xbf16>, vector<8x8xf32> -> vector<8x8xf32>
      %c8_i32_14 = arith.constant 8 : i32
      %19 = arith.muli %arg1, %c8_i32_14 : i32
      %20 = tpu.iota {dimensions = array<i32: 0>} : vector<8x8xi32>
      %21 = vector.broadcast %19 : i32 to vector<8x8xi32>
      %22 = arith.addi %21, %20 : vector<8x8xi32>
      %c8_i32_15 = arith.constant 8 : i32
      %23 = arith.muli %arg2, %c8_i32_15 : i32
      %24 = tpu.iota {dimensions = array<i32: 1>} : vector<8x8xi32>
      %25 = vector.broadcast %23 : i32 to vector<8x8xi32>
      %26 = arith.addi %25, %24 : vector<8x8xi32>
      %27 = arith.cmpi sle, %26, %22 : vector<8x8xi32>
      %cst_16 = arith.constant -1.000000e+30 : f32
      %28 = vector.broadcast %cst_16 : f32 to vector<8x8xf32>
      %29 = arith.select %27, %18, %28 : vector<8x8xi1>, vector<8x8xf32>
      %c0_17 = arith.constant 0 : index
      %c0_18 = arith.constant 0 : index
      %30 = vector.load %arg7[%c0_17, %c0_18] : memref<8x1xf32, #tpu.memory_space<vmem>>, vector<8x1xf32>
      %cst_19 = arith.constant dense<0xFF800000> : vector<8xf32>
      %31 = vector.multi_reduction <maximumf>, %29, %cst_19 [1] : vector<8x8xf32> to vector<8xf32>
      %32 = vector.shape_cast %31 : vector<8xf32> to vector<8x1xf32>
      %33 = arith.maximumf %30, %32 : vector<8x1xf32>
      %34 = arith.subf %30, %33 : vector<8x1xf32>
      %35 = math.exp %34 : vector<8x1xf32>
      %36 = vector.broadcast %33 : vector<8x1xf32> to vector<8x8xf32>
      %37 = arith.subf %29, %36 : vector<8x8xf32>
      %38 = math.exp %37 : vector<8x8xf32>
      %c0_20 = arith.constant 0 : index
      %c0_21 = arith.constant 0 : index
      %39 = vector.load %arg8[%c0_20, %c0_21] : memref<8x1xf32, #tpu.memory_space<vmem>>, vector<8x1xf32>
      %40 = arith.mulf %35, %39 : vector<8x1xf32>
      %cst_22 = arith.constant dense<0.000000e+00> : vector<8xf32>
      %41 = vector.multi_reduction <add>, %38, %cst_22 [1] : vector<8x8xf32> to vector<8xf32>
      %42 = vector.shape_cast %41 : vector<8xf32> to vector<8x1xf32>
      %43 = arith.addf %40, %42 : vector<8x1xf32>
      %c0_23 = arith.constant 0 : index
      %c0_24 = arith.constant 0 : index
      %44 = vector.load %arg8[%c0_23, %c0_24] : memref<8x1xf32, #tpu.memory_space<vmem>>, vector<8x1xf32>
      tpu.vector_store %arg8[%c0_23, %c0_24], %43 {strides = array<i32>} : memref<8x1xf32, #tpu.memory_space<vmem>>, vector<8x1xf32>,
      %c0_25 = arith.constant 0 : index
      %c0_26 = arith.constant 0 : index
      %45 = vector.load %arg9[%c0_25, %c0_26] : memref<8x8xf32, #tpu.memory_space<vmem>>, vector<8x8xf32>
      %46 = vector.broadcast %35 : vector<8x1xf32> to vector<8x8xf32>
      %47 = arith.mulf %46, %45 : vector<8x8xf32>
      %48 = arith.truncf %38 : vector<8x8xf32> to vector<8x8xbf16>
      %cst_27 = arith.constant dense<0.000000e+00> : vector<8x8xf32>
      %49 = tpu.matmul %48, %17, %cst_27 {dimension_numbers = #tpu.dot_dimension_numbers<[1], [0], [0], [1], [0, 0, 1, 1], [], []>} : vector<8x8xbf16>, vector<8x8xbf16>, vector<8x8xf32> -> vector<8x8xf32>
      %50 = arith.addf %47, %49 : vector<8x8xf32>
      %c0_28 = arith.constant 0 : index
      %c0_29 = arith.constant 0 : index
      %51 = vector.load %arg9[%c0_28, %c0_29] : memref<8x8xf32, #tpu.memory_space<vmem>>, vector<8x8xf32>
      tpu.vector_store %arg9[%c0_28, %c0_29], %50 {strides = array<i32>} : memref<8x8xf32, #tpu.memory_space<vmem>>, vector<8x8xf32>,
      %c0_30 = arith.constant 0 : index
      %c0_31 = arith.constant 0 : index
      %52 = vector.load %arg7[%c0_30, %c0_31] : memref<8x1xf32, #tpu.memory_space<vmem>>, vector<8x1xf32>
      tpu.vector_store %arg7[%c0_30, %c0_31], %33 {strides = array<i32>} : memref<8x1xf32, #tpu.memory_space<vmem>>, vector<8x1xf32>,
    } else {
    }
    %c0_i32_4 = arith.constant 0 : i32
    %9 = arith.cmpi eq, %arg2, %c0_i32_4 : i32
    %10 = arith.extui %9 : i1 to i32
    %c0_i32_5 = arith.constant 0 : i32
    %11 = arith.cmpi ne, %10, %c0_i32_5 : i32
    scf.if %11 {
      %c0 = arith.constant 0 : index
      %c0_6 = arith.constant 0 : index
      %12 = vector.load %arg8[%c0, %c0_6] : memref<8x1xf32, #tpu.memory_space<vmem>>, vector<8x1xf32>
      %13 = tpu.reciprocal %12 {approx = true} : vector<8x1xf32> -> vector<8x1xf32>
      %c0_7 = arith.constant 0 : index
      %c0_8 = arith.constant 0 : index
      %14 = vector.load %arg9[%c0_7, %c0_8] : memref<8x8xf32, #tpu.memory_space<vmem>>, vector<8x8xf32>
      %15 = vector.broadcast %13 : vector<8x1xf32> to vector<8x8xf32>
      %16 = arith.mulf %14, %15 : vector<8x8xf32>
      %17 = arith.truncf %16 : vector<8x8xf32> to vector<8x8xbf16>
      %c0_9 = arith.constant 0 : index
      %c0_10 = arith.constant 0 : index
      %c0_11 = arith.constant 0 : index
      %18 = vector.load %arg6[%c0_9, %c0_10, %c0_11] : memref<1x8x8xbf16, #tpu.memory_space<vmem>>, vector<1x8x8xbf16>
      %19 = vector.shape_cast %18 : vector<1x8x8xbf16> to vector<8x8xbf16>
      %20 = vector.shape_cast %17 : vector<8x8xbf16> to vector<1x8x8xbf16>
      tpu.vector_store %arg6[%c0_9, %c0_10, %c0_11], %20 {strides = array<i32>} : memref<1x8x8xbf16, #tpu.memory_space<vmem>>, vector<1x8x8xbf16>,
    } else {
    }
    return
  }
  func.func @transform_0(%arg0: i32, %arg1: i32, %arg2: i32) -> (i32, i32, i32) {
    %c0_i32 = arith.constant 0 : i32
    %c0_i32_0 = arith.constant 0 : i32
    return %arg0, %arg1, %c0_i32 : i32, i32, i32
  }
  func.func @transform_1(%arg0: i32, %arg1: i32, %arg2: i32) -> (i32, i32, i32) {
    %c0_i32 = arith.constant 0 : i32
    %c0_i32_0 = arith.constant 0 : i32
    return %arg0, %arg2, %c0_i32 : i32, i32, i32
  }
  func.func @transform_2(%arg0: i32, %arg1: i32, %arg2: i32) -> (i32, i32, i32) {
    %c0_i32 = arith.constant 0 : i32
    %c0_i32_0 = arith.constant 0 : i32
    return %arg0, %arg2, %c0_i32 : i32, i32, i32
  }
  func.func @transform_3(%arg0: i32, %arg1: i32, %arg2: i32) -> (i32, i32, i32) {
    %c0_i32 = arith.constant 0 : i32
    %c0_i32_0 = arith.constant 0 : i32
    return %arg0, %arg1, %c0_i32 : i32, i32, i32
  }
}

module attributes {stable_mosaic.version = 11 : i64} {
  func.func @_linear_add_ln_kernel(%arg0: i32, %arg1: i32, %arg2: memref<16x32xbf16, #tpu.memory_space<vmem>>, %arg3: memref<32x32xbf16, #tpu.memory_space<vmem>>, %arg4: memref<1x32xf32, #tpu.memory_space<vmem>>, %arg5: memref<16x32xbf16, #tpu.memory_space<vmem>>, %arg6: memref<1x32xf32, #tpu.memory_space<vmem>>, %arg7: memref<1x32xf32, #tpu.memory_space<vmem>>, %arg8: memref<16x32xbf16, #tpu.memory_space<vmem>>, %arg9: memref<16x32xf32, #tpu.memory_space<vmem>>) attributes {dimension_semantics = [#tpu.dimension_semantics<parallel>, #tpu.dimension_semantics<arbitrary>], iteration_bounds = array<i64: 1, 1>, scalar_prefetch = 0 : i64, scratch_operands = 1 : i64, tpu.core_type = #tpu.core_type<tc>, window_params = [{transform_indices = @transform_0, window_bounds = array<i64: 16, 32>}, {transform_indices = @transform_1, window_bounds = array<i64: 32, 32>}, {pipeline_mode = #tpu.pipeline_mode<synchronous>, transform_indices = @transform_2, window_bounds = array<i64: 1, 32>}, {transform_indices = @transform_3, window_bounds = array<i64: 16, 32>}, {pipeline_mode = #tpu.pipeline_mode<synchronous>, transform_indices = @transform_4, window_bounds = array<i64: 1, 32>}, {pipeline_mode = #tpu.pipeline_mode<synchronous>, transform_indices = @transform_5, window_bounds = array<i64: 1, 32>}, {transform_indices = @transform_6, window_bounds = array<i64: 16, 32>}]} {
    %c0_i32 = arith.constant 0 : i32
    %0 = arith.cmpi eq, %arg1, %c0_i32 : i32
    %1 = arith.extui %0 : i1 to i32
    %c0_i32_0 = arith.constant 0 : i32
    %2 = arith.cmpi ne, %1, %c0_i32_0 : i32
    scf.if %2 {
      %cst_10 = arith.constant 0.000000e+00 : f32
      %12 = vector.broadcast %cst_10 : f32 to vector<16x32xf32>
      %c0_11 = arith.constant 0 : index
      %c0_12 = arith.constant 0 : index
      %13 = vector.load %arg9[%c0_11, %c0_12] : memref<16x32xf32, #tpu.memory_space<vmem>>, vector<16x32xf32>
      tpu.vector_store %arg9[%c0_11, %c0_12], %12 {strides = array<i32>} : memref<16x32xf32, #tpu.memory_space<vmem>>, vector<16x32xf32>,
    } else {
    }
    %c0 = arith.constant 0 : index
    %c0_1 = arith.constant 0 : index
    %3 = vector.load %arg9[%c0, %c0_1] : memref<16x32xf32, #tpu.memory_space<vmem>>, vector<16x32xf32>
    %c0_2 = arith.constant 0 : index
    %c0_3 = arith.constant 0 : index
    %4 = vector.load %arg2[%c0_2, %c0_3] : memref<16x32xbf16, #tpu.memory_space<vmem>>, vector<16x32xbf16>
    %c0_4 = arith.constant 0 : index
    %c0_5 = arith.constant 0 : index
    %5 = vector.load %arg3[%c0_4, %c0_5] : memref<32x32xbf16, #tpu.memory_space<vmem>>, vector<32x32xbf16>
    %cst = arith.constant dense<0.000000e+00> : vector<16x32xf32>
    %6 = tpu.matmul %4, %5, %cst {dimension_numbers = #tpu.dot_dimension_numbers<[1], [0], [0], [1], [0, 0, 1, 1], [], []>} : vector<16x32xbf16>, vector<32x32xbf16>, vector<16x32xf32> -> vector<16x32xf32>
    %7 = arith.addf %3, %6 : vector<16x32xf32>
    %c0_6 = arith.constant 0 : index
    %c0_7 = arith.constant 0 : index
    %8 = vector.load %arg9[%c0_6, %c0_7] : memref<16x32xf32, #tpu.memory_space<vmem>>, vector<16x32xf32>
    tpu.vector_store %arg9[%c0_6, %c0_7], %7 {strides = array<i32>} : memref<16x32xf32, #tpu.memory_space<vmem>>, vector<16x32xf32>,
    %c0_i32_8 = arith.constant 0 : i32
    %9 = arith.cmpi eq, %arg1, %c0_i32_8 : i32
    %10 = arith.extui %9 : i1 to i32
    %c0_i32_9 = arith.constant 0 : i32
    %11 = arith.cmpi ne, %10, %c0_i32_9 : i32
    scf.if %11 {
      %c0_10 = arith.constant 0 : index
      %c0_11 = arith.constant 0 : index
      %12 = vector.load %arg9[%c0_10, %c0_11] : memref<16x32xf32, #tpu.memory_space<vmem>>, vector<16x32xf32>
      %c0_12 = arith.constant 0 : index
      %c0_13 = arith.constant 0 : index
      %13 = vector.load %arg4[%c0_12, %c0_13] : memref<1x32xf32, #tpu.memory_space<vmem>>, vector<1x32xf32>
      %14 = vector.broadcast %13 : vector<1x32xf32> to vector<16x32xf32>
      %15 = arith.addf %12, %14 : vector<16x32xf32>
      %c0_14 = arith.constant 0 : index
      %c0_15 = arith.constant 0 : index
      %16 = vector.load %arg5[%c0_14, %c0_15] : memref<16x32xbf16, #tpu.memory_space<vmem>>, vector<16x32xbf16>
      %17 = arith.extf %16 : vector<16x32xbf16> to vector<16x32xf32>
      %18 = arith.addf %15, %17 : vector<16x32xf32>
      %cst_16 = arith.constant dense<0.000000e+00> : vector<16xf32>
      %19 = vector.multi_reduction <add>, %18, %cst_16 [1] : vector<16x32xf32> to vector<16xf32>
      %20 = vector.shape_cast %19 : vector<16xf32> to vector<16x1xf32>
      %cst_17 = arith.constant 3.200000e+01 : f32
      %21 = vector.broadcast %cst_17 : f32 to vector<16x1xf32>
      %22 = arith.divf %20, %21 : vector<16x1xf32>
      %23 = vector.broadcast %22 : vector<16x1xf32> to vector<16x32xf32>
      %24 = arith.subf %18, %23 : vector<16x32xf32>
      %25 = arith.mulf %24, %24 : vector<16x32xf32>
      %cst_18 = arith.constant dense<0.000000e+00> : vector<16xf32>
      %26 = vector.multi_reduction <add>, %25, %cst_18 [1] : vector<16x32xf32> to vector<16xf32>
      %27 = vector.shape_cast %26 : vector<16xf32> to vector<16x1xf32>
      %cst_19 = arith.constant 3.200000e+01 : f32
      %28 = vector.broadcast %cst_19 : f32 to vector<16x1xf32>
      %29 = arith.divf %27, %28 : vector<16x1xf32>
      %30 = vector.broadcast %22 : vector<16x1xf32> to vector<16x32xf32>
      %31 = arith.subf %18, %30 : vector<16x32xf32>
      %cst_20 = arith.constant 9.99999974E-6 : f32
      %32 = vector.broadcast %cst_20 : f32 to vector<16x1xf32>
      %33 = arith.addf %29, %32 : vector<16x1xf32>
      %34 = math.rsqrt %33 : vector<16x1xf32>
      %35 = vector.broadcast %34 : vector<16x1xf32> to vector<16x32xf32>
      %36 = arith.mulf %31, %35 : vector<16x32xf32>
      %c0_21 = arith.constant 0 : index
      %c0_22 = arith.constant 0 : index
      %37 = vector.load %arg6[%c0_21, %c0_22] : memref<1x32xf32, #tpu.memory_space<vmem>>, vector<1x32xf32>
      %38 = vector.broadcast %37 : vector<1x32xf32> to vector<16x32xf32>
      %39 = arith.mulf %36, %38 : vector<16x32xf32>
      %c0_23 = arith.constant 0 : index
      %c0_24 = arith.constant 0 : index
      %40 = vector.load %arg7[%c0_23, %c0_24] : memref<1x32xf32, #tpu.memory_space<vmem>>, vector<1x32xf32>
      %41 = vector.broadcast %40 : vector<1x32xf32> to vector<16x32xf32>
      %42 = arith.addf %39, %41 : vector<16x32xf32>
      %43 = arith.truncf %42 : vector<16x32xf32> to vector<16x32xbf16>
      %c0_25 = arith.constant 0 : index
      %c0_26 = arith.constant 0 : index
      %44 = vector.load %arg8[%c0_25, %c0_26] : memref<16x32xbf16, #tpu.memory_space<vmem>>, vector<16x32xbf16>
      tpu.vector_store %arg8[%c0_25, %c0_26], %43 {strides = array<i32>} : memref<16x32xbf16, #tpu.memory_space<vmem>>, vector<16x32xbf16>,
    } else {
    }
    return
  }
  func.func @transform_0(%arg0: i32, %arg1: i32) -> (i32, i32) {
    %c0_i32 = arith.constant 0 : i32
    return %arg0, %arg1 : i32, i32
  }
  func.func @transform_1(%arg0: i32, %arg1: i32) -> (i32, i32) {
    %c0_i32 = arith.constant 0 : i32
    %c0_i32_0 = arith.constant 0 : i32
    return %arg1, %c0_i32 : i32, i32
  }
  func.func @transform_2(%arg0: i32, %arg1: i32) -> (i32, i32) {
    %c0_i32 = arith.constant 0 : i32
    %c0_i32_0 = arith.constant 0 : i32
    %c0_i32_1 = arith.constant 0 : i32
    return %c0_i32, %c0_i32_0 : i32, i32
  }
  func.func @transform_3(%arg0: i32, %arg1: i32) -> (i32, i32) {
    %c0_i32 = arith.constant 0 : i32
    %c0_i32_0 = arith.constant 0 : i32
    return %arg0, %c0_i32 : i32, i32
  }
  func.func @transform_4(%arg0: i32, %arg1: i32) -> (i32, i32) {
    %c0_i32 = arith.constant 0 : i32
    %c0_i32_0 = arith.constant 0 : i32
    %c0_i32_1 = arith.constant 0 : i32
    return %c0_i32, %c0_i32_0 : i32, i32
  }
  func.func @transform_5(%arg0: i32, %arg1: i32) -> (i32, i32) {
    %c0_i32 = arith.constant 0 : i32
    %c0_i32_0 = arith.constant 0 : i32
    %c0_i32_1 = arith.constant 0 : i32
    return %c0_i32, %c0_i32_0 : i32, i32
  }
  func.func @transform_6(%arg0: i32, %arg1: i32) -> (i32, i32) {
    %c0_i32 = arith.constant 0 : i32
    %c0_i32_0 = arith.constant 0 : i32
    return %arg0, %c0_i32 : i32, i32
  }
}

module attributes {stable_mosaic.version = 11 : i64} {
  func.func @_linear_kernel(%arg0: i32, %arg1: i32, %arg2: i32, %arg3: memref<16x32xbf16, #tpu.memory_space<vmem>>, %arg4: memref<32x32xbf16, #tpu.memory_space<vmem>>, %arg5: memref<1x32xf32, #tpu.memory_space<vmem>>, %arg6: memref<16x32xbf16, #tpu.memory_space<vmem>>, %arg7: memref<16x32xf32, #tpu.memory_space<vmem>>) attributes {dimension_semantics = [#tpu.dimension_semantics<parallel>, #tpu.dimension_semantics<parallel>, #tpu.dimension_semantics<arbitrary>], iteration_bounds = array<i64: 1, 1, 1>, scalar_prefetch = 0 : i64, scratch_operands = 1 : i64, tpu.core_type = #tpu.core_type<tc>, window_params = [{transform_indices = @transform_0, window_bounds = array<i64: 16, 32>}, {transform_indices = @transform_1, window_bounds = array<i64: 32, 32>}, {transform_indices = @transform_2, window_bounds = array<i64: 1, 32>}, {transform_indices = @transform_3, window_bounds = array<i64: 16, 32>}]} {
    %c0_i32 = arith.constant 0 : i32
    %0 = arith.cmpi eq, %arg2, %c0_i32 : i32
    %1 = arith.extui %0 : i1 to i32
    %c0_i32_0 = arith.constant 0 : i32
    %2 = arith.cmpi ne, %1, %c0_i32_0 : i32
    scf.if %2 {
      %cst_10 = arith.constant 0.000000e+00 : f32
      %12 = vector.broadcast %cst_10 : f32 to vector<16x32xf32>
      %c0_11 = arith.constant 0 : index
      %c0_12 = arith.constant 0 : index
      %13 = vector.load %arg7[%c0_11, %c0_12] : memref<16x32xf32, #tpu.memory_space<vmem>>, vector<16x32xf32>
      tpu.vector_store %arg7[%c0_11, %c0_12], %12 {strides = array<i32>} : memref<16x32xf32, #tpu.memory_space<vmem>>, vector<16x32xf32>,
    } else {
    }
    %c0 = arith.constant 0 : index
    %c0_1 = arith.constant 0 : index
    %3 = vector.load %arg7[%c0, %c0_1] : memref<16x32xf32, #tpu.memory_space<vmem>>, vector<16x32xf32>
    %c0_2 = arith.constant 0 : index
    %c0_3 = arith.constant 0 : index
    %4 = vector.load %arg3[%c0_2, %c0_3] : memref<16x32xbf16, #tpu.memory_space<vmem>>, vector<16x32xbf16>
    %c0_4 = arith.constant 0 : index
    %c0_5 = arith.constant 0 : index
    %5 = vector.load %arg4[%c0_4, %c0_5] : memref<32x32xbf16, #tpu.memory_space<vmem>>, vector<32x32xbf16>
    %cst = arith.constant dense<0.000000e+00> : vector<16x32xf32>
    %6 = tpu.matmul %4, %5, %cst {dimension_numbers = #tpu.dot_dimension_numbers<[1], [0], [0], [1], [0, 0, 1, 1], [], []>} : vector<16x32xbf16>, vector<32x32xbf16>, vector<16x32xf32> -> vector<16x32xf32>
    %7 = arith.addf %3, %6 : vector<16x32xf32>
    %c0_6 = arith.constant 0 : index
    %c0_7 = arith.constant 0 : index
    %8 = vector.load %arg7[%c0_6, %c0_7] : memref<16x32xf32, #tpu.memory_space<vmem>>, vector<16x32xf32>
    tpu.vector_store %arg7[%c0_6, %c0_7], %7 {strides = array<i32>} : memref<16x32xf32, #tpu.memory_space<vmem>>, vector<16x32xf32>,
    %c0_i32_8 = arith.constant 0 : i32
    %9 = arith.cmpi eq, %arg2, %c0_i32_8 : i32
    %10 = arith.extui %9 : i1 to i32
    %c0_i32_9 = arith.constant 0 : i32
    %11 = arith.cmpi ne, %10, %c0_i32_9 : i32
    scf.if %11 {
      %c0_10 = arith.constant 0 : index
      %c0_11 = arith.constant 0 : index
      %12 = vector.load %arg7[%c0_10, %c0_11] : memref<16x32xf32, #tpu.memory_space<vmem>>, vector<16x32xf32>
      %c0_12 = arith.constant 0 : index
      %c0_13 = arith.constant 0 : index
      %13 = vector.load %arg5[%c0_12, %c0_13] : memref<1x32xf32, #tpu.memory_space<vmem>>, vector<1x32xf32>
      %14 = vector.broadcast %13 : vector<1x32xf32> to vector<16x32xf32>
      %15 = arith.addf %12, %14 : vector<16x32xf32>
      %16 = arith.truncf %15 : vector<16x32xf32> to vector<16x32xbf16>
      %c0_14 = arith.constant 0 : index
      %c0_15 = arith.constant 0 : index
      %17 = vector.load %arg6[%c0_14, %c0_15] : memref<16x32xbf16, #tpu.memory_space<vmem>>, vector<16x32xbf16>
      tpu.vector_store %arg6[%c0_14, %c0_15], %16 {strides = array<i32>} : memref<16x32xbf16, #tpu.memory_space<vmem>>, vector<16x32xbf16>,
    } else {
    }
    return
  }
  func.func @transform_0(%arg0: i32, %arg1: i32, %arg2: i32) -> (i32, i32) {
    %c0_i32 = arith.constant 0 : i32
    return %arg0, %arg2 : i32, i32
  }
  func.func @transform_1(%arg0: i32, %arg1: i32, %arg2: i32) -> (i32, i32) {
    %c0_i32 = arith.constant 0 : i32
    return %arg2, %arg1 : i32, i32
  }
  func.func @transform_2(%arg0: i32, %arg1: i32, %arg2: i32) -> (i32, i32) {
    %c0_i32 = arith.constant 0 : i32
    %c0_i32_0 = arith.constant 0 : i32
    return %c0_i32, %arg1 : i32, i32
  }
  func.func @transform_3(%arg0: i32, %arg1: i32, %arg2: i32) -> (i32, i32) {
    %c0_i32 = arith.constant 0 : i32
    return %arg0, %arg1 : i32, i32
  }
}

module attributes {stable_mosaic.version = 11 : i64} {
  func.func @_linear_kernel(%arg0: i32, %arg1: i32, %arg2: i32, %arg3: memref<16x32xbf16, #tpu.memory_space<vmem>>, %arg4: memref<32x64xbf16, #tpu.memory_space<vmem>>, %arg5: memref<1x64xf32, #tpu.memory_space<vmem>>, %arg6: memref<16x64xbf16, #tpu.memory_space<vmem>>, %arg7: memref<16x64xf32, #tpu.memory_space<vmem>>) attributes {dimension_semantics = [#tpu.dimension_semantics<parallel>, #tpu.dimension_semantics<parallel>, #tpu.dimension_semantics<arbitrary>], iteration_bounds = array<i64: 1, 1, 1>, scalar_prefetch = 0 : i64, scratch_operands = 1 : i64, tpu.core_type = #tpu.core_type<tc>, window_params = [{transform_indices = @transform_0, window_bounds = array<i64: 16, 32>}, {transform_indices = @transform_1, window_bounds = array<i64: 32, 64>}, {transform_indices = @transform_2, window_bounds = array<i64: 1, 64>}, {transform_indices = @transform_3, window_bounds = array<i64: 16, 64>}]} {
    %c0_i32 = arith.constant 0 : i32
    %0 = arith.cmpi eq, %arg2, %c0_i32 : i32
    %1 = arith.extui %0 : i1 to i32
    %c0_i32_0 = arith.constant 0 : i32
    %2 = arith.cmpi ne, %1, %c0_i32_0 : i32
    scf.if %2 {
      %cst_10 = arith.constant 0.000000e+00 : f32
      %12 = vector.broadcast %cst_10 : f32 to vector<16x64xf32>
      %c0_11 = arith.constant 0 : index
      %c0_12 = arith.constant 0 : index
      %13 = vector.load %arg7[%c0_11, %c0_12] : memref<16x64xf32, #tpu.memory_space<vmem>>, vector<16x64xf32>
      tpu.vector_store %arg7[%c0_11, %c0_12], %12 {strides = array<i32>} : memref<16x64xf32, #tpu.memory_space<vmem>>, vector<16x64xf32>,
    } else {
    }
    %c0 = arith.constant 0 : index
    %c0_1 = arith.constant 0 : index
    %3 = vector.load %arg7[%c0, %c0_1] : memref<16x64xf32, #tpu.memory_space<vmem>>, vector<16x64xf32>
    %c0_2 = arith.constant 0 : index
    %c0_3 = arith.constant 0 : index
    %4 = vector.load %arg3[%c0_2, %c0_3] : memref<16x32xbf16, #tpu.memory_space<vmem>>, vector<16x32xbf16>
    %c0_4 = arith.constant 0 : index
    %c0_5 = arith.constant 0 : index
    %5 = vector.load %arg4[%c0_4, %c0_5] : memref<32x64xbf16, #tpu.memory_space<vmem>>, vector<32x64xbf16>
    %cst = arith.constant dense<0.000000e+00> : vector<16x64xf32>
    %6 = tpu.matmul %4, %5, %cst {dimension_numbers = #tpu.dot_dimension_numbers<[1], [0], [0], [1], [0, 0, 1, 1], [], []>} : vector<16x32xbf16>, vector<32x64xbf16>, vector<16x64xf32> -> vector<16x64xf32>
    %7 = arith.addf %3, %6 : vector<16x64xf32>
    %c0_6 = arith.constant 0 : index
    %c0_7 = arith.constant 0 : index
    %8 = vector.load %arg7[%c0_6, %c0_7] : memref<16x64xf32, #tpu.memory_space<vmem>>, vector<16x64xf32>
    tpu.vector_store %arg7[%c0_6, %c0_7], %7 {strides = array<i32>} : memref<16x64xf32, #tpu.memory_space<vmem>>, vector<16x64xf32>,
    %c0_i32_8 = arith.constant 0 : i32
    %9 = arith.cmpi eq, %arg2, %c0_i32_8 : i32
    %10 = arith.extui %9 : i1 to i32
    %c0_i32_9 = arith.constant 0 : i32
    %11 = arith.cmpi ne, %10, %c0_i32_9 : i32
    scf.if %11 {
      %c0_10 = arith.constant 0 : index
      %c0_11 = arith.constant 0 : index
      %12 = vector.load %arg7[%c0_10, %c0_11] : memref<16x64xf32, #tpu.memory_space<vmem>>, vector<16x64xf32>
      %c0_12 = arith.constant 0 : index
      %c0_13 = arith.constant 0 : index
      %13 = vector.load %arg5[%c0_12, %c0_13] : memref<1x64xf32, #tpu.memory_space<vmem>>, vector<1x64xf32>
      %14 = vector.broadcast %13 : vector<1x64xf32> to vector<16x64xf32>
      %15 = arith.addf %12, %14 : vector<16x64xf32>
      %cst_14 = arith.constant 0.000000e+00 : f32
      %16 = vector.broadcast %cst_14 : f32 to vector<16x64xf32>
      %17 = arith.maximumf %15, %16 : vector<16x64xf32>
      %18 = arith.truncf %17 : vector<16x64xf32> to vector<16x64xbf16>
      %c0_15 = arith.constant 0 : index
      %c0_16 = arith.constant 0 : index
      %19 = vector.load %arg6[%c0_15, %c0_16] : memref<16x64xbf16, #tpu.memory_space<vmem>>, vector<16x64xbf16>
      tpu.vector_store %arg6[%c0_15, %c0_16], %18 {strides = array<i32>} : memref<16x64xbf16, #tpu.memory_space<vmem>>, vector<16x64xbf16>,
    } else {
    }
    return
  }
  func.func @transform_0(%arg0: i32, %arg1: i32, %arg2: i32) -> (i32, i32) {
    %c0_i32 = arith.constant 0 : i32
    return %arg0, %arg2 : i32, i32
  }
  func.func @transform_1(%arg0: i32, %arg1: i32, %arg2: i32) -> (i32, i32) {
    %c0_i32 = arith.constant 0 : i32
    return %arg2, %arg1 : i32, i32
  }
  func.func @transform_2(%arg0: i32, %arg1: i32, %arg2: i32) -> (i32, i32) {
    %c0_i32 = arith.constant 0 : i32
    %c0_i32_0 = arith.constant 0 : i32
    return %c0_i32, %arg1 : i32, i32
  }
  func.func @transform_3(%arg0: i32, %arg1: i32, %arg2: i32) -> (i32, i32) {
    %c0_i32 = arith.constant 0 : i32
    return %arg0, %arg1 : i32, i32
  }
}

module attributes {stable_mosaic.version = 11 : i64} {
  func.func @_flash_attn_kernel(%arg0: i32, %arg1: i32, %arg2: i32, %arg3: memref<1x8x8xbf16, #tpu.memory_space<vmem>>, %arg4: memref<1x8x8xbf16, #tpu.memory_space<vmem>>, %arg5: memref<1x8x8xbf16, #tpu.memory_space<vmem>>, %arg6: memref<1x8x8xbf16, #tpu.memory_space<vmem>>, %arg7: memref<8x1xf32, #tpu.memory_space<vmem>>, %arg8: memref<8x1xf32, #tpu.memory_space<vmem>>, %arg9: memref<8x8xf32, #tpu.memory_space<vmem>>) attributes {dimension_semantics = [#tpu.dimension_semantics<parallel>, #tpu.dimension_semantics<parallel>, #tpu.dimension_semantics<arbitrary>], iteration_bounds = array<i64: 8, 1, 1>, scalar_prefetch = 0 : i64, scratch_operands = 3 : i64, tpu.core_type = #tpu.core_type<tc>, window_params = [{transform_indices = @transform_0, window_bounds = array<i64: 1, 8, 8>}, {transform_indices = @transform_1, window_bounds = array<i64: 1, 8, 8>}, {transform_indices = @transform_2, window_bounds = array<i64: 1, 8, 8>}, {transform_indices = @transform_3, window_bounds = array<i64: 1, 8, 8>}]} {
    %c0_i32 = arith.constant 0 : i32
    %0 = arith.cmpi eq, %arg2, %c0_i32 : i32
    %1 = arith.extui %0 : i1 to i32
    %c0_i32_0 = arith.constant 0 : i32
    %2 = arith.cmpi ne, %1, %c0_i32_0 : i32
    scf.if %2 {
      %cst_26 = arith.constant -1.000000e+30 : f32
      %36 = vector.broadcast %cst_26 : f32 to vector<8x1xf32>
      %c0_27 = arith.constant 0 : index
      %c0_28 = arith.constant 0 : index
      %37 = vector.load %arg7[%c0_27, %c0_28] : memref<8x1xf32, #tpu.memory_space<vmem>>, vector<8x1xf32>
      tpu.vector_store %arg7[%c0_27, %c0_28], %36 {strides = array<i32>} : memref<8x1xf32, #tpu.memory_space<vmem>>, vector<8x1xf32>,
      %cst_29 = arith.constant 0.000000e+00 : f32
      %38 = vector.broadcast %cst_29 : f32 to vector<8x1xf32>
      %c0_30 = arith.constant 0 : index
      %c0_31 = arith.constant 0 : index
      %39 = vector.load %arg8[%c0_30, %c0_31] : memref<8x1xf32, #tpu.memory_space<vmem>>, vector<8x1xf32>
      tpu.vector_store %arg8[%c0_30, %c0_31], %38 {strides = array<i32>} : memref<8x1xf32, #tpu.memory_space<vmem>>, vector<8x1xf32>,
      %cst_32 = arith.constant 0.000000e+00 : f32
      %40 = vector.broadcast %cst_32 : f32 to vector<8x8xf32>
      %c0_33 = arith.constant 0 : index
      %c0_34 = arith.constant 0 : index
      %41 = vector.load %arg9[%c0_33, %c0_34] : memref<8x8xf32, #tpu.memory_space<vmem>>, vector<8x8xf32>
      tpu.vector_store %arg9[%c0_33, %c0_34], %40 {strides = array<i32>} : memref<8x8xf32, #tpu.memory_space<vmem>>, vector<8x8xf32>,
    } else {
    }
    %c0 = arith.constant 0 : index
    %c0_1 = arith.constant 0 : index
    %c0_2 = arith.constant 0 : index
    %3 = vector.load %arg3[%c0, %c0_1, %c0_2] : memref<1x8x8xbf16, #tpu.memory_space<vmem>>, vector<1x8x8xbf16>
    %4 = vector.shape_cast %3 : vector<1x8x8xbf16> to vector<8x8xbf16>
    %c0_3 = arith.constant 0 : index
    %c0_4 = arith.constant 0 : index
    %c0_5 = arith.constant 0 : index
    %5 = vector.load %arg4[%c0_3, %c0_4, %c0_5] : memref<1x8x8xbf16, #tpu.memory_space<vmem>>, vector<1x8x8xbf16>
    %6 = vector.shape_cast %5 : vector<1x8x8xbf16> to vector<8x8xbf16>
    %c0_6 = arith.constant 0 : index
    %c0_7 = arith.constant 0 : index
    %c0_8 = arith.constant 0 : index
    %7 = vector.load %arg5[%c0_6, %c0_7, %c0_8] : memref<1x8x8xbf16, #tpu.memory_space<vmem>>, vector<1x8x8xbf16>
    %8 = vector.shape_cast %7 : vector<1x8x8xbf16> to vector<8x8xbf16>
    %cst = arith.constant dense<0.000000e+00> : vector<8x8xf32>
    %9 = tpu.matmul %4, %6, %cst {dimension_numbers = #tpu.dot_dimension_numbers<[1], [1], [0], [0], [0, 0, 1, 0], [], []>} : vector<8x8xbf16>, vector<8x8xbf16>, vector<8x8xf32> -> vector<8x8xf32>
    %c0_9 = arith.constant 0 : index
    %c0_10 = arith.constant 0 : index
    %10 = vector.load %arg7[%c0_9, %c0_10] : memref<8x1xf32, #tpu.memory_space<vmem>>, vector<8x1xf32>
    %cst_11 = arith.constant dense<0xFF800000> : vector<8xf32>
    %11 = vector.multi_reduction <maximumf>, %9, %cst_11 [1] : vector<8x8xf32> to vector<8xf32>
    %12 = vector.shape_cast %11 : vector<8xf32> to vector<8x1xf32>
    %13 = arith.maximumf %10, %12 : vector<8x1xf32>
    %14 = arith.subf %10, %13 : vector<8x1xf32>
    %15 = math.exp %14 : vector<8x1xf32>
    %16 = vector.broadcast %13 : vector<8x1xf32> to vector<8x8xf32>
    %17 = arith.subf %9, %16 : vector<8x8xf32>
    %18 = math.exp %17 : vector<8x8xf32>
    %c0_12 = arith.constant 0 : index
    %c0_13 = arith.constant 0 : index
    %19 = vector.load %arg8[%c0_12, %c0_13] : memref<8x1xf32, #tpu.memory_space<vmem>>, vector<8x1xf32>
    %20 = arith.mulf %15, %19 : vector<8x1xf32>
    %cst_14 = arith.constant dense<0.000000e+00> : vector<8xf32>
    %21 = vector.multi_reduction <add>, %18, %cst_14 [1] : vector<8x8xf32> to vector<8xf32>
    %22 = vector.shape_cast %21 : vector<8xf32> to vector<8x1xf32>
    %23 = arith.addf %20, %22 : vector<8x1xf32>
    %c0_15 = arith.constant 0 : index
    %c0_16 = arith.constant 0 : index
    %24 = vector.load %arg8[%c0_15, %c0_16] : memref<8x1xf32, #tpu.memory_space<vmem>>, vector<8x1xf32>
    tpu.vector_store %arg8[%c0_15, %c0_16], %23 {strides = array<i32>} : memref<8x1xf32, #tpu.memory_space<vmem>>, vector<8x1xf32>,
    %c0_17 = arith.constant 0 : index
    %c0_18 = arith.constant 0 : index
    %25 = vector.load %arg9[%c0_17, %c0_18] : memref<8x8xf32, #tpu.memory_space<vmem>>, vector<8x8xf32>
    %26 = vector.broadcast %15 : vector<8x1xf32> to vector<8x8xf32>
    %27 = arith.mulf %26, %25 : vector<8x8xf32>
    %28 = arith.truncf %18 : vector<8x8xf32> to vector<8x8xbf16>
    %cst_19 = arith.constant dense<0.000000e+00> : vector<8x8xf32>
    %29 = tpu.matmul %28, %8, %cst_19 {dimension_numbers = #tpu.dot_dimension_numbers<[1], [0], [0], [1], [0, 0, 1, 1], [], []>} : vector<8x8xbf16>, vector<8x8xbf16>, vector<8x8xf32> -> vector<8x8xf32>
    %30 = arith.addf %27, %29 : vector<8x8xf32>
    %c0_20 = arith.constant 0 : index
    %c0_21 = arith.constant 0 : index
    %31 = vector.load %arg9[%c0_20, %c0_21] : memref<8x8xf32, #tpu.memory_space<vmem>>, vector<8x8xf32>
    tpu.vector_store %arg9[%c0_20, %c0_21], %30 {strides = array<i32>} : memref<8x8xf32, #tpu.memory_space<vmem>>, vector<8x8xf32>,
    %c0_22 = arith.constant 0 : index
    %c0_23 = arith.constant 0 : index
    %32 = vector.load %arg7[%c0_22, %c0_23] : memref<8x1xf32, #tpu.memory_space<vmem>>, vector<8x1xf32>
    tpu.vector_store %arg7[%c0_22, %c0_23], %13 {strides = array<i32>} : memref<8x1xf32, #tpu.memory_space<vmem>>, vector<8x1xf32>,
    %c0_i32_24 = arith.constant 0 : i32
    %33 = arith.cmpi eq, %arg2, %c0_i32_24 : i32
    %34 = arith.extui %33 : i1 to i32
    %c0_i32_25 = arith.constant 0 : i32
    %35 = arith.cmpi ne, %34, %c0_i32_25 : i32
    scf.if %35 {
      %c0_26 = arith.constant 0 : index
      %c0_27 = arith.constant 0 : index
      %36 = vector.load %arg8[%c0_26, %c0_27] : memref<8x1xf32, #tpu.memory_space<vmem>>, vector<8x1xf32>
      %37 = tpu.reciprocal %36 {approx = true} : vector<8x1xf32> -> vector<8x1xf32>
      %c0_28 = arith.constant 0 : index
      %c0_29 = arith.constant 0 : index
      %38 = vector.load %arg9[%c0_28, %c0_29] : memref<8x8xf32, #tpu.memory_space<vmem>>, vector<8x8xf32>
      %39 = vector.broadcast %37 : vector<8x1xf32> to vector<8x8xf32>
      %40 = arith.mulf %38, %39 : vector<8x8xf32>
      %41 = arith.truncf %40 : vector<8x8xf32> to vector<8x8xbf16>
      %c0_30 = arith.constant 0 : index
      %c0_31 = arith.constant 0 : index
      %c0_32 = arith.constant 0 : index
      %42 = vector.load %arg6[%c0_30, %c0_31, %c0_32] : memref<1x8x8xbf16, #tpu.memory_space<vmem>>, vector<1x8x8xbf16>
      %43 = vector.shape_cast %42 : vector<1x8x8xbf16> to vector<8x8xbf16>
      %44 = vector.shape_cast %41 : vector<8x8xbf16> to vector<1x8x8xbf16>
      tpu.vector_store %arg6[%c0_30, %c0_31, %c0_32], %44 {strides = array<i32>} : memref<1x8x8xbf16, #tpu.memory_space<vmem>>, vector<1x8x8xbf16>,
    } else {
    }
    return
  }
  func.func @transform_0(%arg0: i32, %arg1: i32, %arg2: i32) -> (i32, i32, i32) {
    %c0_i32 = arith.constant 0 : i32
    %c0_i32_0 = arith.constant 0 : i32
    return %arg0, %arg1, %c0_i32 : i32, i32, i32
  }
  func.func @transform_1(%arg0: i32, %arg1: i32, %arg2: i32) -> (i32, i32, i32) {
    %c0_i32 = arith.constant 0 : i32
    %c0_i32_0 = arith.constant 0 : i32
    return %arg0, %arg2, %c0_i32 : i32, i32, i32
  }
  func.func @transform_2(%arg0: i32, %arg1: i32, %arg2: i32) -> (i32, i32, i32) {
    %c0_i32 = arith.constant 0 : i32
    %c0_i32_0 = arith.constant 0 : i32
    return %arg0, %arg2, %c0_i32 : i32, i32, i32
  }
  func.func @transform_3(%arg0: i32, %arg1: i32, %arg2: i32) -> (i32, i32, i32) {
    %c0_i32 = arith.constant 0 : i32
    %c0_i32_0 = arith.constant 0 : i32
    return %arg0, %arg1, %c0_i32 : i32, i32, i32
  }
}

module attributes {stable_mosaic.version = 11 : i64} {
  func.func @_linear_add_ln_kernel(%arg0: i32, %arg1: i32, %arg2: memref<16x64xbf16, #tpu.memory_space<vmem>>, %arg3: memref<64x32xbf16, #tpu.memory_space<vmem>>, %arg4: memref<1x32xf32, #tpu.memory_space<vmem>>, %arg5: memref<16x32xbf16, #tpu.memory_space<vmem>>, %arg6: memref<1x32xf32, #tpu.memory_space<vmem>>, %arg7: memref<1x32xf32, #tpu.memory_space<vmem>>, %arg8: memref<16x32xbf16, #tpu.memory_space<vmem>>, %arg9: memref<16x32xf32, #tpu.memory_space<vmem>>) attributes {dimension_semantics = [#tpu.dimension_semantics<parallel>, #tpu.dimension_semantics<arbitrary>], iteration_bounds = array<i64: 1, 1>, scalar_prefetch = 0 : i64, scratch_operands = 1 : i64, tpu.core_type = #tpu.core_type<tc>, window_params = [{transform_indices = @transform_0, window_bounds = array<i64: 16, 64>}, {transform_indices = @transform_1, window_bounds = array<i64: 64, 32>}, {pipeline_mode = #tpu.pipeline_mode<synchronous>, transform_indices = @transform_2, window_bounds = array<i64: 1, 32>}, {transform_indices = @transform_3, window_bounds = array<i64: 16, 32>}, {pipeline_mode = #tpu.pipeline_mode<synchronous>, transform_indices = @transform_4, window_bounds = array<i64: 1, 32>}, {pipeline_mode = #tpu.pipeline_mode<synchronous>, transform_indices = @transform_5, window_bounds = array<i64: 1, 32>}, {transform_indices = @transform_6, window_bounds = array<i64: 16, 32>}]} {
    %c0_i32 = arith.constant 0 : i32
    %0 = arith.cmpi eq, %arg1, %c0_i32 : i32
    %1 = arith.extui %0 : i1 to i32
    %c0_i32_0 = arith.constant 0 : i32
    %2 = arith.cmpi ne, %1, %c0_i32_0 : i32
    scf.if %2 {
      %cst_10 = arith.constant 0.000000e+00 : f32
      %12 = vector.broadcast %cst_10 : f32 to vector<16x32xf32>
      %c0_11 = arith.constant 0 : index
      %c0_12 = arith.constant 0 : index
      %13 = vector.load %arg9[%c0_11, %c0_12] : memref<16x32xf32, #tpu.memory_space<vmem>>, vector<16x32xf32>
      tpu.vector_store %arg9[%c0_11, %c0_12], %12 {strides = array<i32>} : memref<16x32xf32, #tpu.memory_space<vmem>>, vector<16x32xf32>,
    } else {
    }
    %c0 = arith.constant 0 : index
    %c0_1 = arith.constant 0 : index
    %3 = vector.load %arg9[%c0, %c0_1] : memref<16x32xf32, #tpu.memory_space<vmem>>, vector<16x32xf32>
    %c0_2 = arith.constant 0 : index
    %c0_3 = arith.constant 0 : index
    %4 = vector.load %arg2[%c0_2, %c0_3] : memref<16x64xbf16, #tpu.memory_space<vmem>>, vector<16x64xbf16>
    %c0_4 = arith.constant 0 : index
    %c0_5 = arith.constant 0 : index
    %5 = vector.load %arg3[%c0_4, %c0_5] : memref<64x32xbf16, #tpu.memory_space<vmem>>, vector<64x32xbf16>
    %cst = arith.constant dense<0.000000e+00> : vector<16x32xf32>
    %6 = tpu.matmul %4, %5, %cst {dimension_numbers = #tpu.dot_dimension_numbers<[1], [0], [0], [1], [0, 0, 1, 1], [], []>} : vector<16x64xbf16>, vector<64x32xbf16>, vector<16x32xf32> -> vector<16x32xf32>
    %7 = arith.addf %3, %6 : vector<16x32xf32>
    %c0_6 = arith.constant 0 : index
    %c0_7 = arith.constant 0 : index
    %8 = vector.load %arg9[%c0_6, %c0_7] : memref<16x32xf32, #tpu.memory_space<vmem>>, vector<16x32xf32>
    tpu.vector_store %arg9[%c0_6, %c0_7], %7 {strides = array<i32>} : memref<16x32xf32, #tpu.memory_space<vmem>>, vector<16x32xf32>,
    %c0_i32_8 = arith.constant 0 : i32
    %9 = arith.cmpi eq, %arg1, %c0_i32_8 : i32
    %10 = arith.extui %9 : i1 to i32
    %c0_i32_9 = arith.constant 0 : i32
    %11 = arith.cmpi ne, %10, %c0_i32_9 : i32
    scf.if %11 {
      %c0_10 = arith.constant 0 : index
      %c0_11 = arith.constant 0 : index
      %12 = vector.load %arg9[%c0_10, %c0_11] : memref<16x32xf32, #tpu.memory_space<vmem>>, vector<16x32xf32>
      %c0_12 = arith.constant 0 : index
      %c0_13 = arith.constant 0 : index
      %13 = vector.load %arg4[%c0_12, %c0_13] : memref<1x32xf32, #tpu.memory_space<vmem>>, vector<1x32xf32>
      %14 = vector.broadcast %13 : vector<1x32xf32> to vector<16x32xf32>
      %15 = arith.addf %12, %14 : vector<16x32xf32>
      %c0_14 = arith.constant 0 : index
      %c0_15 = arith.constant 0 : index
      %16 = vector.load %arg5[%c0_14, %c0_15] : memref<16x32xbf16, #tpu.memory_space<vmem>>, vector<16x32xbf16>
      %17 = arith.extf %16 : vector<16x32xbf16> to vector<16x32xf32>
      %18 = arith.addf %15, %17 : vector<16x32xf32>
      %cst_16 = arith.constant dense<0.000000e+00> : vector<16xf32>
      %19 = vector.multi_reduction <add>, %18, %cst_16 [1] : vector<16x32xf32> to vector<16xf32>
      %20 = vector.shape_cast %19 : vector<16xf32> to vector<16x1xf32>
      %cst_17 = arith.constant 3.200000e+01 : f32
      %21 = vector.broadcast %cst_17 : f32 to vector<16x1xf32>
      %22 = arith.divf %20, %21 : vector<16x1xf32>
      %23 = vector.broadcast %22 : vector<16x1xf32> to vector<16x32xf32>
      %24 = arith.subf %18, %23 : vector<16x32xf32>
      %25 = arith.mulf %24, %24 : vector<16x32xf32>
      %cst_18 = arith.constant dense<0.000000e+00> : vector<16xf32>
      %26 = vector.multi_reduction <add>, %25, %cst_18 [1] : vector<16x32xf32> to vector<16xf32>
      %27 = vector.shape_cast %26 : vector<16xf32> to vector<16x1xf32>
      %cst_19 = arith.constant 3.200000e+01 : f32
      %28 = vector.broadcast %cst_19 : f32 to vector<16x1xf32>
      %29 = arith.divf %27, %28 : vector<16x1xf32>
      %30 = vector.broadcast %22 : vector<16x1xf32> to vector<16x32xf32>
      %31 = arith.subf %18, %30 : vector<16x32xf32>
      %cst_20 = arith.constant 9.99999974E-6 : f32
      %32 = vector.broadcast %cst_20 : f32 to vector<16x1xf32>
      %33 = arith.addf %29, %32 : vector<16x1xf32>
      %34 = math.rsqrt %33 : vector<16x1xf32>
      %35 = vector.broadcast %34 : vector<16x1xf32> to vector<16x32xf32>
      %36 = arith.mulf %31, %35 : vector<16x32xf32>
      %c0_21 = arith.constant 0 : index
      %c0_22 = arith.constant 0 : index
      %37 = vector.load %arg6[%c0_21, %c0_22] : memref<1x32xf32, #tpu.memory_space<vmem>>, vector<1x32xf32>
      %38 = vector.broadcast %37 : vector<1x32xf32> to vector<16x32xf32>
      %39 = arith.mulf %36, %38 : vector<16x32xf32>
      %c0_23 = arith.constant 0 : index
      %c0_24 = arith.constant 0 : index
      %40 = vector.load %arg7[%c0_23, %c0_24] : memref<1x32xf32, #tpu.memory_space<vmem>>, vector<1x32xf32>
      %41 = vector.broadcast %40 : vector<1x32xf32> to vector<16x32xf32>
      %42 = arith.addf %39, %41 : vector<16x32xf32>
      %43 = arith.truncf %42 : vector<16x32xf32> to vector<16x32xbf16>
      %c0_25 = arith.constant 0 : index
      %c0_26 = arith.constant 0 : index
      %44 = vector.load %arg8[%c0_25, %c0_26] : memref<16x32xbf16, #tpu.memory_space<vmem>>, vector<16x32xbf16>
      tpu.vector_store %arg8[%c0_25, %c0_26], %43 {strides = array<i32>} : memref<16x32xbf16, #tpu.memory_space<vmem>>, vector<16x32xbf16>,
    } else {
    }
    return
  }
  func.func @transform_0(%arg0: i32, %arg1: i32) -> (i32, i32) {
    %c0_i32 = arith.constant 0 : i32
    return %arg0, %arg1 : i32, i32
  }
  func.func @transform_1(%arg0: i32, %arg1: i32) -> (i32, i32) {
    %c0_i32 = arith.constant 0 : i32
    %c0_i32_0 = arith.constant 0 : i32
    return %arg1, %c0_i32 : i32, i32
  }
  func.func @transform_2(%arg0: i32, %arg1: i32) -> (i32, i32) {
    %c0_i32 = arith.constant 0 : i32
    %c0_i32_0 = arith.constant 0 : i32
    %c0_i32_1 = arith.constant 0 : i32
    return %c0_i32, %c0_i32_0 : i32, i32
  }
  func.func @transform_3(%arg0: i32, %arg1: i32) -> (i32, i32) {
    %c0_i32 = arith.constant 0 : i32
    %c0_i32_0 = arith.constant 0 : i32
    return %arg0, %c0_i32 : i32, i32
  }
  func.func @transform_4(%arg0: i32, %arg1: i32) -> (i32, i32) {
    %c0_i32 = arith.constant 0 : i32
    %c0_i32_0 = arith.constant 0 : i32
    %c0_i32_1 = arith.constant 0 : i32
    return %c0_i32, %c0_i32_0 : i32, i32
  }
  func.func @transform_5(%arg0: i32, %arg1: i32) -> (i32, i32) {
    %c0_i32 = arith.constant 0 : i32
    %c0_i32_0 = arith.constant 0 : i32
    %c0_i32_1 = arith.constant 0 : i32
    return %c0_i32, %c0_i32_0 : i32, i32
  }
  func.func @transform_6(%arg0: i32, %arg1: i32) -> (i32, i32) {
    %c0_i32 = arith.constant 0 : i32
    %c0_i32_0 = arith.constant 0 : i32
    return %arg0, %c0_i32 : i32, i32
  }
}

module attributes {stable_mosaic.version = 11 : i64} {
  func.func @_ln_kernel(%arg0: i32, %arg1: memref<16x32xbf16, #tpu.memory_space<vmem>>, %arg2: memref<1x32xf32, #tpu.memory_space<vmem>>, %arg3: memref<1x32xf32, #tpu.memory_space<vmem>>, %arg4: memref<16x32xbf16, #tpu.memory_space<vmem>>) attributes {dimension_semantics = [#tpu.dimension_semantics<parallel>], iteration_bounds = array<i64: 1>, scalar_prefetch = 0 : i64, scratch_operands = 0 : i64, tpu.core_type = #tpu.core_type<tc>, window_params = [{transform_indices = @transform_0, window_bounds = array<i64: 16, 32>}, {pipeline_mode = #tpu.pipeline_mode<synchronous>, transform_indices = @transform_1, window_bounds = array<i64: 1, 32>}, {pipeline_mode = #tpu.pipeline_mode<synchronous>, transform_indices = @transform_2, window_bounds = array<i64: 1, 32>}, {transform_indices = @transform_3, window_bounds = array<i64: 16, 32>}]} {
    %c0 = arith.constant 0 : index
    %c0_0 = arith.constant 0 : index
    %0 = vector.load %arg1[%c0, %c0_0] : memref<16x32xbf16, #tpu.memory_space<vmem>>, vector<16x32xbf16>
    %1 = arith.extf %0 : vector<16x32xbf16> to vector<16x32xf32>
    %cst = arith.constant dense<0.000000e+00> : vector<16xf32>
    %2 = vector.multi_reduction <add>, %1, %cst [1] : vector<16x32xf32> to vector<16xf32>
    %3 = vector.shape_cast %2 : vector<16xf32> to vector<16x1xf32>
    %cst_1 = arith.constant 3.200000e+01 : f32
    %4 = vector.broadcast %cst_1 : f32 to vector<16x1xf32>
    %5 = arith.divf %3, %4 : vector<16x1xf32>
    %6 = vector.broadcast %5 : vector<16x1xf32> to vector<16x32xf32>
    %7 = arith.subf %1, %6 : vector<16x32xf32>
    %8 = arith.mulf %7, %7 : vector<16x32xf32>
    %cst_2 = arith.constant dense<0.000000e+00> : vector<16xf32>
    %9 = vector.multi_reduction <add>, %8, %cst_2 [1] : vector<16x32xf32> to vector<16xf32>
    %10 = vector.shape_cast %9 : vector<16xf32> to vector<16x1xf32>
    %cst_3 = arith.constant 3.200000e+01 : f32
    %11 = vector.broadcast %cst_3 : f32 to vector<16x1xf32>
    %12 = arith.divf %10, %11 : vector<16x1xf32>
    %13 = vector.broadcast %5 : vector<16x1xf32> to vector<16x32xf32>
    %14 = arith.subf %1, %13 : vector<16x32xf32>
    %cst_4 = arith.constant 9.99999974E-6 : f32
    %15 = vector.broadcast %cst_4 : f32 to vector<16x1xf32>
    %16 = arith.addf %12, %15 : vector<16x1xf32>
    %17 = math.rsqrt %16 : vector<16x1xf32>
    %18 = vector.broadcast %17 : vector<16x1xf32> to vector<16x32xf32>
    %19 = arith.mulf %14, %18 : vector<16x32xf32>
    %c0_5 = arith.constant 0 : index
    %c0_6 = arith.constant 0 : index
    %20 = vector.load %arg2[%c0_5, %c0_6] : memref<1x32xf32, #tpu.memory_space<vmem>>, vector<1x32xf32>
    %21 = vector.broadcast %20 : vector<1x32xf32> to vector<16x32xf32>
    %22 = arith.mulf %19, %21 : vector<16x32xf32>
    %c0_7 = arith.constant 0 : index
    %c0_8 = arith.constant 0 : index
    %23 = vector.load %arg3[%c0_7, %c0_8] : memref<1x32xf32, #tpu.memory_space<vmem>>, vector<1x32xf32>
    %24 = vector.broadcast %23 : vector<1x32xf32> to vector<16x32xf32>
    %25 = arith.addf %22, %24 : vector<16x32xf32>
    %26 = arith.truncf %25 : vector<16x32xf32> to vector<16x32xbf16>
    %c0_9 = arith.constant 0 : index
    %c0_10 = arith.constant 0 : index
    %27 = vector.load %arg4[%c0_9, %c0_10] : memref<16x32xbf16, #tpu.memory_space<vmem>>, vector<16x32xbf16>
    tpu.vector_store %arg4[%c0_9, %c0_10], %26 {strides = array<i32>} : memref<16x32xbf16, #tpu.memory_space<vmem>>, vector<16x32xbf16>,
    return
  }
  func.func @transform_0(%arg0: i32) -> (i32, i32) {
    %c0_i32 = arith.constant 0 : i32
    %c0_i32_0 = arith.constant 0 : i32
    return %arg0, %c0_i32 : i32, i32
  }
  func.func @transform_1(%arg0: i32) -> (i32, i32) {
    %c0_i32 = arith.constant 0 : i32
    %c0_i32_0 = arith.constant 0 : i32
    %c0_i32_1 = arith.constant 0 : i32
    return %c0_i32, %c0_i32_0 : i32, i32
  }
  func.func @transform_2(%arg0: i32) -> (i32, i32) {
    %c0_i32 = arith.constant 0 : i32
    %c0_i32_0 = arith.constant 0 : i32
    %c0_i32_1 = arith.constant 0 : i32
    return %c0_i32, %c0_i32_0 : i32, i32
  }
  func.func @transform_3(%arg0: i32) -> (i32, i32) {
    %c0_i32 = arith.constant 0 : i32
    %c0_i32_0 = arith.constant 0 : i32
    return %arg0, %c0_i32 : i32, i32
  }
}

module attributes {stable_mosaic.version = 11 : i64} {
  func.func @_linear_kernel(%arg0: i32, %arg1: i32, %arg2: i32, %arg3: memref<16x32xbf16, #tpu.memory_space<vmem>>, %arg4: memref<32x64xbf16, #tpu.memory_space<vmem>>, %arg5: memref<1x64xf32, #tpu.memory_space<vmem>>, %arg6: memref<16x64xbf16, #tpu.memory_space<vmem>>, %arg7: memref<16x64xf32, #tpu.memory_space<vmem>>) attributes {dimension_semantics = [#tpu.dimension_semantics<parallel>, #tpu.dimension_semantics<parallel>, #tpu.dimension_semantics<arbitrary>], iteration_bounds = array<i64: 1, 1, 1>, scalar_prefetch = 0 : i64, scratch_operands = 1 : i64, tpu.core_type = #tpu.core_type<tc>, window_params = [{transform_indices = @transform_0, window_bounds = array<i64: 16, 32>}, {transform_indices = @transform_1, window_bounds = array<i64: 32, 64>}, {transform_indices = @transform_2, window_bounds = array<i64: 1, 64>}, {transform_indices = @transform_3, window_bounds = array<i64: 16, 64>}]} {
    %c0_i32 = arith.constant 0 : i32
    %0 = arith.cmpi eq, %arg2, %c0_i32 : i32
    %1 = arith.extui %0 : i1 to i32
    %c0_i32_0 = arith.constant 0 : i32
    %2 = arith.cmpi ne, %1, %c0_i32_0 : i32
    scf.if %2 {
      %cst_10 = arith.constant 0.000000e+00 : f32
      %12 = vector.broadcast %cst_10 : f32 to vector<16x64xf32>
      %c0_11 = arith.constant 0 : index
      %c0_12 = arith.constant 0 : index
      %13 = vector.load %arg7[%c0_11, %c0_12] : memref<16x64xf32, #tpu.memory_space<vmem>>, vector<16x64xf32>
      tpu.vector_store %arg7[%c0_11, %c0_12], %12 {strides = array<i32>} : memref<16x64xf32, #tpu.memory_space<vmem>>, vector<16x64xf32>,
    } else {
    }
    %c0 = arith.constant 0 : index
    %c0_1 = arith.constant 0 : index
    %3 = vector.load %arg7[%c0, %c0_1] : memref<16x64xf32, #tpu.memory_space<vmem>>, vector<16x64xf32>
    %c0_2 = arith.constant 0 : index
    %c0_3 = arith.constant 0 : index
    %4 = vector.load %arg3[%c0_2, %c0_3] : memref<16x32xbf16, #tpu.memory_space<vmem>>, vector<16x32xbf16>
    %c0_4 = arith.constant 0 : index
    %c0_5 = arith.constant 0 : index
    %5 = vector.load %arg4[%c0_4, %c0_5] : memref<32x64xbf16, #tpu.memory_space<vmem>>, vector<32x64xbf16>
    %cst = arith.constant dense<0.000000e+00> : vector<16x64xf32>
    %6 = tpu.matmul %4, %5, %cst {dimension_numbers = #tpu.dot_dimension_numbers<[1], [0], [0], [1], [0, 0, 1, 1], [], []>} : vector<16x32xbf16>, vector<32x64xbf16>, vector<16x64xf32> -> vector<16x64xf32>
    %7 = arith.addf %3, %6 : vector<16x64xf32>
    %c0_6 = arith.constant 0 : index
    %c0_7 = arith.constant 0 : index
    %8 = vector.load %arg7[%c0_6, %c0_7] : memref<16x64xf32, #tpu.memory_space<vmem>>, vector<16x64xf32>
    tpu.vector_store %arg7[%c0_6, %c0_7], %7 {strides = array<i32>} : memref<16x64xf32, #tpu.memory_space<vmem>>, vector<16x64xf32>,
    %c0_i32_8 = arith.constant 0 : i32
    %9 = arith.cmpi eq, %arg2, %c0_i32_8 : i32
    %10 = arith.extui %9 : i1 to i32
    %c0_i32_9 = arith.constant 0 : i32
    %11 = arith.cmpi ne, %10, %c0_i32_9 : i32
    scf.if %11 {
      %c0_10 = arith.constant 0 : index
      %c0_11 = arith.constant 0 : index
      %12 = vector.load %arg7[%c0_10, %c0_11] : memref<16x64xf32, #tpu.memory_space<vmem>>, vector<16x64xf32>
      %c0_12 = arith.constant 0 : index
      %c0_13 = arith.constant 0 : index
      %13 = vector.load %arg5[%c0_12, %c0_13] : memref<1x64xf32, #tpu.memory_space<vmem>>, vector<1x64xf32>
      %14 = vector.broadcast %13 : vector<1x64xf32> to vector<16x64xf32>
      %15 = arith.addf %12, %14 : vector<16x64xf32>
      %16 = arith.truncf %15 : vector<16x64xf32> to vector<16x64xbf16>
      %c0_14 = arith.constant 0 : index
      %c0_15 = arith.constant 0 : index
      %17 = vector.load %arg6[%c0_14, %c0_15] : memref<16x64xbf16, #tpu.memory_space<vmem>>, vector<16x64xbf16>
      tpu.vector_store %arg6[%c0_14, %c0_15], %16 {strides = array<i32>} : memref<16x64xbf16, #tpu.memory_space<vmem>>, vector<16x64xbf16>,
    } else {
    }
    return
  }
  func.func @transform_0(%arg0: i32, %arg1: i32, %arg2: i32) -> (i32, i32) {
    %c0_i32 = arith.constant 0 : i32
    return %arg0, %arg2 : i32, i32
  }
  func.func @transform_1(%arg0: i32, %arg1: i32, %arg2: i32) -> (i32, i32) {
    %c0_i32 = arith.constant 0 : i32
    return %arg2, %arg1 : i32, i32
  }
  func.func @transform_2(%arg0: i32, %arg1: i32, %arg2: i32) -> (i32, i32) {
    %c0_i32 = arith.constant 0 : i32
    %c0_i32_0 = arith.constant 0 : i32
    return %c0_i32, %arg1 : i32, i32
  }
  func.func @transform_3(%arg0: i32, %arg1: i32, %arg2: i32) -> (i32, i32) {
    %c0_i32 = arith.constant 0 : i32
    return %arg0, %arg1 : i32, i32
  }
}

module attributes {stable_mosaic.version = 11 : i64} {
  func.func @_linear_kernel(%arg0: i32, %arg1: i32, %arg2: i32, %arg3: memref<16x32xbf16, #tpu.memory_space<vmem>>, %arg4: memref<32x64xbf16, #tpu.memory_space<vmem>>, %arg5: memref<1x64xf32, #tpu.memory_space<vmem>>, %arg6: memref<16x64xf32, #tpu.memory_space<vmem>>, %arg7: memref<16x64xf32, #tpu.memory_space<vmem>>) attributes {dimension_semantics = [#tpu.dimension_semantics<parallel>, #tpu.dimension_semantics<parallel>, #tpu.dimension_semantics<arbitrary>], iteration_bounds = array<i64: 1, 1, 1>, scalar_prefetch = 0 : i64, scratch_operands = 1 : i64, tpu.core_type = #tpu.core_type<tc>, window_params = [{transform_indices = @transform_0, window_bounds = array<i64: 16, 32>}, {transform_indices = @transform_1, window_bounds = array<i64: 32, 64>}, {transform_indices = @transform_2, window_bounds = array<i64: 1, 64>}, {transform_indices = @transform_3, window_bounds = array<i64: 16, 64>}]} {
    %c0_i32 = arith.constant 0 : i32
    %0 = arith.cmpi eq, %arg2, %c0_i32 : i32
    %1 = arith.extui %0 : i1 to i32
    %c0_i32_0 = arith.constant 0 : i32
    %2 = arith.cmpi ne, %1, %c0_i32_0 : i32
    scf.if %2 {
      %cst_10 = arith.constant 0.000000e+00 : f32
      %12 = vector.broadcast %cst_10 : f32 to vector<16x64xf32>
      %c0_11 = arith.constant 0 : index
      %c0_12 = arith.constant 0 : index
      %13 = vector.load %arg7[%c0_11, %c0_12] : memref<16x64xf32, #tpu.memory_space<vmem>>, vector<16x64xf32>
      tpu.vector_store %arg7[%c0_11, %c0_12], %12 {strides = array<i32>} : memref<16x64xf32, #tpu.memory_space<vmem>>, vector<16x64xf32>,
    } else {
    }
    %c0 = arith.constant 0 : index
    %c0_1 = arith.constant 0 : index
    %3 = vector.load %arg7[%c0, %c0_1] : memref<16x64xf32, #tpu.memory_space<vmem>>, vector<16x64xf32>
    %c0_2 = arith.constant 0 : index
    %c0_3 = arith.constant 0 : index
    %4 = vector.load %arg3[%c0_2, %c0_3] : memref<16x32xbf16, #tpu.memory_space<vmem>>, vector<16x32xbf16>
    %c0_4 = arith.constant 0 : index
    %c0_5 = arith.constant 0 : index
    %5 = vector.load %arg4[%c0_4, %c0_5] : memref<32x64xbf16, #tpu.memory_space<vmem>>, vector<32x64xbf16>
    %cst = arith.constant dense<0.000000e+00> : vector<16x64xf32>
    %6 = tpu.matmul %4, %5, %cst {dimension_numbers = #tpu.dot_dimension_numbers<[1], [0], [0], [1], [0, 0, 1, 1], [], []>} : vector<16x32xbf16>, vector<32x64xbf16>, vector<16x64xf32> -> vector<16x64xf32>
    %7 = arith.addf %3, %6 : vector<16x64xf32>
    %c0_6 = arith.constant 0 : index
    %c0_7 = arith.constant 0 : index
    %8 = vector.load %arg7[%c0_6, %c0_7] : memref<16x64xf32, #tpu.memory_space<vmem>>, vector<16x64xf32>
    tpu.vector_store %arg7[%c0_6, %c0_7], %7 {strides = array<i32>} : memref<16x64xf32, #tpu.memory_space<vmem>>, vector<16x64xf32>,
    %c0_i32_8 = arith.constant 0 : i32
    %9 = arith.cmpi eq, %arg2, %c0_i32_8 : i32
    %10 = arith.extui %9 : i1 to i32
    %c0_i32_9 = arith.constant 0 : i32
    %11 = arith.cmpi ne, %10, %c0_i32_9 : i32
    scf.if %11 {
      %c0_10 = arith.constant 0 : index
      %c0_11 = arith.constant 0 : index
      %12 = vector.load %arg7[%c0_10, %c0_11] : memref<16x64xf32, #tpu.memory_space<vmem>>, vector<16x64xf32>
      %c0_12 = arith.constant 0 : index
      %c0_13 = arith.constant 0 : index
      %13 = vector.load %arg5[%c0_12, %c0_13] : memref<1x64xf32, #tpu.memory_space<vmem>>, vector<1x64xf32>
      %14 = vector.broadcast %13 : vector<1x64xf32> to vector<16x64xf32>
      %15 = arith.addf %12, %14 : vector<16x64xf32>
      %c0_14 = arith.constant 0 : index
      %c0_15 = arith.constant 0 : index
      %16 = vector.load %arg6[%c0_14, %c0_15] : memref<16x64xf32, #tpu.memory_space<vmem>>, vector<16x64xf32>
      tpu.vector_store %arg6[%c0_14, %c0_15], %15 {strides = array<i32>} : memref<16x64xf32, #tpu.memory_space<vmem>>, vector<16x64xf32>,
    } else {
    }
    return
  }
  func.func @transform_0(%arg0: i32, %arg1: i32, %arg2: i32) -> (i32, i32) {
    %c0_i32 = arith.constant 0 : i32
    return %arg0, %arg2 : i32, i32
  }
  func.func @transform_1(%arg0: i32, %arg1: i32, %arg2: i32) -> (i32, i32) {
    %c0_i32 = arith.constant 0 : i32
    return %arg2, %arg1 : i32, i32
  }
  func.func @transform_2(%arg0: i32, %arg1: i32, %arg2: i32) -> (i32, i32) {
    %c0_i32 = arith.constant 0 : i32
    %c0_i32_0 = arith.constant 0 : i32
    return %c0_i32, %arg1 : i32, i32
  }
  func.func @transform_3(%arg0: i32, %arg1: i32, %arg2: i32) -> (i32, i32) {
    %c0_i32 = arith.constant 0 : i32
    return %arg0, %arg1 : i32, i32
  }
}

</mosaic_0001>

<llo_original>
// kernel: transformer_forward.42
$region0: #{transformer_forward.42}
  #allocation0 [shape = 'u32[]', space=smem, size = 0x4, offset = 0x4, fixed_abs, tag = 'smem constant byte address 0x4 - core index']
  #allocation1 [shape = 'u32[144,128]{1,0:T(1,128)}', space=vmem, size = 0x12000, scoped, tag = 'internal scratch']
  #allocation2 [shape = 'f32[16,96]{1,0:T(8,128)}', space=vmem, size = 0x2000, scoped, tag = 'scratch operand']
  %s0 = inlined_call_operand.vmem [shape: bf16[16,32], index: 0, kind: input, shape index: {}]
  %s1 = inlined_call_operand.vmem [shape: bf16[32,96], index: 1, kind: input, shape index: {}]
  %s2 = inlined_call_operand.vmem [shape: f32[1,96], index: 2, kind: input, shape index: {}]
  %s3 = inlined_call_operand.vmem [shape: bf16[16,96], index: 3, kind: output, shape index: {}]
  %s4 = sld [smem:[#allocation0]]
  $region30: #{transformer_forward.42} parent=0
    _
  %s6 = ssub.s32 1, %s4
  %s7 = scalar_select 0, %s6, %s4
  // Predicated region
  $region2: #{transformer_forward.42} parent=0 // pred_check
    _
  $region3: #{transformer_forward.42} parent=0 // pred_check_branch
    %9 = sbr.rel (0) target = $region5
  $region4: #{transformer_forward.42} parent=0 // pred_region
    _
  $region5: #{transformer_forward.42} parent=0 // pred_fallthru
    _
  // Predicated region
  $region6: #{transformer_forward.42} parent=0 // pred_check
    _
  $region7: #{transformer_forward.42} parent=0 // pred_check_branch
    %11 = sbr.rel (0) target = $region9
  $region8: #{transformer_forward.42} parent=0 // pred_region
    _
  $region9: #{transformer_forward.42} parent=0 // pred_fallthru
    _
  // Predicated region
  $region10: #{transformer_forward.42} parent=0 // pred_check
    _
  $region11: #{transformer_forward.42} parent=0 // pred_check_branch
    %13 = sbr.rel (0) target = $region13
  $region12: #{transformer_forward.42} parent=0 // pred_region
    _
  $region13: #{transformer_forward.42} parent=0 // pred_fallthru
    _
  %p15 = scmp.eq.s32.totalorder 0, 0
  // Predicated region
  $region14: #{transformer_forward.42} parent=0 // pred_check
    %p16 = pneg %p15
  $region15: #{transformer_forward.42} parent=0 // pred_check_branch
    %18 = sbr.rel (%p16) target = $region17
  $region16: #{transformer_forward.42} parent=0 // pred_region
    %vm19 = vcmask 785408
    %20 = vst.msk [vmem:[#allocation2] sm:$0xff] %vm19, 0.0
    %21 = vst.msk [vmem:[#allocation2 + $0x8] sm:$0xff] %vm19, 0.0
  $region17: #{transformer_forward.42} parent=0 // pred_fallthru
    _
  %v22 = vld [vmem:[#allocation2] sm:$0xff]
  %v23 = vld [vmem:[#allocation2 + $0x8] sm:$0xff]
  %v24 = vld [vmem:[%s0] sm:$0xf]
  %v25 = vld [vmem:[%s0 + $0x4] sm:$0xf]
  %v26 = vld [vmem:[%s1] sm:$0xf]
  %v27 = vld [vmem:[%s1 + $0x4] sm:$0xf]
  %v28 = vld [vmem:[%s1 + $0x8] sm:$0xf]
  %v29 = vld [vmem:[%s1 + $0xc] sm:$0xf]
  %v32 = vunpack.c.l.b16 %v24
  %v33 = vunpack.c.l.b16 %v25
  %v34 = vpack.c.b16 %v33, %v32
  %v39 = vunpack.c.l.b16 %v26
  %v40 = vunpack.c.l.b16 %v27
  %v41 = vunpack.c.l.b16 %v28
  %v42 = vunpack.c.l.b16 %v29
  %v43 = vpack.c.b16 %v40, %v39
  %v44 = vpack.c.b16 %v42, %v41
  %vm47 = vcmask 261120
  %v49 = vsel %vm47, %v34, 0
  %51 = vmatprep.subr.bf16.mxu0 0
  %52 = vmatpush1.bf16.msra.mxu0 0
  %53 = vmatprep.subr.bf16.mxu0 0
  %54 = vmatpush1.bf16.msra.mxu0 0
  %55 = vmatprep.subr.bf16.mxu0 0
  %56 = vmatpush1.bf16.msra.mxu0 0
  %57 = vmatprep.subr.bf16.mxu0 0
  %58 = vmatpush1.bf16.msra.mxu0 0
  %59 = vmatprep.subr.bf16.mxu0 0
  %60 = vmatpush1.bf16.msra.mxu0 0
  %61 = vmatprep.subr.bf16.mxu0 0
  %62 = vmatpush1.bf16.msra.mxu0 0
  %63 = vmatprep.subr.bf16.mxu0 0
  %64 = vmatpush1.bf16.msra.mxu0 %v44
  %65 = vmatprep.subr.bf16.mxu0 0
  %66 = vmatpush1.bf16.msra.mxu0 %v43
  %67 = vmatprep.subr.bf16.mxu0 0
  %68 = vmatpush2.bf16.msra.mxu0 0
  %69 = vmatprep.subr.bf16.mxu0 0
  %70 = vmatpush2.bf16.msra.mxu0 0
  %71 = vmatprep.subr.bf16.mxu0 0
  %72 = vmatpush2.bf16.msra.mxu0 0
  %73 = vmatprep.subr.bf16.mxu0 0
  %74 = vmatpush2.bf16.msra.mxu0 0
  %75 = vmatprep.subr.bf16.mxu0 0
  %76 = vmatpush2.bf16.msra.mxu0 0
  %77 = vmatprep.subr.bf16.mxu0 0
  %78 = vmatpush2.bf16.msra.mxu0 0
  %79 = vmatprep.subr.bf16.mxu0 0
  %80 = vmatpush2.bf16.msra.mxu0 0
  %81 = vmatprep.subr.bf16.mxu0 0
  %82 = vmatpush2.bf16.msra.mxu0 0
  %83 = vmatprep.mubr.bf16.mxu0 0
  %84 = vmatmul.mubr.bf16.gmra.mxu0 %v49
  %v85 = vpop.f32.mrf.mxu0
  %v86 = vadd.f32 0.0, %v85
  %v87 = vpop.f32.mrf.mxu0
  %v88 = vpop.f32.mrf.mxu0
  %v89 = vadd.f32 0.0, %v88
  %v90 = vpop.f32.mrf.mxu0
  %91 = vdwg.mxu0
  %v92 = vadd.f32 %v22, %v86
  %v93 = vadd.f32 %v23, %v89
  %vm94 = vcmask 785408
  %95 = vst.msk [vmem:[#allocation2] sm:$0xff] %vm94, %v92
  %96 = vst.msk [vmem:[#allocation2 + $0x8] sm:$0xff] %vm94, %v93
  // Predicated region
  $region18: #{transformer_forward.42} parent=0 // pred_check
    %p97 = pneg %p15
  $region19: #{transformer_forward.42} parent=0 // pred_check_branch
    %99 = sbr.rel (%p97) target = $region21
  $region20: #{transformer_forward.42} parent=0 // pred_region
    %v100 = vld [vmem:[#allocation2] sm:$0xff]
    %v101 = vld [vmem:[#allocation2 + $0x8] sm:$0xff]
    %v102 = vld [vmem:[%s2] sm:$0x1]
    %v104 = vlaneseq
    %v105 = vshrl.u32 %v104, 7
    %v106 = vsub.s32 0, %v105
    %v107 = vrot.slane %v102, %v106
    %v109 = vadd.f32 %v100, %v107
    %v110 = vadd.f32 %v101, %v107
    %v111 = vpack.c.bf16 %v110, %v109
    %v113 = vunpack.c.l.b16 %v111
    %v114 = vunpack.c.h.b16 %v111
    %v115 = vpack.c.b16 %v113, %v113
    %v116 = vpack.c.b16 %v114, %v114
    %vm119 = vcmask 781312
    %120 = vst.msk [vmem:[%s3] sm:$0xf] %vm119, %v115
    %121 = vst.msk [vmem:[%s3 + $0x4] sm:$0xf] %vm119, %v116
  $region21: #{transformer_forward.42} parent=0 // pred_fallthru
    _
  // Predicated region
  $region22: #{transformer_forward.42} parent=0 // pred_check
    _
  $region23: #{transformer_forward.42} parent=0 // pred_check_branch
    %123 = sbr.rel (0) target = $region25
  $region24: #{transformer_forward.42} parent=0 // pred_region
    _
  $region25: #{transformer_forward.42} parent=0 // pred_fallthru
    _
  // Predicated region
  $region26: #{transformer_forward.42} parent=0 // pred_check
    _
  $region27: #{transformer_forward.42} parent=0 // pred_check_branch
    %125 = sbr.rel (0) target = $region29
  $region28: #{transformer_forward.42} parent=0 // pred_region
    _
  $region29: #{transformer_forward.42} parent=0 // pred_fallthru
    _

// kernel: transformer_forward.43
$region0: #{transformer_forward.43}
  #allocation0 [shape = 'u32[]', space=smem, size = 0x4, offset = 0x4, fixed_abs, tag = 'smem constant byte address 0x4 - core index']
  #allocation1 [shape = 'u32[144,128]{1,0:T(1,128)}', space=vmem, size = 0x12000, scoped, tag = 'internal scratch']
  #allocation2 [shape = 'f32[8,1]{1,0:T(8,128)}', space=vmem, size = 0x1000, scoped, tag = 'scratch operand']
  #allocation3 [shape = 'f32[8,1]{1,0:T(8,128)}', space=vmem, size = 0x1000, scoped, tag = 'scratch operand']
  #allocation4 [shape = 'f32[8,8]{1,0:T(8,128)}', space=vmem, size = 0x1000, scoped, tag = 'scratch operand']
  %s0 = inlined_call_operand.vmem [shape: bf16[8,8,8], index: 0, kind: input, shape index: {}]
  %s1 = inlined_call_operand.vmem [shape: bf16[8,8,8], index: 1, kind: input, shape index: {}]
  %s2 = inlined_call_operand.vmem [shape: bf16[8,8,8], index: 2, kind: input, shape index: {}]
  %s3 = inlined_call_operand.vmem [shape: bf16[8,8,8], index: 3, kind: output, shape index: {}]
  %s4 = sld [smem:[#allocation0]]
  $region57: #{transformer_forward.43} parent=0
    _
  %s6 = ssub.s32 1, %s4
  %s7 = scalar_select 0, %s6, %s4
  loop: start=0, step=1, limit=10
  $region2: #{transformer_forward.43} parent=0 // loop_pre_header
    _
  $region3: #{transformer_forward.43} parent=0 // loop_header
    %s9 = sphi 0, %s13
    %p10 = scmp.ge.s32.totalorder %s9, 10
    %s16 = sphi 0, %s35
    %s17 = sphi 0, %s31
    %s18 = sphi 0, %s27
    %s19 = sphi 0, %s16
    %s20 = sphi 0, %s17
    %s21 = sphi 0, %s18
    %s22 = sphi 0, %s19
    %s23 = sphi 0, %s20
    %s24 = sphi 0, %s21
    %s40 = sphi 0, %s42
    %s43 = sphi 0, %s40
    %s44 = sphi 0, %s43
    %s60 = sphi 0, %s44
    %s68 = sphi 0, %s70
    %s71 = sphi 0, %s68
    %s72 = sphi 0, %s71
    %s88 = sphi 0, %s72
    %s96 = sphi 0, %s98
    %s99 = sphi 0, %s96
    %s100 = sphi 0, %s99
    %s116 = sphi 0, %s100
    %s124 = sphi 0, %s126
    %s127 = sphi 0, %s124
    %s128 = sphi 0, %s127
    %s144 = sphi 0, %s128
  $region4: #{transformer_forward.43} parent=0 // loop_header_branch
    %12 = sbr.rel (%p10) target = $region8
  $region5: #{transformer_forward.43} parent=0 // loop_body
    %s14 = ssub.s32 %s9, 1
    %s15 = ssub.s32 %s9, 2
    %s25 = sadd.s32 1, %s18
    %p26 = scmp.ge.s32.totalorder %s25, 1
    %s27 = scalar_select %p26, 0, %s25
    %s28 = sadd.s32 1, %s17
    %s29 = scalar_select %p26, %s28, %s17
    %p30 = scmp.ge.s32.totalorder %s29, 1
    %s31 = scalar_select %p30, 0, %s29
    %s32 = sadd.s32 1, %s16
    %s33 = scalar_select %p30, %s32, %s16
    %p34 = scmp.ge.s32.totalorder %s33, 8
    %s35 = scalar_select %p34, 0, %s33
    %s36 = ssub.s32 %s16, %s35
    %s37 = ssub.s32 %s17, %s31
    %s38 = sor.u32 %s36, %s37
    %p39 = scmp.eq.s32.totalorder %s38, 0
    %s41 = sadd.s32 %s40, 1
    %s42 = scalar_select %p39, %s40, %s41
    %p45 = pneg %p39
    %p46 = scmp.eq.s32.totalorder %s9, 7
    %p47 = por %p45, %p46
    %p48 = scmp.ne.s32.totalorder %s40, %s43
    %p49 = scmp.eq.s32.totalorder %s9, 0
    %p50 = por %p48, %p49
    %p51 = scmp.ne.s32.totalorder %s40, %s43
    %p52 = scmp.eq.s32.totalorder %s14, 7
    %p53 = por %p51, %p52
    %p54 = scmp.ne.s32.totalorder %s43, %s44
    %p55 = scmp.eq.s32.totalorder %s14, 0
    %p56 = por %p54, %p55
    %p57 = scmp.ne.s32.totalorder %s43, %s44
    %p58 = scmp.eq.s32.totalorder %s15, 7
    %p59 = por %p57, %p58
    %p61 = scmp.ne.s32.totalorder %s44, %s60
    %p62 = scmp.eq.s32.totalorder %s15, 0
    %p63 = por %p61, %p62
    %s64 = ssub.s32 %s16, %s35
    %s65 = ssub.s32 %s18, %s27
    %s66 = sor.u32 %s64, %s65
    %p67 = scmp.eq.s32.totalorder %s66, 0
    %s69 = sadd.s32 %s68, 1
    %s70 = scalar_select %p67, %s68, %s69
    %p73 = pneg %p67
    %p74 = scmp.eq.s32.totalorder %s9, 7
    %p75 = por %p73, %p74
    %p76 = scmp.ne.s32.totalorder %s68, %s71
    %p77 = scmp.eq.s32.totalorder %s9, 0
    %p78 = por %p76, %p77
    %p79 = scmp.ne.s32.totalorder %s68, %s71
    %p80 = scmp.eq.s32.totalorder %s14, 7
    %p81 = por %p79, %p80
    %p82 = scmp.ne.s32.totalorder %s71, %s72
    %p83 = scmp.eq.s32.totalorder %s14, 0
    %p84 = por %p82, %p83
    %p85 = scmp.ne.s32.totalorder %s71, %s72
    %p86 = scmp.eq.s32.totalorder %s15, 7
    %p87 = por %p85, %p86
    %p89 = scmp.ne.s32.totalorder %s72, %s88
    %p90 = scmp.eq.s32.totalorder %s15, 0
    %p91 = por %p89, %p90
    %s92 = ssub.s32 %s16, %s35
    %s93 = ssub.s32 %s18, %s27
    %s94 = sor.u32 %s92, %s93
    %p95 = scmp.eq.s32.totalorder %s94, 0
    %s97 = sadd.s32 %s96, 1
    %s98 = scalar_select %p95, %s96, %s97
    %p101 = pneg %p95
    %p102 = scmp.eq.s32.totalorder %s9, 7
    %p103 = por %p101, %p102
    %p104 = scmp.ne.s32.totalorder %s96, %s99
    %p105 = scmp.eq.s32.totalorder %s9, 0
    %p106 = por %p104, %p105
    %p107 = scmp.ne.s32.totalorder %s96, %s99
    %p108 = scmp.eq.s32.totalorder %s14, 7
    %p109 = por %p107, %p108
    %p110 = scmp.ne.s32.totalorder %s99, %s100
    %p111 = scmp.eq.s32.totalorder %s14, 0
    %p112 = por %p110, %p111
    %p113 = scmp.ne.s32.totalorder %s99, %s100
    %p114 = scmp.eq.s32.totalorder %s15, 7
    %p115 = por %p113, %p114
    %p117 = scmp.ne.s32.totalorder %s100, %s116
    %p118 = scmp.eq.s32.totalorder %s15, 0
    %p119 = por %p117, %p118
    %s120 = ssub.s32 %s16, %s35
    %s121 = ssub.s32 %s17, %s31
    %s122 = sor.u32 %s120, %s121
    %p123 = scmp.eq.s32.totalorder %s122, 0
    %s125 = sadd.s32 %s124, 1
    %s126 = scalar_select %p123, %s124, %s125
    %p129 = pneg %p123
    %p130 = scmp.eq.s32.totalorder %s9, 7
    %p131 = por %p129, %p130
    %p132 = scmp.ne.s32.totalorder %s124, %s127
    %p133 = scmp.eq.s32.totalorder %s9, 0
    %p134 = por %p132, %p133
    %p135 = scmp.ne.s32.totalorder %s124, %s127
    %p136 = scmp.eq.s32.totalorder %s14, 7
    %p137 = por %p135, %p136
    %p138 = scmp.ne.s32.totalorder %s127, %s128
    %p139 = scmp.eq.s32.totalorder %s14, 0
    %p140 = por %p138, %p139
    %p141 = scmp.ne.s32.totalorder %s127, %s128
    %p142 = scmp.eq.s32.totalorder %s15, 7
    %p143 = por %p141, %p142
    %p145 = scmp.ne.s32.totalorder %s128, %s144
    %p146 = scmp.eq.s32.totalorder %s15, 0
    %p147 = por %p145, %p146
    %p148 = scmp.le.s32.totalorder 1, %s9
    %p149 = scmp.lt.s32.totalorder %s9, 9
    %p150 = pnand %p148, %p149
    %p151 = pneg %p150
    // Predicated region
    $region9: #{transformer_forward.43} parent=5 // pred_check
      _
    $region10: #{transformer_forward.43} parent=5 // pred_check_branch
      %153 = sbr.rel (%p150) target = $region12
    $region11: #{transformer_forward.43} parent=5 // pred_region
      %s154 = ssub.s32 %s9, 1
    $region12: #{transformer_forward.43} parent=5 // pred_fallthru
      _
    %p155 = scmp.lt.s32.totalorder %s9, 8
    // Predicated region
    $region13: #{transformer_forward.43} parent=5 // pred_check
      %p156 = pneg %p155
    $region14: #{transformer_forward.43} parent=5 // pred_check_branch
      %158 = sbr.rel (%p156) target = $region16
    $region15: #{transformer_forward.43} parent=5 // pred_region
      // Predicated region
      $region17: #{transformer_forward.43} parent=15 // pred_check
        %p159 = pneg %p50
      $region18: #{transformer_forward.43} parent=15 // pred_check_branch
        %161 = sbr.rel (%p159) target = $region20
      $region19: #{transformer_forward.43} parent=15 // pred_region
        %p162 = scmp.lt.s32.totalorder %s16, 7
        %s163 = scalar_select %p162, %s16, 7
        %p164 = scmp.lt.s32.totalorder %s17, 0
        %s165 = scalar_select %p164, %s17, 0
        %s166 = sadd.s32 %s165, %s163
        %s167 = smul.addr %s166, 4
        %s168 = scalar_lea.vmem %s0, %s167
      $region20: #{transformer_forward.43} parent=15 // pred_fallthru
        _
      // Predicated region
      $region21: #{transformer_forward.43} parent=15 // pred_check
        %p169 = pneg %p78
      $region22: #{transformer_forward.43} parent=15 // pred_check_branch
        %171 = sbr.rel (%p169) target = $region24
      $region23: #{transformer_forward.43} parent=15 // pred_region
        %p172 = scmp.lt.s32.totalorder %s16, 7
        %s173 = scalar_select %p172, %s16, 7
        %p174 = scmp.lt.s32.totalorder %s18, 0
        %s175 = scalar_select %p174, %s18, 0
        %s176 = sadd.s32 %s175, %s173
        %s177 = smul.addr %s176, 4
        %s178 = scalar_lea.vmem %s1, %s177
      $region24: #{transformer_forward.43} parent=15 // pred_fallthru
        _
      // Predicated region
      $region25: #{transformer_forward.43} parent=15 // pred_check
        %p179 = pneg %p106
      $region26: #{transformer_forward.43} parent=15 // pred_check_branch
        %181 = sbr.rel (%p179) target = $region28
      $region27: #{transformer_forward.43} parent=15 // pred_region
        %p182 = scmp.lt.s32.totalorder %s16, 7
        %s183 = scalar_select %p182, %s16, 7
        %p184 = scmp.lt.s32.totalorder %s18, 0
        %s185 = scalar_select %p184, %s18, 0
        %s186 = sadd.s32 %s185, %s183
        %s187 = smul.addr %s186, 4
        %s188 = scalar_lea.vmem %s2, %s187
      $region28: #{transformer_forward.43} parent=15 // pred_fallthru
        _
    $region16: #{transformer_forward.43} parent=5 // pred_fallthru
      _
    %p189 = scmp.le.s32.totalorder 1, %s9
    %p190 = scmp.lt.s32.totalorder %s9, 9
    %p191 = pnand %p189, %p190
    %p192 = pneg %p191
    // Predicated region
    $region29: #{transformer_forward.43} parent=5 // pred_check
      _
    $region30: #{transformer_forward.43} parent=5 // pred_check_branch
      %194 = sbr.rel (%p191) target = $region32
    $region31: #{transformer_forward.43} parent=5 // pred_region
      %s195 = ssub.s32 %s9, 1
      %p196 = scmp.lt.s32.totalorder %s19, 7
      %s197 = scalar_select %p196, %s19, 7
      %p198 = scmp.lt.s32.totalorder %s20, 0
      %s199 = scalar_select %p198, %s20, 0
      %s200 = sadd.s32 %s199, %s197
      %s201 = smul.addr %s200, 4
      %s202 = scalar_lea.vmem %s0, %s201
      %p203 = pneg %p56
      %p204 = pneg %p53
      %p205 = scmp.lt.s32.totalorder %s19, 7
      %s206 = scalar_select %p205, %s19, 7
      %p207 = scmp.lt.s32.totalorder %s21, 0
      %s208 = scalar_select %p207, %s21, 0
      %s209 = sadd.s32 %s208, %s206
      %s210 = smul.addr %s209, 4
      %s211 = scalar_lea.vmem %s1, %s210
      %p212 = pneg %p84
      %p213 = pneg %p81
      %p214 = scmp.lt.s32.totalorder %s19, 7
      %s215 = scalar_select %p214, %s19, 7
      %p216 = scmp.lt.s32.totalorder %s21, 0
      %s217 = scalar_select %p216, %s21, 0
      %s218 = sadd.s32 %s217, %s215
      %s219 = smul.addr %s218, 4
      %s220 = scalar_lea.vmem %s2, %s219
      %p221 = pneg %p112
      %p222 = pneg %p109
      %p223 = pneg %p140
      %p224 = pneg %p137
      %p225 = scmp.lt.s32.totalorder %s19, 7
      %s226 = scalar_select %p225, %s19, 7
      %p227 = scmp.lt.s32.totalorder %s20, 0
      %s228 = scalar_select %p227, %s20, 0
      %s229 = sadd.s32 %s228, %s226
      %s230 = smul.addr %s229, 4
      %s231 = scalar_lea.vmem %s3, %s230
      %p232 = scmp.lt.s32.totalorder %s19, 7
      %s233 = scalar_select %p232, %s19, 7
      %p234 = scmp.lt.s32.totalorder %s20, 0
      %s235 = scalar_select %p234, %s20, 0
      %s236 = sadd.s32 %s235, %s233
      %s237 = smul.addr %s236, 4
      %s238 = scalar_lea.vmem %s0, %s237
      %p239 = scmp.lt.s32.totalorder %s19, 7
      %s240 = scalar_select %p239, %s19, 7
      %p241 = scmp.lt.s32.totalorder %s21, 0
      %s242 = scalar_select %p241, %s21, 0
      %s243 = sadd.s32 %s242, %s240
      %s244 = smul.addr %s243, 4
      %s245 = scalar_lea.vmem %s1, %s244
      %p246 = scmp.lt.s32.totalorder %s19, 7
      %s247 = scalar_select %p246, %s19, 7
      %p248 = scmp.lt.s32.totalorder %s21, 0
      %s249 = scalar_select %p248, %s21, 0
      %s250 = sadd.s32 %s249, %s247
      %s251 = smul.addr %s250, 4
      %s252 = scalar_lea.vmem %s2, %s251
      %p253 = scmp.lt.s32.totalorder %s19, 7
      %s254 = scalar_select %p253, %s19, 7
      %p255 = scmp.lt.s32.totalorder %s20, 0
      %s256 = scalar_select %p255, %s20, 0
      %s257 = sadd.s32 %s256, %s254
      %s258 = smul.addr %s257, 4
      %s259 = scalar_lea.vmem %s3, %s258
      %p261 = scmp.eq.s32.totalorder %s21, 0
      // Predicated region
      $region33: #{transformer_forward.43} parent=31 // pred_check
        %p262 = pneg %p261
      $region34: #{transformer_forward.43} parent=31 // pred_check_branch
        %264 = sbr.rel (%p262) target = $region36
      $region35: #{transformer_forward.43} parent=31 // pred_region
        %vm265 = vcmask 7168
        %266 = vst.msk [vmem:[#allocation2] sm:$0xff] %vm265, -1e+30
        %267 = vst.msk [vmem:[#allocation3] sm:$0xff] %vm265, 0.0
        %vm268 = vcmask 64512
        %269 = vst.msk [vmem:[#allocation4] sm:$0xff] %vm268, 0.0
      $region36: #{transformer_forward.43} parent=31 // pred_fallthru
        _
      %s270 = smul.u32 %s21, 8
      %s271 = smul.u32 %s20, 8
      %s272 = sadd.s32 %s271, 8
      %p273 = scmp.lt.s32.totalorder %s270, %s272
      // Predicated region
      $region37: #{transformer_forward.43} parent=31 // pred_check
        %p274 = pneg %p273
      $region38: #{transformer_forward.43} parent=31 // pred_check_branch
        %276 = sbr.rel (%p274) target = $region40
      $region39: #{transformer_forward.43} parent=31 // pred_region
        %v277 = vld [vmem:[%s238] sm:$0xf]
        %v278 = vld [vmem:[%s245] sm:$0xf]
        %v279 = vld [vmem:[%s252] sm:$0xf]
        %vm280 = vcmask 64512
        %v282 = vsel %vm280, %v277, 0
        %v285 = vsel %vm280, %v278, 0
        %287 = vmatprep.subr.bf16.mxu0 0
        %288 = vmatpush1.bf16.xpose.msra.mxu0 0
        %289 = vmatprep.subr.bf16.mxu0 0
        %290 = vmatpush1.bf16.xpose.msra.mxu0 0
        %291 = vmatprep.subr.bf16.mxu0 0
        %292 = vmatpush1.bf16.xpose.msra.mxu0 0
        %293 = vmatprep.subr.bf16.mxu0 0
        %294 = vmatpush1.bf16.xpose.msra.mxu0 0
        %295 = vmatprep.subr.bf16.mxu0 0
        %296 = vmatpush1.bf16.xpose.msra.mxu0 0
        %297 = vmatprep.subr.bf16.mxu0 0
        %298 = vmatpush1.bf16.xpose.msra.mxu0 0
        %299 = vmatprep.subr.bf16.mxu0 0
        %300 = vmatpush1.bf16.xpose.msra.mxu0 0
        %301 = vmatprep.subr.bf16.mxu0 0
        %302 = vmatpush1.bf16.xpose.msra.mxu0 %v285
        %303 = vmatprep.subr.bf16.mxu0 0
        %304 = vmatpush2.bf16.xpose.msra.mxu0 0
        %305 = vmatprep.subr.bf16.mxu0 0
        %306 = vmatpush2.bf16.xpose.msra.mxu0 0
        %307 = vmatprep.subr.bf16.mxu0 0
        %308 = vmatpush2.bf16.xpose.msra.mxu0 0
        %309 = vmatprep.subr.bf16.mxu0 0
        %310 = vmatpush2.bf16.xpose.msra.mxu0 0
        %311 = vmatprep.subr.bf16.mxu0 0
        %312 = vmatpush2.bf16.xpose.msra.mxu0 0
        %313 = vmatprep.subr.bf16.mxu0 0
        %314 = vmatpush2.bf16.xpose.msra.mxu0 0
        %315 = vmatprep.subr.bf16.mxu0 0
        %316 = vmatpush2.bf16.xpose.msra.mxu0 0
        %317 = vmatprep.subr.bf16.mxu0 0
        %318 = vmatpush2.bf16.xpose.msra.mxu0 0
        %319 = vmatprep.mubr.bf16.mxu0 0
        %320 = vmatmul.mubr.bf16.gmra.mxu0 %v282
        %v321 = vpop.f32.mrf.mxu0
        %v322 = vadd.f32 0.0, %v321
        %v323 = vpop.f32.mrf.mxu0
        %v324 = vpop.f32.mrf.mxu0
        %v325 = vpop.f32.mrf.mxu0
        %326 = vdwg.mxu0
        %v327 = vlaneseq
        %v328 = vshrl.u32 %v327, 7
        %v329 = vstv %s271
        %v330 = vadd.s32 %v329, %v328
        %v331 = vlaneseq
        %v332 = vand.u32 %v331, 127
        %v333 = vstv %s270
        %v334 = vadd.s32 %v333, %v332
        %vm335 = vcmp.le.s32.totalorder %v334, %v330
        %v336 = vsel %vm335, %v322, -1e+30
        %v337 = vld [vmem:[#allocation2] sm:$0xff]
        %v338 = vsel %vm280, %v336, -inf
        %339 = vmax.xlane.f32.xlu0 %v338
        %v340 = vpop.xlane.xlu0 %339
        %v341 = vmax.f32 %v337, %v340
        %v342 = vsub.f32 %v337, %v341
        %v343 = vmul.f32 %v342, 1.442695
        %v344 = vpow.pop %v343
        %346 = vset.pattern.permute.xlu0 0
        %347 = vperm.xlu0 %346, %v341
        %v348 = vpop.permute.xlu0 %347
        %v350 = vsub.f32 %v336, %v348
        %v351 = vmul.f32 %v350, 1.442695
        %v352 = vpow.pop %v351
        %v353 = vld [vmem:[#allocation3] sm:$0xff]
        %v354 = vmul.f32 %v344, %v353
        %v355 = vsel %vm280, %v352, 0.0
        %356 = vadd.xlane.f32.xlu0 %v355
        %v357 = vpop.xlane.xlu0 %356
        %v358 = vadd.f32 %v354, %v357
        %vm359 = vcmask 7168
        %360 = vst.msk [vmem:[#allocation3] sm:$0xff] %vm359, %v358
        %v361 = vld [vmem:[#allocation4] sm:$0xff]
        %363 = vset.pattern.permute.xlu0 0
        %364 = vperm.xlu0 %363, %v344
        %v365 = vpop.permute.xlu0 %364
        %v367 = vmul.f32 %v365, %v361
        %v368 = vpack.c.bf16 %v352, %v352
        %v370 = vsel %vm280, %v368, 0
        %vm372 = vcmask 1043456
        %v374 = vsel %vm372, %v279, 0
        %376 = vmatprep.subr.bf16.mxu0 0
        %377 = vmatpush1.bf16.msra.mxu0 0
        %378 = vmatprep.subr.bf16.mxu0 0
        %379 = vmatpush1.bf16.msra.mxu0 0
        %380 = vmatprep.subr.bf16.mxu0 0
        %381 = vmatpush1.bf16.msra.mxu0 0
        %382 = vmatprep.subr.bf16.mxu0 0
        %383 = vmatpush1.bf16.msra.mxu0 0
        %384 = vmatprep.subr.bf16.mxu0 0
        %385 = vmatpush1.bf16.msra.mxu0 0
        %386 = vmatprep.subr.bf16.mxu0 0
        %387 = vmatpush1.bf16.msra.mxu0 0
        %388 = vmatprep.subr.bf16.mxu0 0
        %389 = vmatpush1.bf16.msra.mxu0 0
        %390 = vmatprep.subr.bf16.mxu0 0
        %391 = vmatpush1.bf16.msra.mxu0 %v374
        %392 = vmatprep.subr.bf16.mxu0 0
        %393 = vmatpush2.bf16.msra.mxu0 0
        %394 = vmatprep.subr.bf16.mxu0 0
        %395 = vmatpush2.bf16.msra.mxu0 0
        %396 = vmatprep.subr.bf16.mxu0 0
        %397 = vmatpush2.bf16.msra.mxu0 0
        %398 = vmatprep.subr.bf16.mxu0 0
        %399 = vmatpush2.bf16.msra.mxu0 0
        %400 = vmatprep.subr.bf16.mxu0 0
        %401 = vmatpush2.bf16.msra.mxu0 0
        %402 = vmatprep.subr.bf16.mxu0 0
        %403 = vmatpush2.bf16.msra.mxu0 0
        %404 = vmatprep.subr.bf16.mxu0 0
        %405 = vmatpush2.bf16.msra.mxu0 0
        %406 = vmatprep.subr.bf16.mxu0 0
        %407 = vmatpush2.bf16.msra.mxu0 0
        %408 = vmatprep.mubr.bf16.mxu0 0
        %409 = vmatmul.mubr.bf16.gmra.mxu0 %v370
        %v410 = vpop.f32.mrf.mxu0
        %v411 = vadd.f32 0.0, %v410
        %v412 = vpop.f32.mrf.mxu0
        %v413 = vpop.f32.mrf.mxu0
        %v414 = vpop.f32.mrf.mxu0
        %415 = vdwg.mxu0
        %v416 = vadd.f32 %v367, %v411
        %417 = vst.msk [vmem:[#allocation4] sm:$0xff] %vm280, %v416
        %418 = vst.msk [vmem:[#allocation2] sm:$0xff] %vm359, %v341
      $region40: #{transformer_forward.43} parent=31 // pred_fallthru
        _
      // Predicated region
      $region41: #{transformer_forward.43} parent=31 // pred_check
        %p419 = pneg %p261
      $region42: #{transformer_forward.43} parent=31 // pred_check_branch
        %421 = sbr.rel (%p419) target = $region44
      $region43: #{transformer_forward.43} parent=31 // pred_region
        %v422 = vld [vmem:[#allocation3] sm:$0xff]
        %v423 = vrcp.pop %v422
        %v424 = vld [vmem:[#allocation4] sm:$0xff]
        %426 = vset.pattern.permute.xlu0 0
        %427 = vperm.xlu0 %426, %v423
        %v428 = vpop.permute.xlu0 %427
        %v430 = vmul.f32 %v424, %v428
        %v431 = vpack.c.bf16 %v430, %v430
        %vm432 = vcmask 60416
        %433 = vst.msk [vmem:[%s259] sm:$0xf] %vm432, %v431
      $region44: #{transformer_forward.43} parent=31 // pred_fallthru
        _
      %p434 = scmp.lt.s32.totalorder %s19, 7
      %s435 = scalar_select %p434, %s19, 7
      %p436 = scmp.lt.s32.totalorder %s20, 0
      %s437 = scalar_select %p436, %s20, 0
      %s438 = sadd.s32 %s437, %s435
      %s439 = smul.addr %s438, 4
      %s440 = scalar_lea.vmem %s3, %s439
      // Predicated region
      $region45: #{transformer_forward.43} parent=31 // pred_check
        %p441 = pneg %p137
      $region46: #{transformer_forward.43} parent=31 // pred_check_branch
        %443 = sbr.rel (%p441) target = $region48
      $region47: #{transformer_forward.43} parent=31 // pred_region
        _
      $region48: #{transformer_forward.43} parent=31 // pred_fallthru
        _
    $region32: #{transformer_forward.43} parent=5 // pred_fallthru
      _
    %p444 = scmp.le.s32.totalorder 2, %s9
    // Predicated region
    $region49: #{transformer_forward.43} parent=5 // pred_check
      %p445 = pneg %p444
    $region50: #{transformer_forward.43} parent=5 // pred_check_branch
      %447 = sbr.rel (%p445) target = $region52
    $region51: #{transformer_forward.43} parent=5 // pred_region
      %s448 = ssub.s32 %s9, 2
      // Predicated region
      $region53: #{transformer_forward.43} parent=51 // pred_check
        %p449 = pneg %p143
      $region54: #{transformer_forward.43} parent=51 // pred_check_branch
        %451 = sbr.rel (%p449) target = $region56
      $region55: #{transformer_forward.43} parent=51 // pred_region
        %p452 = scmp.lt.s32.totalorder %s22, 7
        %s453 = scalar_select %p452, %s22, 7
        %p454 = scmp.lt.s32.totalorder %s23, 0
        %s455 = scalar_select %p454, %s23, 0
        %s456 = sadd.s32 %s455, %s453
        %s457 = smul.addr %s456, 4
        %s458 = scalar_lea.vmem %s3, %s457
      $region56: #{transformer_forward.43} parent=51 // pred_fallthru
        _
    $region52: #{transformer_forward.43} parent=5 // pred_fallthru
      _
  $region6: #{transformer_forward.43} parent=0 // loop_footer
    %s13 = sadd.s32 1, %s9
  $region7: #{transformer_forward.43} parent=0 // loop_footer_branch
    %8 = sbr.rel target = $region3
  $region8: #{transformer_forward.43} parent=0 // loop_exit
    _

// kernel: transformer_forward.45
$region0: #{transformer_forward.45}
  #allocation0 [shape = 'u32[]', space=smem, size = 0x4, offset = 0x4, fixed_abs, tag = 'smem constant byte address 0x4 - core index']
  #allocation1 [shape = 'u32[144,128]{1,0:T(1,128)}', space=vmem, size = 0x12000, scoped, tag = 'internal scratch']
  #allocation2 [shape = 'f32[16,32]{1,0:T(8,128)}', space=vmem, size = 0x2000, scoped, tag = 'scratch operand']
  %s0 = inlined_call_operand.vmem [shape: bf16[16,32], index: 0, kind: input, shape index: {}]
  %s1 = inlined_call_operand.vmem [shape: bf16[32,32], index: 1, kind: input, shape index: {}]
  %s2 = inlined_call_operand.vmem [shape: f32[1,32], index: 2, kind: input, shape index: {}]
  %s3 = inlined_call_operand.vmem [shape: bf16[16,32], index: 3, kind: output, shape index: {}]
  %s4 = sld [smem:[#allocation0]]
  $region30: #{transformer_forward.45} parent=0
    _
  %s6 = ssub.s32 1, %s4
  %s7 = scalar_select 0, %s6, %s4
  // Predicated region
  $region2: #{transformer_forward.45} parent=0 // pred_check
    _
  $region3: #{transformer_forward.45} parent=0 // pred_check_branch
    %9 = sbr.rel (0) target = $region5
  $region4: #{transformer_forward.45} parent=0 // pred_region
    _
  $region5: #{transformer_forward.45} parent=0 // pred_fallthru
    _
  // Predicated region
  $region6: #{transformer_forward.45} parent=0 // pred_check
    _
  $region7: #{transformer_forward.45} parent=0 // pred_check_branch
    %11 = sbr.rel (0) target = $region9
  $region8: #{transformer_forward.45} parent=0 // pred_region
    _
  $region9: #{transformer_forward.45} parent=0 // pred_fallthru
    _
  // Predicated region
  $region10: #{transformer_forward.45} parent=0 // pred_check
    _
  $region11: #{transformer_forward.45} parent=0 // pred_check_branch
    %13 = sbr.rel (0) target = $region13
  $region12: #{transformer_forward.45} parent=0 // pred_region
    _
  $region13: #{transformer_forward.45} parent=0 // pred_fallthru
    _
  %p15 = scmp.eq.s32.totalorder 0, 0
  // Predicated region
  $region14: #{transformer_forward.45} parent=0 // pred_check
    %p16 = pneg %p15
  $region15: #{transformer_forward.45} parent=0 // pred_check_branch
    %18 = sbr.rel (%p16) target = $region17
  $region16: #{transformer_forward.45} parent=0 // pred_region
    %vm19 = vcmask 261120
    %20 = vst.msk [vmem:[#allocation2] sm:$0xff] %vm19, 0.0
    %21 = vst.msk [vmem:[#allocation2 + $0x8] sm:$0xff] %vm19, 0.0
  $region17: #{transformer_forward.45} parent=0 // pred_fallthru
    _
  %v22 = vld [vmem:[#allocation2] sm:$0xff]
  %v23 = vld [vmem:[#allocation2 + $0x8] sm:$0xff]
  %v24 = vld [vmem:[%s0] sm:$0xf]
  %v25 = vld [vmem:[%s0 + $0x4] sm:$0xf]
  %v26 = vld [vmem:[%s1] sm:$0xf]
  %v27 = vld [vmem:[%s1 + $0x4] sm:$0xf]
  %v28 = vld [vmem:[%s1 + $0x8] sm:$0xf]
  %v29 = vld [vmem:[%s1 + $0xc] sm:$0xf]
  %v32 = vunpack.c.l.b16 %v24
  %v33 = vunpack.c.l.b16 %v25
  %v34 = vpack.c.b16 %v33, %v32
  %v39 = vunpack.c.l.b16 %v26
  %v40 = vunpack.c.l.b16 %v27
  %v41 = vunpack.c.l.b16 %v28
  %v42 = vunpack.c.l.b16 %v29
  %v43 = vpack.c.b16 %v40, %v39
  %v44 = vpack.c.b16 %v42, %v41
  %vm47 = vcmask 261120
  %v49 = vsel %vm47, %v34, 0
  %51 = vmatprep.subr.bf16.mxu0 0
  %52 = vmatpush1.bf16.msra.mxu0 0
  %53 = vmatprep.subr.bf16.mxu0 0
  %54 = vmatpush1.bf16.msra.mxu0 0
  %55 = vmatprep.subr.bf16.mxu0 0
  %56 = vmatpush1.bf16.msra.mxu0 0
  %57 = vmatprep.subr.bf16.mxu0 0
  %58 = vmatpush1.bf16.msra.mxu0 0
  %59 = vmatprep.subr.bf16.mxu0 0
  %60 = vmatpush1.bf16.msra.mxu0 0
  %61 = vmatprep.subr.bf16.mxu0 0
  %62 = vmatpush1.bf16.msra.mxu0 0
  %63 = vmatprep.subr.bf16.mxu0 0
  %64 = vmatpush1.bf16.msra.mxu0 %v44
  %65 = vmatprep.subr.bf16.mxu0 0
  %66 = vmatpush1.bf16.msra.mxu0 %v43
  %67 = vmatprep.subr.bf16.mxu0 0
  %68 = vmatpush2.bf16.msra.mxu0 0
  %69 = vmatprep.subr.bf16.mxu0 0
  %70 = vmatpush2.bf16.msra.mxu0 0
  %71 = vmatprep.subr.bf16.mxu0 0
  %72 = vmatpush2.bf16.msra.mxu0 0
  %73 = vmatprep.subr.bf16.mxu0 0
  %74 = vmatpush2.bf16.msra.mxu0 0
  %75 = vmatprep.subr.bf16.mxu0 0
  %76 = vmatpush2.bf16.msra.mxu0 0
  %77 = vmatprep.subr.bf16.mxu0 0
  %78 = vmatpush2.bf16.msra.mxu0 0
  %79 = vmatprep.subr.bf16.mxu0 0
  %80 = vmatpush2.bf16.msra.mxu0 0
  %81 = vmatprep.subr.bf16.mxu0 0
  %82 = vmatpush2.bf16.msra.mxu0 0
  %83 = vmatprep.mubr.bf16.mxu0 0
  %84 = vmatmul.mubr.bf16.gmra.mxu0 %v49
  %v85 = vpop.f32.mrf.mxu0
  %v86 = vadd.f32 0.0, %v85
  %v87 = vpop.f32.mrf.mxu0
  %v88 = vpop.f32.mrf.mxu0
  %v89 = vadd.f32 0.0, %v88
  %v90 = vpop.f32.mrf.mxu0
  %91 = vdwg.mxu0
  %v92 = vadd.f32 %v22, %v86
  %v93 = vadd.f32 %v23, %v89
  %94 = vst.msk [vmem:[#allocation2] sm:$0xff] %vm47, %v92
  %95 = vst.msk [vmem:[#allocation2 + $0x8] sm:$0xff] %vm47, %v93
  // Predicated region
  $region18: #{transformer_forward.45} parent=0 // pred_check
    %p96 = pneg %p15
  $region19: #{transformer_forward.45} parent=0 // pred_check_branch
    %98 = sbr.rel (%p96) target = $region21
  $region20: #{transformer_forward.45} parent=0 // pred_region
    %v99 = vld [vmem:[#allocation2] sm:$0xff]
    %v100 = vld [vmem:[#allocation2 + $0x8] sm:$0xff]
    %v101 = vld [vmem:[%s2] sm:$0x1]
    %v103 = vlaneseq
    %v104 = vshrl.u32 %v103, 7
    %v105 = vsub.s32 0, %v104
    %v106 = vrot.slane %v101, %v105
    %v108 = vadd.f32 %v99, %v106
    %v109 = vadd.f32 %v100, %v106
    %v110 = vpack.c.bf16 %v109, %v108
    %v112 = vunpack.c.l.b16 %v110
    %v113 = vunpack.c.h.b16 %v110
    %v114 = vpack.c.b16 %v112, %v112
    %v115 = vpack.c.b16 %v113, %v113
    %vm118 = vcmask 257024
    %119 = vst.msk [vmem:[%s3] sm:$0xf] %vm118, %v114
    %120 = vst.msk [vmem:[%s3 + $0x4] sm:$0xf] %vm118, %v115
  $region21: #{transformer_forward.45} parent=0 // pred_fallthru
    _
  // Predicated region
  $region22: #{transformer_forward.45} parent=0 // pred_check
    _
  $region23: #{transformer_forward.45} parent=0 // pred_check_branch
    %122 = sbr.rel (0) target = $region25
  $region24: #{transformer_forward.45} parent=0 // pred_region
    _
  $region25: #{transformer_forward.45} parent=0 // pred_fallthru
    _
  // Predicated region
  $region26: #{transformer_forward.45} parent=0 // pred_check
    _
  $region27: #{transformer_forward.45} parent=0 // pred_check_branch
    %124 = sbr.rel (0) target = $region29
  $region28: #{transformer_forward.45} parent=0 // pred_region
    _
  $region29: #{transformer_forward.45} parent=0 // pred_fallthru
    _

// kernel: transformer_forward.44
$region0: #{transformer_forward.44}
  #allocation0 [shape = 'u32[]', space=smem, size = 0x4, offset = 0x4, fixed_abs, tag = 'smem constant byte address 0x4 - core index']
  #allocation1 [shape = 'u32[144,128]{1,0:T(1,128)}', space=vmem, size = 0x12000, scoped, tag = 'internal scratch']
  #allocation2 [shape = 'f32[16,32]{1,0:T(8,128)}', space=vmem, size = 0x2000, scoped, tag = 'scratch operand']
  %s0 = inlined_call_operand.vmem [shape: bf16[16,32], index: 0, kind: input, shape index: {}]
  %s1 = inlined_call_operand.vmem [shape: bf16[32,32], index: 1, kind: input, shape index: {}]
  %s2 = inlined_call_operand.vmem [shape: f32[1,32], index: 2, kind: input, shape index: {}]
  %s3 = inlined_call_operand.vmem [shape: bf16[16,32], index: 3, kind: input, shape index: {}]
  %s4 = inlined_call_operand.vmem [shape: f32[1,32], index: 4, kind: input, shape index: {}]
  %s5 = inlined_call_operand.vmem [shape: f32[1,32], index: 5, kind: input, shape index: {}]
  %s6 = inlined_call_operand.vmem [shape: bf16[16,32], index: 6, kind: output, shape index: {}]
  %s7 = sld [smem:[#allocation0]]
  $region42: #{transformer_forward.44} parent=0
    _
  %s9 = ssub.s32 1, %s7
  %s10 = scalar_select 0, %s9, %s7
  // Predicated region
  $region2: #{transformer_forward.44} parent=0 // pred_check
    _
  $region3: #{transformer_forward.44} parent=0 // pred_check_branch
    %12 = sbr.rel (0) target = $region5
  $region4: #{transformer_forward.44} parent=0 // pred_region
    _
  $region5: #{transformer_forward.44} parent=0 // pred_fallthru
    _
  // Predicated region
  $region6: #{transformer_forward.44} parent=0 // pred_check
    _
  $region7: #{transformer_forward.44} parent=0 // pred_check_branch
    %14 = sbr.rel (0) target = $region9
  $region8: #{transformer_forward.44} parent=0 // pred_region
    _
  $region9: #{transformer_forward.44} parent=0 // pred_fallthru
    _
  // Predicated region
  $region10: #{transformer_forward.44} parent=0 // pred_check
    _
  $region11: #{transformer_forward.44} parent=0 // pred_check_branch
    %16 = sbr.rel (0) target = $region13
  $region12: #{transformer_forward.44} parent=0 // pred_region
    _
  $region13: #{transformer_forward.44} parent=0 // pred_fallthru
    _
  // Predicated region
  $region14: #{transformer_forward.44} parent=0 // pred_check
    _
  $region15: #{transformer_forward.44} parent=0 // pred_check_branch
    %18 = sbr.rel (0) target = $region17
  $region16: #{transformer_forward.44} parent=0 // pred_region
    _
  $region17: #{transformer_forward.44} parent=0 // pred_fallthru
    _
  // Predicated region
  $region18: #{transformer_forward.44} parent=0 // pred_check
    _
  $region19: #{transformer_forward.44} parent=0 // pred_check_branch
    %20 = sbr.rel (0) target = $region21
  $region20: #{transformer_forward.44} parent=0 // pred_region
    _
  $region21: #{transformer_forward.44} parent=0 // pred_fallthru
    _
  // Predicated region
  $region22: #{transformer_forward.44} parent=0 // pred_check
    _
  $region23: #{transformer_forward.44} parent=0 // pred_check_branch
    %22 = sbr.rel (0) target = $region25
  $region24: #{transformer_forward.44} parent=0 // pred_region
    _
  $region25: #{transformer_forward.44} parent=0 // pred_fallthru
    _
  %p24 = scmp.eq.s32.totalorder 0, 0
  // Predicated region
  $region26: #{transformer_forward.44} parent=0 // pred_check
    %p25 = pneg %p24
  $region27: #{transformer_forward.44} parent=0 // pred_check_branch
    %27 = sbr.rel (%p25) target = $region29
  $region28: #{transformer_forward.44} parent=0 // pred_region
    %vm28 = vcmask 261120
    %29 = vst.msk [vmem:[#allocation2] sm:$0xff] %vm28, 0.0
    %30 = vst.msk [vmem:[#allocation2 + $0x8] sm:$0xff] %vm28, 0.0
  $region29: #{transformer_forward.44} parent=0 // pred_fallthru
    _
  %v31 = vld [vmem:[#allocation2] sm:$0xff]
  %v32 = vld [vmem:[#allocation2 + $0x8] sm:$0xff]
  %v33 = vld [vmem:[%s0] sm:$0xf]
  %v34 = vld [vmem:[%s0 + $0x4] sm:$0xf]
  %v35 = vld [vmem:[%s1] sm:$0xf]
  %v36 = vld [vmem:[%s1 + $0x4] sm:$0xf]
  %v37 = vld [vmem:[%s1 + $0x8] sm:$0xf]
  %v38 = vld [vmem:[%s1 + $0xc] sm:$0xf]
  %v41 = vunpack.c.l.b16 %v33
  %v42 = vunpack.c.l.b16 %v34
  %v43 = vpack.c.b16 %v42, %v41
  %v48 = vunpack.c.l.b16 %v35
  %v49 = vunpack.c.l.b16 %v36
  %v50 = vunpack.c.l.b16 %v37
  %v51 = vunpack.c.l.b16 %v38
  %v52 = vpack.c.b16 %v49, %v48
  %v53 = vpack.c.b16 %v51, %v50
  %vm56 = vcmask 261120
  %v58 = vsel %vm56, %v43, 0
  %60 = vmatprep.subr.bf16.mxu0 0
  %61 = vmatpush1.bf16.msra.mxu0 0
  %62 = vmatprep.subr.bf16.mxu0 0
  %63 = vmatpush1.bf16.msra.mxu0 0
  %64 = vmatprep.subr.bf16.mxu0 0
  %65 = vmatpush1.bf16.msra.mxu0 0
  %66 = vmatprep.subr.bf16.mxu0 0
  %67 = vmatpush1.bf16.msra.mxu0 0
  %68 = vmatprep.subr.bf16.mxu0 0
  %69 = vmatpush1.bf16.msra.mxu0 0
  %70 = vmatprep.subr.bf16.mxu0 0
  %71 = vmatpush1.bf16.msra.mxu0 0
  %72 = vmatprep.subr.bf16.mxu0 0
  %73 = vmatpush1.bf16.msra.mxu0 %v53
  %74 = vmatprep.subr.bf16.mxu0 0
  %75 = vmatpush1.bf16.msra.mxu0 %v52
  %76 = vmatprep.subr.bf16.mxu0 0
  %77 = vmatpush2.bf16.msra.mxu0 0
  %78 = vmatprep.subr.bf16.mxu0 0
  %79 = vmatpush2.bf16.msra.mxu0 0
  %80 = vmatprep.subr.bf16.mxu0 0
  %81 = vmatpush2.bf16.msra.mxu0 0
  %82 = vmatprep.subr.bf16.mxu0 0
  %83 = vmatpush2.bf16.msra.mxu0 0
  %84 = vmatprep.subr.bf16.mxu0 0
  %85 = vmatpush2.bf16.msra.mxu0 0
  %86 = vmatprep.subr.bf16.mxu0 0
  %87 = vmatpush2.bf16.msra.mxu0 0
  %88 = vmatprep.subr.bf16.mxu0 0
  %89 = vmatpush2.bf16.msra.mxu0 0
  %90 = vmatprep.subr.bf16.mxu0 0
  %91 = vmatpush2.bf16.msra.mxu0 0
  %92 = vmatprep.mubr.bf16.mxu0 0
  %93 = vmatmul.mubr.bf16.gmra.mxu0 %v58
  %v94 = vpop.f32.mrf.mxu0
  %v95 = vadd.f32 0.0, %v94
  %v96 = vpop.f32.mrf.mxu0
  %v97 = vpop.f32.mrf.mxu0
  %v98 = vadd.f32 0.0, %v97
  %v99 = vpop.f32.mrf.mxu0
  %100 = vdwg.mxu0
  %v101 = vadd.f32 %v31, %v95
  %v102 = vadd.f32 %v32, %v98
  %103 = vst.msk [vmem:[#allocation2] sm:$0xff] %vm56, %v101
  %104 = vst.msk [vmem:[#allocation2 + $0x8] sm:$0xff] %vm56, %v102
  // Predicated region
  $region30: #{transformer_forward.44} parent=0 // pred_check
    %p105 = pneg %p24
  $region31: #{transformer_forward.44} parent=0 // pred_check_branch
    %107 = sbr.rel (%p105) target = $region33
  $region32: #{transformer_forward.44} parent=0 // pred_region
    %v108 = vld [vmem:[#allocation2] sm:$0xff]
    %v109 = vld [vmem:[#allocation2 + $0x8] sm:$0xff]
    %v110 = vld [vmem:[%s2] sm:$0x1]
    %v112 = vlaneseq
    %v113 = vshrl.u32 %v112, 7
    %v114 = vsub.s32 0, %v113
    %v115 = vrot.slane %v110, %v114
    %v117 = vadd.f32 %v108, %v115
    %v118 = vadd.f32 %v109, %v115
    %v119 = vld [vmem:[%s3] sm:$0xf]
    %v120 = vld [vmem:[%s3 + $0x4] sm:$0xf]
    %v121 = vunpack.c.l.bf16 %v119
    %v122 = vunpack.c.l.bf16 %v120
    %v123 = vadd.f32 %v117, %v121
    %v124 = vadd.f32 %v118, %v122
    %v125 = vsel %vm56, %v123, 0.0
    %126 = vadd.xlane.f32.xlu0 %v125
    %v127 = vpop.xlane.xlu0 %126
    %v128 = vsel %vm56, %v124, 0.0
    %129 = vadd.xlane.f32.xlu0 %v128
    %v130 = vpop.xlane.xlu0 %129
    %v131 = vrcp.pop 32.0
    %v132 = vmul.f32 %v127, %v131
    %v133 = vmul.f32 %v130, %v131
    %v134 = vsub.f32 %v123, %v132
    %v135 = vsub.f32 %v124, %v133
    %v136 = vmul.f32 %v134, %v134
    %v137 = vmul.f32 %v135, %v135
    %v138 = vsel %vm56, %v136, 0.0
    %139 = vadd.xlane.f32.xlu0 %v138
    %v140 = vpop.xlane.xlu0 %139
    %v141 = vsel %vm56, %v137, 0.0
    %142 = vadd.xlane.f32.xlu0 %v141
    %v143 = vpop.xlane.xlu0 %142
    %v144 = vmul.f32 %v140, %v131
    %v145 = vmul.f32 %v143, %v131
    %v146 = vadd.f32 %v144, 1e-05
    %v147 = vadd.f32 %v145, 1e-05
    %v148 = vrsqrt.pop %v146
    %v149 = vrsqrt.pop %v147
    %v150 = vmul.f32 %v134, %v148
    %v151 = vmul.f32 %v135, %v149
    %v152 = vld [vmem:[%s4] sm:$0x1]
    %v154 = vlaneseq
    %v155 = vshrl.u32 %v154, 7
    %v156 = vsub.s32 0, %v155
    %v157 = vrot.slane %v152, %v156
    %v159 = vmul.f32 %v150, %v157
    %v160 = vmul.f32 %v151, %v157
    %v161 = vld [vmem:[%s5] sm:$0x1]
    %v163 = vlaneseq
    %v164 = vshrl.u32 %v163, 7
    %v165 = vsub.s32 0, %v164
    %v166 = vrot.slane %v161, %v165
    %v168 = vadd.f32 %v159, %v166
    %v169 = vadd.f32 %v160, %v166
    %v170 = vpack.c.bf16 %v169, %v168
    %v172 = vunpack.c.l.b16 %v170
    %v173 = vunpack.c.h.b16 %v170
    %v174 = vpack.c.b16 %v172, %v172
    %v175 = vpack.c.b16 %v173, %v173
    %vm178 = vcmask 257024
    %179 = vst.msk [vmem:[%s6] sm:$0xf] %vm178, %v174
    %180 = vst.msk [vmem:[%s6 + $0x4] sm:$0xf] %vm178, %v175
  $region33: #{transformer_forward.44} parent=0 // pred_fallthru
    _
  // Predicated region
  $region34: #{transformer_forward.44} parent=0 // pred_check
    _
  $region35: #{transformer_forward.44} parent=0 // pred_check_branch
    %182 = sbr.rel (0) target = $region37
  $region36: #{transformer_forward.44} parent=0 // pred_region
    _
  $region37: #{transformer_forward.44} parent=0 // pred_fallthru
    _
  // Predicated region
  $region38: #{transformer_forward.44} parent=0 // pred_check
    _
  $region39: #{transformer_forward.44} parent=0 // pred_check_branch
    %184 = sbr.rel (0) target = $region41
  $region40: #{transformer_forward.44} parent=0 // pred_region
    _
  $region41: #{transformer_forward.44} parent=0 // pred_fallthru
    _

// kernel: transformer_forward.34
$region0: #{transformer_forward.34}
  #allocation0 [shape = 'u32[]', space=smem, size = 0x4, offset = 0x4, fixed_abs, tag = 'smem constant byte address 0x4 - core index']
  #allocation1 [shape = 'u32[144,128]{1,0:T(1,128)}', space=vmem, size = 0x12000, scoped, tag = 'internal scratch']
  #allocation2 [shape = 'f32[16,64]{1,0:T(8,128)}', space=vmem, size = 0x2000, scoped, tag = 'scratch operand']
  %s0 = inlined_call_operand.vmem [shape: bf16[16,32], index: 0, kind: input, shape index: {}]
  %s1 = inlined_call_operand.vmem [shape: bf16[32,64], index: 1, kind: input, shape index: {}]
  %s2 = inlined_call_operand.vmem [shape: f32[1,64], index: 2, kind: input, shape index: {}]
  %s3 = inlined_call_operand.vmem [shape: bf16[16,64], index: 3, kind: output, shape index: {}]
  %s4 = sld [smem:[#allocation0]]
  $region30: #{transformer_forward.34} parent=0
    _
  %s6 = ssub.s32 1, %s4
  %s7 = scalar_select 0, %s6, %s4
  // Predicated region
  $region2: #{transformer_forward.34} parent=0 // pred_check
    _
  $region3: #{transformer_forward.34} parent=0 // pred_check_branch
    %9 = sbr.rel (0) target = $region5
  $region4: #{transformer_forward.34} parent=0 // pred_region
    _
  $region5: #{transformer_forward.34} parent=0 // pred_fallthru
    _
  // Predicated region
  $region6: #{transformer_forward.34} parent=0 // pred_check
    _
  $region7: #{transformer_forward.34} parent=0 // pred_check_branch
    %11 = sbr.rel (0) target = $region9
  $region8: #{transformer_forward.34} parent=0 // pred_region
    _
  $region9: #{transformer_forward.34} parent=0 // pred_fallthru
    _
  // Predicated region
  $region10: #{transformer_forward.34} parent=0 // pred_check
    _
  $region11: #{transformer_forward.34} parent=0 // pred_check_branch
    %13 = sbr.rel (0) target = $region13
  $region12: #{transformer_forward.34} parent=0 // pred_region
    _
  $region13: #{transformer_forward.34} parent=0 // pred_fallthru
    _
  %p15 = scmp.eq.s32.totalorder 0, 0
  // Predicated region
  $region14: #{transformer_forward.34} parent=0 // pred_check
    %p16 = pneg %p15
  $region15: #{transformer_forward.34} parent=0 // pred_check_branch
    %18 = sbr.rel (%p16) target = $region17
  $region16: #{transformer_forward.34} parent=0 // pred_region
    %vm19 = vcmask 523264
    %20 = vst.msk [vmem:[#allocation2] sm:$0xff] %vm19, 0.0
    %21 = vst.msk [vmem:[#allocation2 + $0x8] sm:$0xff] %vm19, 0.0
  $region17: #{transformer_forward.34} parent=0 // pred_fallthru
    _
  %v22 = vld [vmem:[#allocation2] sm:$0xff]
  %v23 = vld [vmem:[#allocation2 + $0x8] sm:$0xff]
  %v24 = vld [vmem:[%s0] sm:$0xf]
  %v25 = vld [vmem:[%s0 + $0x4] sm:$0xf]
  %v26 = vld [vmem:[%s1] sm:$0xf]
  %v27 = vld [vmem:[%s1 + $0x4] sm:$0xf]
  %v28 = vld [vmem:[%s1 + $0x8] sm:$0xf]
  %v29 = vld [vmem:[%s1 + $0xc] sm:$0xf]
  %v32 = vunpack.c.l.b16 %v24
  %v33 = vunpack.c.l.b16 %v25
  %v34 = vpack.c.b16 %v33, %v32
  %v39 = vunpack.c.l.b16 %v26
  %v40 = vunpack.c.l.b16 %v27
  %v41 = vunpack.c.l.b16 %v28
  %v42 = vunpack.c.l.b16 %v29
  %v43 = vpack.c.b16 %v40, %v39
  %v44 = vpack.c.b16 %v42, %v41
  %vm47 = vcmask 261120
  %v49 = vsel %vm47, %v34, 0
  %51 = vmatprep.subr.bf16.mxu0 0
  %52 = vmatpush1.bf16.msra.mxu0 0
  %53 = vmatprep.subr.bf16.mxu0 0
  %54 = vmatpush1.bf16.msra.mxu0 0
  %55 = vmatprep.subr.bf16.mxu0 0
  %56 = vmatpush1.bf16.msra.mxu0 0
  %57 = vmatprep.subr.bf16.mxu0 0
  %58 = vmatpush1.bf16.msra.mxu0 0
  %59 = vmatprep.subr.bf16.mxu0 0
  %60 = vmatpush1.bf16.msra.mxu0 0
  %61 = vmatprep.subr.bf16.mxu0 0
  %62 = vmatpush1.bf16.msra.mxu0 0
  %63 = vmatprep.subr.bf16.mxu0 0
  %64 = vmatpush1.bf16.msra.mxu0 %v44
  %65 = vmatprep.subr.bf16.mxu0 0
  %66 = vmatpush1.bf16.msra.mxu0 %v43
  %67 = vmatprep.subr.bf16.mxu0 0
  %68 = vmatpush2.bf16.msra.mxu0 0
  %69 = vmatprep.subr.bf16.mxu0 0
  %70 = vmatpush2.bf16.msra.mxu0 0
  %71 = vmatprep.subr.bf16.mxu0 0
  %72 = vmatpush2.bf16.msra.mxu0 0
  %73 = vmatprep.subr.bf16.mxu0 0
  %74 = vmatpush2.bf16.msra.mxu0 0
  %75 = vmatprep.subr.bf16.mxu0 0
  %76 = vmatpush2.bf16.msra.mxu0 0
  %77 = vmatprep.subr.bf16.mxu0 0
  %78 = vmatpush2.bf16.msra.mxu0 0
  %79 = vmatprep.subr.bf16.mxu0 0
  %80 = vmatpush2.bf16.msra.mxu0 0
  %81 = vmatprep.subr.bf16.mxu0 0
  %82 = vmatpush2.bf16.msra.mxu0 0
  %83 = vmatprep.mubr.bf16.mxu0 0
  %84 = vmatmul.mubr.bf16.gmra.mxu0 %v49
  %v85 = vpop.f32.mrf.mxu0
  %v86 = vadd.f32 0.0, %v85
  %v87 = vpop.f32.mrf.mxu0
  %v88 = vpop.f32.mrf.mxu0
  %v89 = vadd.f32 0.0, %v88
  %v90 = vpop.f32.mrf.mxu0
  %91 = vdwg.mxu0
  %v92 = vadd.f32 %v22, %v86
  %v93 = vadd.f32 %v23, %v89
  %vm94 = vcmask 523264
  %95 = vst.msk [vmem:[#allocation2] sm:$0xff] %vm94, %v92
  %96 = vst.msk [vmem:[#allocation2 + $0x8] sm:$0xff] %vm94, %v93
  // Predicated region
  $region18: #{transformer_forward.34} parent=0 // pred_check
    %p97 = pneg %p15
  $region19: #{transformer_forward.34} parent=0 // pred_check_branch
    %99 = sbr.rel (%p97) target = $region21
  $region20: #{transformer_forward.34} parent=0 // pred_region
    %v100 = vld [vmem:[#allocation2] sm:$0xff]
    %v101 = vld [vmem:[#allocation2 + $0x8] sm:$0xff]
    %v102 = vld [vmem:[%s2] sm:$0x1]
    %v104 = vlaneseq
    %v105 = vshrl.u32 %v104, 7
    %v106 = vsub.s32 0, %v105
    %v107 = vrot.slane %v102, %v106
    %v109 = vadd.f32 %v100, %v107
    %v110 = vadd.f32 %v101, %v107
    %v111 = vmax.f32 %v109, 0.0
    %v112 = vmax.f32 %v110, 0.0
    %v113 = vpack.c.bf16 %v112, %v111
    %v115 = vunpack.c.l.b16 %v113
    %v116 = vunpack.c.h.b16 %v113
    %v117 = vpack.c.b16 %v115, %v115
    %v118 = vpack.c.b16 %v116, %v116
    %vm121 = vcmask 519168
    %122 = vst.msk [vmem:[%s3] sm:$0xf] %vm121, %v117
    %123 = vst.msk [vmem:[%s3 + $0x4] sm:$0xf] %vm121, %v118
  $region21: #{transformer_forward.34} parent=0 // pred_fallthru
    _
  // Predicated region
  $region22: #{transformer_forward.34} parent=0 // pred_check
    _
  $region23: #{transformer_forward.34} parent=0 // pred_check_branch
    %125 = sbr.rel (0) target = $region25
  $region24: #{transformer_forward.34} parent=0 // pred_region
    _
  $region25: #{transformer_forward.34} parent=0 // pred_fallthru
    _
  // Predicated region
  $region26: #{transformer_forward.34} parent=0 // pred_check
    _
  $region27: #{transformer_forward.34} parent=0 // pred_check_branch
    %127 = sbr.rel (0) target = $region29
  $region28: #{transformer_forward.34} parent=0 // pred_region
    _
  $region29: #{transformer_forward.34} parent=0 // pred_fallthru
    _

// kernel: transformer_forward.41
$region0: #{transformer_forward.41}
  #allocation0 [shape = 'u32[]', space=smem, size = 0x4, offset = 0x4, fixed_abs, tag = 'smem constant byte address 0x4 - core index']
  #allocation1 [shape = 'u32[144,128]{1,0:T(1,128)}', space=vmem, size = 0x12000, scoped, tag = 'internal scratch']
  %s0 = inlined_call_operand.vmem [shape: bf16[16,32], index: 0, kind: input, shape index: {}]
  %s1 = inlined_call_operand.vmem [shape: f32[1,32], index: 1, kind: input, shape index: {}]
  %s2 = inlined_call_operand.vmem [shape: f32[1,32], index: 2, kind: input, shape index: {}]
  %s3 = inlined_call_operand.vmem [shape: bf16[16,32], index: 3, kind: output, shape index: {}]
  %s4 = sld [smem:[#allocation0]]
  $region22: #{transformer_forward.41} parent=0
    _
  %s6 = ssub.s32 1, %s4
  %s7 = scalar_select 0, %s6, %s4
  // Predicated region
  $region2: #{transformer_forward.41} parent=0 // pred_check
    _
  $region3: #{transformer_forward.41} parent=0 // pred_check_branch
    %9 = sbr.rel (0) target = $region5
  $region4: #{transformer_forward.41} parent=0 // pred_region
    _
  $region5: #{transformer_forward.41} parent=0 // pred_fallthru
    _
  // Predicated region
  $region6: #{transformer_forward.41} parent=0 // pred_check
    _
  $region7: #{transformer_forward.41} parent=0 // pred_check_branch
    %11 = sbr.rel (0) target = $region9
  $region8: #{transformer_forward.41} parent=0 // pred_region
    _
  $region9: #{transformer_forward.41} parent=0 // pred_fallthru
    _
  // Predicated region
  $region10: #{transformer_forward.41} parent=0 // pred_check
    _
  $region11: #{transformer_forward.41} parent=0 // pred_check_branch
    %13 = sbr.rel (0) target = $region13
  $region12: #{transformer_forward.41} parent=0 // pred_region
    _
  $region13: #{transformer_forward.41} parent=0 // pred_fallthru
    _
  %v14 = vld [vmem:[%s0] sm:$0xf]
  %v15 = vld [vmem:[%s0 + $0x4] sm:$0xf]
  %v16 = vunpack.c.l.bf16 %v14
  %v17 = vunpack.c.l.bf16 %v15
  %vm18 = vcmask 261120
  %v19 = vsel %vm18, %v16, 0.0
  %20 = vadd.xlane.f32.xlu0 %v19
  %v21 = vpop.xlane.xlu0 %20
  %v22 = vsel %vm18, %v17, 0.0
  %23 = vadd.xlane.f32.xlu0 %v22
  %v24 = vpop.xlane.xlu0 %23
  %v25 = vrcp.pop 32.0
  %v26 = vmul.f32 %v21, %v25
  %v27 = vmul.f32 %v24, %v25
  %v28 = vsub.f32 %v16, %v26
  %v29 = vsub.f32 %v17, %v27
  %v30 = vmul.f32 %v28, %v28
  %v31 = vmul.f32 %v29, %v29
  %v32 = vsel %vm18, %v30, 0.0
  %33 = vadd.xlane.f32.xlu0 %v32
  %v34 = vpop.xlane.xlu0 %33
  %v35 = vsel %vm18, %v31, 0.0
  %36 = vadd.xlane.f32.xlu0 %v35
  %v37 = vpop.xlane.xlu0 %36
  %v38 = vmul.f32 %v34, %v25
  %v39 = vmul.f32 %v37, %v25
  %v40 = vadd.f32 %v38, 1e-05
  %v41 = vadd.f32 %v39, 1e-05
  %v42 = vrsqrt.pop %v40
  %v43 = vrsqrt.pop %v41
  %v44 = vmul.f32 %v28, %v42
  %v45 = vmul.f32 %v29, %v43
  %v46 = vld [vmem:[%s1] sm:$0x1]
  %v48 = vlaneseq
  %v49 = vshrl.u32 %v48, 7
  %v50 = vsub.s32 0, %v49
  %v51 = vrot.slane %v46, %v50
  %v53 = vmul.f32 %v44, %v51
  %v54 = vmul.f32 %v45, %v51
  %v55 = vld [vmem:[%s2] sm:$0x1]
  %v57 = vlaneseq
  %v58 = vshrl.u32 %v57, 7
  %v59 = vsub.s32 0, %v58
  %v60 = vrot.slane %v55, %v59
  %v62 = vadd.f32 %v53, %v60
  %v63 = vadd.f32 %v54, %v60
  %v64 = vpack.c.bf16 %v63, %v62
  %v66 = vunpack.c.l.b16 %v64
  %v67 = vunpack.c.h.b16 %v64
  %v68 = vpack.c.b16 %v66, %v66
  %v69 = vpack.c.b16 %v67, %v67
  %vm72 = vcmask 257024
  %73 = vst.msk [vmem:[%s3] sm:$0xf] %vm72, %v68
  %74 = vst.msk [vmem:[%s3 + $0x4] sm:$0xf] %vm72, %v69
  // Predicated region
  $region14: #{transformer_forward.41} parent=0 // pred_check
    _
  $region15: #{transformer_forward.41} parent=0 // pred_check_branch
    %76 = sbr.rel (0) target = $region17
  $region16: #{transformer_forward.41} parent=0 // pred_region
    _
  $region17: #{transformer_forward.41} parent=0 // pred_fallthru
    _
  // Predicated region
  $region18: #{transformer_forward.41} parent=0 // pred_check
    _
  $region19: #{transformer_forward.41} parent=0 // pred_check_branch
    %78 = sbr.rel (0) target = $region21
  $region20: #{transformer_forward.41} parent=0 // pred_region
    _
  $region21: #{transformer_forward.41} parent=0 // pred_fallthru
    _

// kernel: transformer_forward.35
$region0: #{transformer_forward.35}
  #allocation0 [shape = 'u32[]', space=smem, size = 0x4, offset = 0x4, fixed_abs, tag = 'smem constant byte address 0x4 - core index']
  #allocation1 [shape = 'u32[144,128]{1,0:T(1,128)}', space=vmem, size = 0x12000, scoped, tag = 'internal scratch']
  #allocation2 [shape = 'f32[16,32]{1,0:T(8,128)}', space=vmem, size = 0x2000, scoped, tag = 'scratch operand']
  %s0 = inlined_call_operand.vmem [shape: bf16[16,64], index: 0, kind: input, shape index: {}]
  %s1 = inlined_call_operand.vmem [shape: bf16[64,32], index: 1, kind: input, shape index: {}]
  %s2 = inlined_call_operand.vmem [shape: f32[1,32], index: 2, kind: input, shape index: {}]
  %s3 = inlined_call_operand.vmem [shape: bf16[16,32], index: 3, kind: input, shape index: {}]
  %s4 = inlined_call_operand.vmem [shape: f32[1,32], index: 4, kind: input, shape index: {}]
  %s5 = inlined_call_operand.vmem [shape: f32[1,32], index: 5, kind: input, shape index: {}]
  %s6 = inlined_call_operand.vmem [shape: bf16[16,32], index: 6, kind: output, shape index: {}]
  %s7 = sld [smem:[#allocation0]]
  $region42: #{transformer_forward.35} parent=0
    _
  %s9 = ssub.s32 1, %s7
  %s10 = scalar_select 0, %s9, %s7
  // Predicated region
  $region2: #{transformer_forward.35} parent=0 // pred_check
    _
  $region3: #{transformer_forward.35} parent=0 // pred_check_branch
    %12 = sbr.rel (0) target = $region5
  $region4: #{transformer_forward.35} parent=0 // pred_region
    _
  $region5: #{transformer_forward.35} parent=0 // pred_fallthru
    _
  // Predicated region
  $region6: #{transformer_forward.35} parent=0 // pred_check
    _
  $region7: #{transformer_forward.35} parent=0 // pred_check_branch
    %14 = sbr.rel (0) target = $region9
  $region8: #{transformer_forward.35} parent=0 // pred_region
    _
  $region9: #{transformer_forward.35} parent=0 // pred_fallthru
    _
  // Predicated region
  $region10: #{transformer_forward.35} parent=0 // pred_check
    _
  $region11: #{transformer_forward.35} parent=0 // pred_check_branch
    %16 = sbr.rel (0) target = $region13
  $region12: #{transformer_forward.35} parent=0 // pred_region
    _
  $region13: #{transformer_forward.35} parent=0 // pred_fallthru
    _
  // Predicated region
  $region14: #{transformer_forward.35} parent=0 // pred_check
    _
  $region15: #{transformer_forward.35} parent=0 // pred_check_branch
    %18 = sbr.rel (0) target = $region17
  $region16: #{transformer_forward.35} parent=0 // pred_region
    _
  $region17: #{transformer_forward.35} parent=0 // pred_fallthru
    _
  // Predicated region
  $region18: #{transformer_forward.35} parent=0 // pred_check
    _
  $region19: #{transformer_forward.35} parent=0 // pred_check_branch
    %20 = sbr.rel (0) target = $region21
  $region20: #{transformer_forward.35} parent=0 // pred_region
    _
  $region21: #{transformer_forward.35} parent=0 // pred_fallthru
    _
  // Predicated region
  $region22: #{transformer_forward.35} parent=0 // pred_check
    _
  $region23: #{transformer_forward.35} parent=0 // pred_check_branch
    %22 = sbr.rel (0) target = $region25
  $region24: #{transformer_forward.35} parent=0 // pred_region
    _
  $region25: #{transformer_forward.35} parent=0 // pred_fallthru
    _
  %p24 = scmp.eq.s32.totalorder 0, 0
  // Predicated region
  $region26: #{transformer_forward.35} parent=0 // pred_check
    %p25 = pneg %p24
  $region27: #{transformer_forward.35} parent=0 // pred_check_branch
    %27 = sbr.rel (%p25) target = $region29
  $region28: #{transformer_forward.35} parent=0 // pred_region
    %vm28 = vcmask 261120
    %29 = vst.msk [vmem:[#allocation2] sm:$0xff] %vm28, 0.0
    %30 = vst.msk [vmem:[#allocation2 + $0x8] sm:$0xff] %vm28, 0.0
  $region29: #{transformer_forward.35} parent=0 // pred_fallthru
    _
  %v31 = vld [vmem:[#allocation2] sm:$0xff]
  %v32 = vld [vmem:[#allocation2 + $0x8] sm:$0xff]
  %v33 = vld [vmem:[%s0] sm:$0xf]
  %v34 = vld [vmem:[%s0 + $0x4] sm:$0xf]
  %v35 = vld [vmem:[%s1] sm:$0xf]
  %v36 = vld [vmem:[%s1 + $0x4] sm:$0xf]
  %v37 = vld [vmem:[%s1 + $0x8] sm:$0xf]
  %v38 = vld [vmem:[%s1 + $0xc] sm:$0xf]
  %v39 = vld [vmem:[%s1 + $0x10] sm:$0xf]
  %v40 = vld [vmem:[%s1 + $0x14] sm:$0xf]
  %v41 = vld [vmem:[%s1 + $0x18] sm:$0xf]
  %v42 = vld [vmem:[%s1 + $0x1c] sm:$0xf]
  %v45 = vunpack.c.l.b16 %v33
  %v46 = vunpack.c.l.b16 %v34
  %v47 = vpack.c.b16 %v46, %v45
  %v56 = vunpack.c.l.b16 %v35
  %v57 = vunpack.c.l.b16 %v36
  %v58 = vunpack.c.l.b16 %v37
  %v59 = vunpack.c.l.b16 %v38
  %v60 = vunpack.c.l.b16 %v39
  %v61 = vunpack.c.l.b16 %v40
  %v62 = vunpack.c.l.b16 %v41
  %v63 = vunpack.c.l.b16 %v42
  %v64 = vpack.c.b16 %v57, %v56
  %v65 = vpack.c.b16 %v59, %v58
  %v66 = vpack.c.b16 %v61, %v60
  %v67 = vpack.c.b16 %v63, %v62
  %vm72 = vcmask 523264
  %v74 = vsel %vm72, %v47, 0
  %76 = vmatprep.subr.bf16.mxu0 0
  %77 = vmatpush1.bf16.msra.mxu0 0
  %78 = vmatprep.subr.bf16.mxu0 0
  %79 = vmatpush1.bf16.msra.mxu0 0
  %80 = vmatprep.subr.bf16.mxu0 0
  %81 = vmatpush1.bf16.msra.mxu0 0
  %82 = vmatprep.subr.bf16.mxu0 0
  %83 = vmatpush1.bf16.msra.mxu0 0
  %84 = vmatprep.subr.bf16.mxu0 0
  %85 = vmatpush1.bf16.msra.mxu0 %v67
  %86 = vmatprep.subr.bf16.mxu0 0
  %87 = vmatpush1.bf16.msra.mxu0 %v66
  %88 = vmatprep.subr.bf16.mxu0 0
  %89 = vmatpush1.bf16.msra.mxu0 %v65
  %90 = vmatprep.subr.bf16.mxu0 0
  %91 = vmatpush1.bf16.msra.mxu0 %v64
  %92 = vmatprep.subr.bf16.mxu0 0
  %93 = vmatpush2.bf16.msra.mxu0 0
  %94 = vmatprep.subr.bf16.mxu0 0
  %95 = vmatpush2.bf16.msra.mxu0 0
  %96 = vmatprep.subr.bf16.mxu0 0
  %97 = vmatpush2.bf16.msra.mxu0 0
  %98 = vmatprep.subr.bf16.mxu0 0
  %99 = vmatpush2.bf16.msra.mxu0 0
  %100 = vmatprep.subr.bf16.mxu0 0
  %101 = vmatpush2.bf16.msra.mxu0 0
  %102 = vmatprep.subr.bf16.mxu0 0
  %103 = vmatpush2.bf16.msra.mxu0 0
  %104 = vmatprep.subr.bf16.mxu0 0
  %105 = vmatpush2.bf16.msra.mxu0 0
  %106 = vmatprep.subr.bf16.mxu0 0
  %107 = vmatpush2.bf16.msra.mxu0 0
  %108 = vmatprep.mubr.bf16.mxu0 0
  %109 = vmatmul.mubr.bf16.gmra.mxu0 %v74
  %v110 = vpop.f32.mrf.mxu0
  %v111 = vadd.f32 0.0, %v110
  %v112 = vpop.f32.mrf.mxu0
  %v113 = vpop.f32.mrf.mxu0
  %v114 = vadd.f32 0.0, %v113
  %v115 = vpop.f32.mrf.mxu0
  %116 = vdwg.mxu0
  %v117 = vadd.f32 %v31, %v111
  %v118 = vadd.f32 %v32, %v114
  %vm119 = vcmask 261120
  %120 = vst.msk [vmem:[#allocation2] sm:$0xff] %vm119, %v117
  %121 = vst.msk [vmem:[#allocation2 + $0x8] sm:$0xff] %vm119, %v118
  // Predicated region
  $region30: #{transformer_forward.35} parent=0 // pred_check
    %p122 = pneg %p24
  $region31: #{transformer_forward.35} parent=0 // pred_check_branch
    %124 = sbr.rel (%p122) target = $region33
  $region32: #{transformer_forward.35} parent=0 // pred_region
    %v125 = vld [vmem:[#allocation2] sm:$0xff]
    %v126 = vld [vmem:[#allocation2 + $0x8] sm:$0xff]
    %v127 = vld [vmem:[%s2] sm:$0x1]
    %v129 = vlaneseq
    %v130 = vshrl.u32 %v129, 7
    %v131 = vsub.s32 0, %v130
    %v132 = vrot.slane %v127, %v131
    %v134 = vadd.f32 %v125, %v132
    %v135 = vadd.f32 %v126, %v132
    %v136 = vld [vmem:[%s3] sm:$0xf]
    %v137 = vld [vmem:[%s3 + $0x4] sm:$0xf]
    %v138 = vunpack.c.l.bf16 %v136
    %v139 = vunpack.c.l.bf16 %v137
    %v140 = vadd.f32 %v134, %v138
    %v141 = vadd.f32 %v135, %v139
    %v142 = vsel %vm119, %v140, 0.0
    %143 = vadd.xlane.f32.xlu0 %v142
    %v144 = vpop.xlane.xlu0 %143
    %v145 = vsel %vm119, %v141, 0.0
    %146 = vadd.xlane.f32.xlu0 %v145
    %v147 = vpop.xlane.xlu0 %146
    %v148 = vrcp.pop 32.0
    %v149 = vmul.f32 %v144, %v148
    %v150 = vmul.f32 %v147, %v148
    %v151 = vsub.f32 %v140, %v149
    %v152 = vsub.f32 %v141, %v150
    %v153 = vmul.f32 %v151, %v151
    %v154 = vmul.f32 %v152, %v152
    %v155 = vsel %vm119, %v153, 0.0
    %156 = vadd.xlane.f32.xlu0 %v155
    %v157 = vpop.xlane.xlu0 %156
    %v158 = vsel %vm119, %v154, 0.0
    %159 = vadd.xlane.f32.xlu0 %v158
    %v160 = vpop.xlane.xlu0 %159
    %v161 = vmul.f32 %v157, %v148
    %v162 = vmul.f32 %v160, %v148
    %v163 = vadd.f32 %v161, 1e-05
    %v164 = vadd.f32 %v162, 1e-05
    %v165 = vrsqrt.pop %v163
    %v166 = vrsqrt.pop %v164
    %v167 = vmul.f32 %v151, %v165
    %v168 = vmul.f32 %v152, %v166
    %v169 = vld [vmem:[%s4] sm:$0x1]
    %v171 = vlaneseq
    %v172 = vshrl.u32 %v171, 7
    %v173 = vsub.s32 0, %v172
    %v174 = vrot.slane %v169, %v173
    %v176 = vmul.f32 %v167, %v174
    %v177 = vmul.f32 %v168, %v174
    %v178 = vld [vmem:[%s5] sm:$0x1]
    %v180 = vlaneseq
    %v181 = vshrl.u32 %v180, 7
    %v182 = vsub.s32 0, %v181
    %v183 = vrot.slane %v178, %v182
    %v185 = vadd.f32 %v176, %v183
    %v186 = vadd.f32 %v177, %v183
    %v187 = vpack.c.bf16 %v186, %v185
    %v189 = vunpack.c.l.b16 %v187
    %v190 = vunpack.c.h.b16 %v187
    %v191 = vpack.c.b16 %v189, %v189
    %v192 = vpack.c.b16 %v190, %v190
    %vm195 = vcmask 257024
    %196 = vst.msk [vmem:[%s6] sm:$0xf] %vm195, %v191
    %197 = vst.msk [vmem:[%s6 + $0x4] sm:$0xf] %vm195, %v192
  $region33: #{transformer_forward.35} parent=0 // pred_fallthru
    _
  // Predicated region
  $region34: #{transformer_forward.35} parent=0 // pred_check
    _
  $region35: #{transformer_forward.35} parent=0 // pred_check_branch
    %199 = sbr.rel (0) target = $region37
  $region36: #{transformer_forward.35} parent=0 // pred_region
    _
  $region37: #{transformer_forward.35} parent=0 // pred_fallthru
    _
  // Predicated region
  $region38: #{transformer_forward.35} parent=0 // pred_check
    _
  $region39: #{transformer_forward.35} parent=0 // pred_check_branch
    %201 = sbr.rel (0) target = $region41
  $region40: #{transformer_forward.35} parent=0 // pred_region
    _
  $region41: #{transformer_forward.35} parent=0 // pred_fallthru
    _

// kernel: transformer_forward.32
$region0: #{transformer_forward.32}
  #allocation0 [shape = 'u32[]', space=smem, size = 0x4, offset = 0x4, fixed_abs, tag = 'smem constant byte address 0x4 - core index']
  #allocation1 [shape = 'u32[144,128]{1,0:T(1,128)}', space=vmem, size = 0x12000, scoped, tag = 'internal scratch']
  #allocation2 [shape = 'f32[8,1]{1,0:T(8,128)}', space=vmem, size = 0x1000, scoped, tag = 'scratch operand']
  #allocation3 [shape = 'f32[8,1]{1,0:T(8,128)}', space=vmem, size = 0x1000, scoped, tag = 'scratch operand']
  #allocation4 [shape = 'f32[8,8]{1,0:T(8,128)}', space=vmem, size = 0x1000, scoped, tag = 'scratch operand']
  %s0 = inlined_call_operand.vmem [shape: bf16[8,8,8], index: 0, kind: input, shape index: {}]
  %s1 = inlined_call_operand.vmem [shape: bf16[8,8,8], index: 1, kind: input, shape index: {}]
  %s2 = inlined_call_operand.vmem [shape: bf16[8,8,8], index: 2, kind: input, shape index: {}]
  %s3 = inlined_call_operand.vmem [shape: bf16[8,8,8], index: 3, kind: output, shape index: {}]
  %s4 = sld [smem:[#allocation0]]
  $region53: #{transformer_forward.32} parent=0
    _
  %s6 = ssub.s32 1, %s4
  %s7 = scalar_select 0, %s6, %s4
  loop: start=0, step=1, limit=10
  $region2: #{transformer_forward.32} parent=0 // loop_pre_header
    _
  $region3: #{transformer_forward.32} parent=0 // loop_header
    %s9 = sphi 0, %s13
    %p10 = scmp.ge.s32.totalorder %s9, 10
    %s16 = sphi 0, %s35
    %s17 = sphi 0, %s31
    %s18 = sphi 0, %s27
    %s19 = sphi 0, %s16
    %s20 = sphi 0, %s17
    %s21 = sphi 0, %s18
    %s22 = sphi 0, %s19
    %s23 = sphi 0, %s20
    %s24 = sphi 0, %s21
    %s40 = sphi 0, %s42
    %s43 = sphi 0, %s40
    %s44 = sphi 0, %s43
    %s60 = sphi 0, %s44
    %s68 = sphi 0, %s70
    %s71 = sphi 0, %s68
    %s72 = sphi 0, %s71
    %s88 = sphi 0, %s72
    %s96 = sphi 0, %s98
    %s99 = sphi 0, %s96
    %s100 = sphi 0, %s99
    %s116 = sphi 0, %s100
    %s124 = sphi 0, %s126
    %s127 = sphi 0, %s124
    %s128 = sphi 0, %s127
    %s144 = sphi 0, %s128
  $region4: #{transformer_forward.32} parent=0 // loop_header_branch
    %12 = sbr.rel (%p10) target = $region8
  $region5: #{transformer_forward.32} parent=0 // loop_body
    %s14 = ssub.s32 %s9, 1
    %s15 = ssub.s32 %s9, 2
    %s25 = sadd.s32 1, %s18
    %p26 = scmp.ge.s32.totalorder %s25, 1
    %s27 = scalar_select %p26, 0, %s25
    %s28 = sadd.s32 1, %s17
    %s29 = scalar_select %p26, %s28, %s17
    %p30 = scmp.ge.s32.totalorder %s29, 1
    %s31 = scalar_select %p30, 0, %s29
    %s32 = sadd.s32 1, %s16
    %s33 = scalar_select %p30, %s32, %s16
    %p34 = scmp.ge.s32.totalorder %s33, 8
    %s35 = scalar_select %p34, 0, %s33
    %s36 = ssub.s32 %s16, %s35
    %s37 = ssub.s32 %s17, %s31
    %s38 = sor.u32 %s36, %s37
    %p39 = scmp.eq.s32.totalorder %s38, 0
    %s41 = sadd.s32 %s40, 1
    %s42 = scalar_select %p39, %s40, %s41
    %p45 = pneg %p39
    %p46 = scmp.eq.s32.totalorder %s9, 7
    %p47 = por %p45, %p46
    %p48 = scmp.ne.s32.totalorder %s40, %s43
    %p49 = scmp.eq.s32.totalorder %s9, 0
    %p50 = por %p48, %p49
    %p51 = scmp.ne.s32.totalorder %s40, %s43
    %p52 = scmp.eq.s32.totalorder %s14, 7
    %p53 = por %p51, %p52
    %p54 = scmp.ne.s32.totalorder %s43, %s44
    %p55 = scmp.eq.s32.totalorder %s14, 0
    %p56 = por %p54, %p55
    %p57 = scmp.ne.s32.totalorder %s43, %s44
    %p58 = scmp.eq.s32.totalorder %s15, 7
    %p59 = por %p57, %p58
    %p61 = scmp.ne.s32.totalorder %s44, %s60
    %p62 = scmp.eq.s32.totalorder %s15, 0
    %p63 = por %p61, %p62
    %s64 = ssub.s32 %s16, %s35
    %s65 = ssub.s32 %s18, %s27
    %s66 = sor.u32 %s64, %s65
    %p67 = scmp.eq.s32.totalorder %s66, 0
    %s69 = sadd.s32 %s68, 1
    %s70 = scalar_select %p67, %s68, %s69
    %p73 = pneg %p67
    %p74 = scmp.eq.s32.totalorder %s9, 7
    %p75 = por %p73, %p74
    %p76 = scmp.ne.s32.totalorder %s68, %s71
    %p77 = scmp.eq.s32.totalorder %s9, 0
    %p78 = por %p76, %p77
    %p79 = scmp.ne.s32.totalorder %s68, %s71
    %p80 = scmp.eq.s32.totalorder %s14, 7
    %p81 = por %p79, %p80
    %p82 = scmp.ne.s32.totalorder %s71, %s72
    %p83 = scmp.eq.s32.totalorder %s14, 0
    %p84 = por %p82, %p83
    %p85 = scmp.ne.s32.totalorder %s71, %s72
    %p86 = scmp.eq.s32.totalorder %s15, 7
    %p87 = por %p85, %p86
    %p89 = scmp.ne.s32.totalorder %s72, %s88
    %p90 = scmp.eq.s32.totalorder %s15, 0
    %p91 = por %p89, %p90
    %s92 = ssub.s32 %s16, %s35
    %s93 = ssub.s32 %s18, %s27
    %s94 = sor.u32 %s92, %s93
    %p95 = scmp.eq.s32.totalorder %s94, 0
    %s97 = sadd.s32 %s96, 1
    %s98 = scalar_select %p95, %s96, %s97
    %p101 = pneg %p95
    %p102 = scmp.eq.s32.totalorder %s9, 7
    %p103 = por %p101, %p102
    %p104 = scmp.ne.s32.totalorder %s96, %s99
    %p105 = scmp.eq.s32.totalorder %s9, 0
    %p106 = por %p104, %p105
    %p107 = scmp.ne.s32.totalorder %s96, %s99
    %p108 = scmp.eq.s32.totalorder %s14, 7
    %p109 = por %p107, %p108
    %p110 = scmp.ne.s32.totalorder %s99, %s100
    %p111 = scmp.eq.s32.totalorder %s14, 0
    %p112 = por %p110, %p111
    %p113 = scmp.ne.s32.totalorder %s99, %s100
    %p114 = scmp.eq.s32.totalorder %s15, 7
    %p115 = por %p113, %p114
    %p117 = scmp.ne.s32.totalorder %s100, %s116
    %p118 = scmp.eq.s32.totalorder %s15, 0
    %p119 = por %p117, %p118
    %s120 = ssub.s32 %s16, %s35
    %s121 = ssub.s32 %s17, %s31
    %s122 = sor.u32 %s120, %s121
    %p123 = scmp.eq.s32.totalorder %s122, 0
    %s125 = sadd.s32 %s124, 1
    %s126 = scalar_select %p123, %s124, %s125
    %p129 = pneg %p123
    %p130 = scmp.eq.s32.totalorder %s9, 7
    %p131 = por %p129, %p130
    %p132 = scmp.ne.s32.totalorder %s124, %s127
    %p133 = scmp.eq.s32.totalorder %s9, 0
    %p134 = por %p132, %p133
    %p135 = scmp.ne.s32.totalorder %s124, %s127
    %p136 = scmp.eq.s32.totalorder %s14, 7
    %p137 = por %p135, %p136
    %p138 = scmp.ne.s32.totalorder %s127, %s128
    %p139 = scmp.eq.s32.totalorder %s14, 0
    %p140 = por %p138, %p139
    %p141 = scmp.ne.s32.totalorder %s127, %s128
    %p142 = scmp.eq.s32.totalorder %s15, 7
    %p143 = por %p141, %p142
    %p145 = scmp.ne.s32.totalorder %s128, %s144
    %p146 = scmp.eq.s32.totalorder %s15, 0
    %p147 = por %p145, %p146
    %p148 = scmp.le.s32.totalorder 1, %s9
    %p149 = scmp.lt.s32.totalorder %s9, 9
    %p150 = pnand %p148, %p149
    %p151 = pneg %p150
    // Predicated region
    $region9: #{transformer_forward.32} parent=5 // pred_check
      _
    $region10: #{transformer_forward.32} parent=5 // pred_check_branch
      %153 = sbr.rel (%p150) target = $region12
    $region11: #{transformer_forward.32} parent=5 // pred_region
      %s154 = ssub.s32 %s9, 1
    $region12: #{transformer_forward.32} parent=5 // pred_fallthru
      _
    %p155 = scmp.lt.s32.totalorder %s9, 8
    // Predicated region
    $region13: #{transformer_forward.32} parent=5 // pred_check
      %p156 = pneg %p155
    $region14: #{transformer_forward.32} parent=5 // pred_check_branch
      %158 = sbr.rel (%p156) target = $region16
    $region15: #{transformer_forward.32} parent=5 // pred_region
      // Predicated region
      $region17: #{transformer_forward.32} parent=15 // pred_check
        %p159 = pneg %p50
      $region18: #{transformer_forward.32} parent=15 // pred_check_branch
        %161 = sbr.rel (%p159) target = $region20
      $region19: #{transformer_forward.32} parent=15 // pred_region
        %p162 = scmp.lt.s32.totalorder %s16, 7
        %s163 = scalar_select %p162, %s16, 7
        %p164 = scmp.lt.s32.totalorder %s17, 0
        %s165 = scalar_select %p164, %s17, 0
        %s166 = sadd.s32 %s165, %s163
        %s167 = smul.addr %s166, 4
        %s168 = scalar_lea.vmem %s0, %s167
      $region20: #{transformer_forward.32} parent=15 // pred_fallthru
        _
      // Predicated region
      $region21: #{transformer_forward.32} parent=15 // pred_check
        %p169 = pneg %p78
      $region22: #{transformer_forward.32} parent=15 // pred_check_branch
        %171 = sbr.rel (%p169) target = $region24
      $region23: #{transformer_forward.32} parent=15 // pred_region
        %p172 = scmp.lt.s32.totalorder %s16, 7
        %s173 = scalar_select %p172, %s16, 7
        %p174 = scmp.lt.s32.totalorder %s18, 0
        %s175 = scalar_select %p174, %s18, 0
        %s176 = sadd.s32 %s175, %s173
        %s177 = smul.addr %s176, 4
        %s178 = scalar_lea.vmem %s1, %s177
      $region24: #{transformer_forward.32} parent=15 // pred_fallthru
        _
      // Predicated region
      $region25: #{transformer_forward.32} parent=15 // pred_check
        %p179 = pneg %p106
      $region26: #{transformer_forward.32} parent=15 // pred_check_branch
        %181 = sbr.rel (%p179) target = $region28
      $region27: #{transformer_forward.32} parent=15 // pred_region
        %p182 = scmp.lt.s32.totalorder %s16, 7
        %s183 = scalar_select %p182, %s16, 7
        %p184 = scmp.lt.s32.totalorder %s18, 0
        %s185 = scalar_select %p184, %s18, 0
        %s186 = sadd.s32 %s185, %s183
        %s187 = smul.addr %s186, 4
        %s188 = scalar_lea.vmem %s2, %s187
      $region28: #{transformer_forward.32} parent=15 // pred_fallthru
        _
    $region16: #{transformer_forward.32} parent=5 // pred_fallthru
      _
    %p189 = scmp.le.s32.totalorder 1, %s9
    %p190 = scmp.lt.s32.totalorder %s9, 9
    %p191 = pnand %p189, %p190
    %p192 = pneg %p191
    // Predicated region
    $region29: #{transformer_forward.32} parent=5 // pred_check
      _
    $region30: #{transformer_forward.32} parent=5 // pred_check_branch
      %194 = sbr.rel (%p191) target = $region32
    $region31: #{transformer_forward.32} parent=5 // pred_region
      %s195 = ssub.s32 %s9, 1
      %p196 = scmp.lt.s32.totalorder %s19, 7
      %s197 = scalar_select %p196, %s19, 7
      %p198 = scmp.lt.s32.totalorder %s20, 0
      %s199 = scalar_select %p198, %s20, 0
      %s200 = sadd.s32 %s199, %s197
      %s201 = smul.addr %s200, 4
      %s202 = scalar_lea.vmem %s0, %s201
      %p203 = pneg %p56
      %p204 = pneg %p53
      %p205 = scmp.lt.s32.totalorder %s19, 7
      %s206 = scalar_select %p205, %s19, 7
      %p207 = scmp.lt.s32.totalorder %s21, 0
      %s208 = scalar_select %p207, %s21, 0
      %s209 = sadd.s32 %s208, %s206
      %s210 = smul.addr %s209, 4
      %s211 = scalar_lea.vmem %s1, %s210
      %p212 = pneg %p84
      %p213 = pneg %p81
      %p214 = scmp.lt.s32.totalorder %s19, 7
      %s215 = scalar_select %p214, %s19, 7
      %p216 = scmp.lt.s32.totalorder %s21, 0
      %s217 = scalar_select %p216, %s21, 0
      %s218 = sadd.s32 %s217, %s215
      %s219 = smul.addr %s218, 4
      %s220 = scalar_lea.vmem %s2, %s219
      %p221 = pneg %p112
      %p222 = pneg %p109
      %p223 = pneg %p140
      %p224 = pneg %p137
      %p225 = scmp.lt.s32.totalorder %s19, 7
      %s226 = scalar_select %p225, %s19, 7
      %p227 = scmp.lt.s32.totalorder %s20, 0
      %s228 = scalar_select %p227, %s20, 0
      %s229 = sadd.s32 %s228, %s226
      %s230 = smul.addr %s229, 4
      %s231 = scalar_lea.vmem %s3, %s230
      %p232 = scmp.lt.s32.totalorder %s19, 7
      %s233 = scalar_select %p232, %s19, 7
      %p234 = scmp.lt.s32.totalorder %s20, 0
      %s235 = scalar_select %p234, %s20, 0
      %s236 = sadd.s32 %s235, %s233
      %s237 = smul.addr %s236, 4
      %s238 = scalar_lea.vmem %s0, %s237
      %p239 = scmp.lt.s32.totalorder %s19, 7
      %s240 = scalar_select %p239, %s19, 7
      %p241 = scmp.lt.s32.totalorder %s21, 0
      %s242 = scalar_select %p241, %s21, 0
      %s243 = sadd.s32 %s242, %s240
      %s244 = smul.addr %s243, 4
      %s245 = scalar_lea.vmem %s1, %s244
      %p246 = scmp.lt.s32.totalorder %s19, 7
      %s247 = scalar_select %p246, %s19, 7
      %p248 = scmp.lt.s32.totalorder %s21, 0
      %s249 = scalar_select %p248, %s21, 0
      %s250 = sadd.s32 %s249, %s247
      %s251 = smul.addr %s250, 4
      %s252 = scalar_lea.vmem %s2, %s251
      %p253 = scmp.lt.s32.totalorder %s19, 7
      %s254 = scalar_select %p253, %s19, 7
      %p255 = scmp.lt.s32.totalorder %s20, 0
      %s256 = scalar_select %p255, %s20, 0
      %s257 = sadd.s32 %s256, %s254
      %s258 = smul.addr %s257, 4
      %s259 = scalar_lea.vmem %s3, %s258
      %p261 = scmp.eq.s32.totalorder %s21, 0
      // Predicated region
      $region33: #{transformer_forward.32} parent=31 // pred_check
        %p262 = pneg %p261
      $region34: #{transformer_forward.32} parent=31 // pred_check_branch
        %264 = sbr.rel (%p262) target = $region36
      $region35: #{transformer_forward.32} parent=31 // pred_region
        %vm265 = vcmask 7168
        %266 = vst.msk [vmem:[#allocation2] sm:$0xff] %vm265, -1e+30
        %267 = vst.msk [vmem:[#allocation3] sm:$0xff] %vm265, 0.0
        %vm268 = vcmask 64512
        %269 = vst.msk [vmem:[#allocation4] sm:$0xff] %vm268, 0.0
      $region36: #{transformer_forward.32} parent=31 // pred_fallthru
        _
      %v270 = vld [vmem:[%s238] sm:$0xf]
      %v271 = vld [vmem:[%s245] sm:$0xf]
      %v272 = vld [vmem:[%s252] sm:$0xf]
      %vm273 = vcmask 64512
      %v275 = vsel %vm273, %v270, 0
      %v278 = vsel %vm273, %v271, 0
      %280 = vmatprep.subr.bf16.mxu0 0
      %281 = vmatpush1.bf16.xpose.msra.mxu0 0
      %282 = vmatprep.subr.bf16.mxu0 0
      %283 = vmatpush1.bf16.xpose.msra.mxu0 0
      %284 = vmatprep.subr.bf16.mxu0 0
      %285 = vmatpush1.bf16.xpose.msra.mxu0 0
      %286 = vmatprep.subr.bf16.mxu0 0
      %287 = vmatpush1.bf16.xpose.msra.mxu0 0
      %288 = vmatprep.subr.bf16.mxu0 0
      %289 = vmatpush1.bf16.xpose.msra.mxu0 0
      %290 = vmatprep.subr.bf16.mxu0 0
      %291 = vmatpush1.bf16.xpose.msra.mxu0 0
      %292 = vmatprep.subr.bf16.mxu0 0
      %293 = vmatpush1.bf16.xpose.msra.mxu0 0
      %294 = vmatprep.subr.bf16.mxu0 0
      %295 = vmatpush1.bf16.xpose.msra.mxu0 %v278
      %296 = vmatprep.subr.bf16.mxu0 0
      %297 = vmatpush2.bf16.xpose.msra.mxu0 0
      %298 = vmatprep.subr.bf16.mxu0 0
      %299 = vmatpush2.bf16.xpose.msra.mxu0 0
      %300 = vmatprep.subr.bf16.mxu0 0
      %301 = vmatpush2.bf16.xpose.msra.mxu0 0
      %302 = vmatprep.subr.bf16.mxu0 0
      %303 = vmatpush2.bf16.xpose.msra.mxu0 0
      %304 = vmatprep.subr.bf16.mxu0 0
      %305 = vmatpush2.bf16.xpose.msra.mxu0 0
      %306 = vmatprep.subr.bf16.mxu0 0
      %307 = vmatpush2.bf16.xpose.msra.mxu0 0
      %308 = vmatprep.subr.bf16.mxu0 0
      %309 = vmatpush2.bf16.xpose.msra.mxu0 0
      %310 = vmatprep.subr.bf16.mxu0 0
      %311 = vmatpush2.bf16.xpose.msra.mxu0 0
      %312 = vmatprep.mubr.bf16.mxu0 0
      %313 = vmatmul.mubr.bf16.gmra.mxu0 %v275
      %v314 = vpop.f32.mrf.mxu0
      %v315 = vadd.f32 0.0, %v314
      %v316 = vpop.f32.mrf.mxu0
      %v317 = vpop.f32.mrf.mxu0
      %v318 = vpop.f32.mrf.mxu0
      %319 = vdwg.mxu0
      %v320 = vld [vmem:[#allocation2] sm:$0xff]
      %v321 = vsel %vm273, %v315, -inf
      %322 = vmax.xlane.f32.xlu0 %v321
      %v323 = vpop.xlane.xlu0 %322
      %v324 = vmax.f32 %v320, %v323
      %v325 = vsub.f32 %v320, %v324
      %v326 = vmul.f32 %v325, 1.442695
      %v327 = vpow.pop %v326
      %329 = vset.pattern.permute.xlu0 0
      %330 = vperm.xlu0 %329, %v324
      %v331 = vpop.permute.xlu0 %330
      %v333 = vsub.f32 %v315, %v331
      %v334 = vmul.f32 %v333, 1.442695
      %v335 = vpow.pop %v334
      %v336 = vld [vmem:[#allocation3] sm:$0xff]
      %v337 = vmul.f32 %v327, %v336
      %v338 = vsel %vm273, %v335, 0.0
      %339 = vadd.xlane.f32.xlu0 %v338
      %v340 = vpop.xlane.xlu0 %339
      %v341 = vadd.f32 %v337, %v340
      %vm342 = vcmask 7168
      %343 = vst.msk [vmem:[#allocation3] sm:$0xff] %vm342, %v341
      %v344 = vld [vmem:[#allocation4] sm:$0xff]
      %346 = vset.pattern.permute.xlu0 0
      %347 = vperm.xlu0 %346, %v327
      %v348 = vpop.permute.xlu0 %347
      %v350 = vmul.f32 %v348, %v344
      %v351 = vpack.c.bf16 %v335, %v335
      %v353 = vsel %vm273, %v351, 0
      %vm355 = vcmask 1043456
      %v357 = vsel %vm355, %v272, 0
      %359 = vmatprep.subr.bf16.mxu0 0
      %360 = vmatpush1.bf16.msra.mxu0 0
      %361 = vmatprep.subr.bf16.mxu0 0
      %362 = vmatpush1.bf16.msra.mxu0 0
      %363 = vmatprep.subr.bf16.mxu0 0
      %364 = vmatpush1.bf16.msra.mxu0 0
      %365 = vmatprep.subr.bf16.mxu0 0
      %366 = vmatpush1.bf16.msra.mxu0 0
      %367 = vmatprep.subr.bf16.mxu0 0
      %368 = vmatpush1.bf16.msra.mxu0 0
      %369 = vmatprep.subr.bf16.mxu0 0
      %370 = vmatpush1.bf16.msra.mxu0 0
      %371 = vmatprep.subr.bf16.mxu0 0
      %372 = vmatpush1.bf16.msra.mxu0 0
      %373 = vmatprep.subr.bf16.mxu0 0
      %374 = vmatpush1.bf16.msra.mxu0 %v357
      %375 = vmatprep.subr.bf16.mxu0 0
      %376 = vmatpush2.bf16.msra.mxu0 0
      %377 = vmatprep.subr.bf16.mxu0 0
      %378 = vmatpush2.bf16.msra.mxu0 0
      %379 = vmatprep.subr.bf16.mxu0 0
      %380 = vmatpush2.bf16.msra.mxu0 0
      %381 = vmatprep.subr.bf16.mxu0 0
      %382 = vmatpush2.bf16.msra.mxu0 0
      %383 = vmatprep.subr.bf16.mxu0 0
      %384 = vmatpush2.bf16.msra.mxu0 0
      %385 = vmatprep.subr.bf16.mxu0 0
      %386 = vmatpush2.bf16.msra.mxu0 0
      %387 = vmatprep.subr.bf16.mxu0 0
      %388 = vmatpush2.bf16.msra.mxu0 0
      %389 = vmatprep.subr.bf16.mxu0 0
      %390 = vmatpush2.bf16.msra.mxu0 0
      %391 = vmatprep.mubr.bf16.mxu0 0
      %392 = vmatmul.mubr.bf16.gmra.mxu0 %v353
      %v393 = vpop.f32.mrf.mxu0
      %v394 = vadd.f32 0.0, %v393
      %v395 = vpop.f32.mrf.mxu0
      %v396 = vpop.f32.mrf.mxu0
      %v397 = vpop.f32.mrf.mxu0
      %398 = vdwg.mxu0
      %v399 = vadd.f32 %v350, %v394
      %400 = vst.msk [vmem:[#allocation4] sm:$0xff] %vm273, %v399
      %401 = vst.msk [vmem:[#allocation2] sm:$0xff] %vm342, %v324
      // Predicated region
      $region37: #{transformer_forward.32} parent=31 // pred_check
        %p402 = pneg %p261
      $region38: #{transformer_forward.32} parent=31 // pred_check_branch
        %404 = sbr.rel (%p402) target = $region40
      $region39: #{transformer_forward.32} parent=31 // pred_region
        %v405 = vld [vmem:[#allocation3] sm:$0xff]
        %v406 = vrcp.pop %v405
        %v407 = vld [vmem:[#allocation4] sm:$0xff]
        %409 = vset.pattern.permute.xlu0 0
        %410 = vperm.xlu0 %409, %v406
        %v411 = vpop.permute.xlu0 %410
        %v413 = vmul.f32 %v407, %v411
        %v414 = vpack.c.bf16 %v413, %v413
        %vm415 = vcmask 60416
        %416 = vst.msk [vmem:[%s259] sm:$0xf] %vm415, %v414
      $region40: #{transformer_forward.32} parent=31 // pred_fallthru
        _
      %p417 = scmp.lt.s32.totalorder %s19, 7
      %s418 = scalar_select %p417, %s19, 7
      %p419 = scmp.lt.s32.totalorder %s20, 0
      %s420 = scalar_select %p419, %s20, 0
      %s421 = sadd.s32 %s420, %s418
      %s422 = smul.addr %s421, 4
      %s423 = scalar_lea.vmem %s3, %s422
      // Predicated region
      $region41: #{transformer_forward.32} parent=31 // pred_check
        %p424 = pneg %p137
      $region42: #{transformer_forward.32} parent=31 // pred_check_branch
        %426 = sbr.rel (%p424) target = $region44
      $region43: #{transformer_forward.32} parent=31 // pred_region
        _
      $region44: #{transformer_forward.32} parent=31 // pred_fallthru
        _
    $region32: #{transformer_forward.32} parent=5 // pred_fallthru
      _
    %p427 = scmp.le.s32.totalorder 2, %s9
    // Predicated region
    $region45: #{transformer_forward.32} parent=5 // pred_check
      %p428 = pneg %p427
    $region46: #{transformer_forward.32} parent=5 // pred_check_branch
      %430 = sbr.rel (%p428) target = $region48
    $region47: #{transformer_forward.32} parent=5 // pred_region
      %s431 = ssub.s32 %s9, 2
      // Predicated region
      $region49: #{transformer_forward.32} parent=47 // pred_check
        %p432 = pneg %p143
      $region50: #{transformer_forward.32} parent=47 // pred_check_branch
        %434 = sbr.rel (%p432) target = $region52
      $region51: #{transformer_forward.32} parent=47 // pred_region
        %p435 = scmp.lt.s32.totalorder %s22, 7
        %s436 = scalar_select %p435, %s22, 7
        %p437 = scmp.lt.s32.totalorder %s23, 0
        %s438 = scalar_select %p437, %s23, 0
        %s439 = sadd.s32 %s438, %s436
        %s440 = smul.addr %s439, 4
        %s441 = scalar_lea.vmem %s3, %s440
      $region52: #{transformer_forward.32} parent=47 // pred_fallthru
        _
    $region48: #{transformer_forward.32} parent=5 // pred_fallthru
      _
  $region6: #{transformer_forward.32} parent=0 // loop_footer
    %s13 = sadd.s32 1, %s9
  $region7: #{transformer_forward.32} parent=0 // loop_footer_branch
    %8 = sbr.rel target = $region3
  $region8: #{transformer_forward.32} parent=0 // loop_exit
    _

// kernel: transformer_forward.46
$region0: #{transformer_forward.46}
  #allocation0 [shape = 'u32[]', space=smem, size = 0x4, offset = 0x4, fixed_abs, tag = 'smem constant byte address 0x4 - core index']
  #allocation1 [shape = 'u32[144,128]{1,0:T(1,128)}', space=vmem, size = 0x12000, scoped, tag = 'internal scratch']
  #allocation2 [shape = 'f32[16,64]{1,0:T(8,128)}', space=vmem, size = 0x2000, scoped, tag = 'scratch operand']
  %s0 = inlined_call_operand.vmem [shape: bf16[16,32], index: 0, kind: input, shape index: {}]
  %s1 = inlined_call_operand.vmem [shape: bf16[32,64], index: 1, kind: input, shape index: {}]
  %s2 = inlined_call_operand.vmem [shape: f32[1,64], index: 2, kind: input, shape index: {}]
  %s3 = inlined_call_operand.vmem [shape: bf16[16,64], index: 3, kind: output, shape index: {}]
  %s4 = sld [smem:[#allocation0]]
  $region30: #{transformer_forward.46} parent=0
    _
  %s6 = ssub.s32 1, %s4
  %s7 = scalar_select 0, %s6, %s4
  // Predicated region
  $region2: #{transformer_forward.46} parent=0 // pred_check
    _
  $region3: #{transformer_forward.46} parent=0 // pred_check_branch
    %9 = sbr.rel (0) target = $region5
  $region4: #{transformer_forward.46} parent=0 // pred_region
    _
  $region5: #{transformer_forward.46} parent=0 // pred_fallthru
    _
  // Predicated region
  $region6: #{transformer_forward.46} parent=0 // pred_check
    _
  $region7: #{transformer_forward.46} parent=0 // pred_check_branch
    %11 = sbr.rel (0) target = $region9
  $region8: #{transformer_forward.46} parent=0 // pred_region
    _
  $region9: #{transformer_forward.46} parent=0 // pred_fallthru
    _
  // Predicated region
  $region10: #{transformer_forward.46} parent=0 // pred_check
    _
  $region11: #{transformer_forward.46} parent=0 // pred_check_branch
    %13 = sbr.rel (0) target = $region13
  $region12: #{transformer_forward.46} parent=0 // pred_region
    _
  $region13: #{transformer_forward.46} parent=0 // pred_fallthru
    _
  %p15 = scmp.eq.s32.totalorder 0, 0
  // Predicated region
  $region14: #{transformer_forward.46} parent=0 // pred_check
    %p16 = pneg %p15
  $region15: #{transformer_forward.46} parent=0 // pred_check_branch
    %18 = sbr.rel (%p16) target = $region17
  $region16: #{transformer_forward.46} parent=0 // pred_region
    %vm19 = vcmask 523264
    %20 = vst.msk [vmem:[#allocation2] sm:$0xff] %vm19, 0.0
    %21 = vst.msk [vmem:[#allocation2 + $0x8] sm:$0xff] %vm19, 0.0
  $region17: #{transformer_forward.46} parent=0 // pred_fallthru
    _
  %v22 = vld [vmem:[#allocation2] sm:$0xff]
  %v23 = vld [vmem:[#allocation2 + $0x8] sm:$0xff]
  %v24 = vld [vmem:[%s0] sm:$0xf]
  %v25 = vld [vmem:[%s0 + $0x4] sm:$0xf]
  %v26 = vld [vmem:[%s1] sm:$0xf]
  %v27 = vld [vmem:[%s1 + $0x4] sm:$0xf]
  %v28 = vld [vmem:[%s1 + $0x8] sm:$0xf]
  %v29 = vld [vmem:[%s1 + $0xc] sm:$0xf]
  %v32 = vunpack.c.l.b16 %v24
  %v33 = vunpack.c.l.b16 %v25
  %v34 = vpack.c.b16 %v33, %v32
  %v39 = vunpack.c.l.b16 %v26
  %v40 = vunpack.c.l.b16 %v27
  %v41 = vunpack.c.l.b16 %v28
  %v42 = vunpack.c.l.b16 %v29
  %v43 = vpack.c.b16 %v40, %v39
  %v44 = vpack.c.b16 %v42, %v41
  %vm47 = vcmask 261120
  %v49 = vsel %vm47, %v34, 0
  %51 = vmatprep.subr.bf16.mxu0 0
  %52 = vmatpush1.bf16.msra.mxu0 0
  %53 = vmatprep.subr.bf16.mxu0 0
  %54 = vmatpush1.bf16.msra.mxu0 0
  %55 = vmatprep.subr.bf16.mxu0 0
  %56 = vmatpush1.bf16.msra.mxu0 0
  %57 = vmatprep.subr.bf16.mxu0 0
  %58 = vmatpush1.bf16.msra.mxu0 0
  %59 = vmatprep.subr.bf16.mxu0 0
  %60 = vmatpush1.bf16.msra.mxu0 0
  %61 = vmatprep.subr.bf16.mxu0 0
  %62 = vmatpush1.bf16.msra.mxu0 0
  %63 = vmatprep.subr.bf16.mxu0 0
  %64 = vmatpush1.bf16.msra.mxu0 %v44
  %65 = vmatprep.subr.bf16.mxu0 0
  %66 = vmatpush1.bf16.msra.mxu0 %v43
  %67 = vmatprep.subr.bf16.mxu0 0
  %68 = vmatpush2.bf16.msra.mxu0 0
  %69 = vmatprep.subr.bf16.mxu0 0
  %70 = vmatpush2.bf16.msra.mxu0 0
  %71 = vmatprep.subr.bf16.mxu0 0
  %72 = vmatpush2.bf16.msra.mxu0 0
  %73 = vmatprep.subr.bf16.mxu0 0
  %74 = vmatpush2.bf16.msra.mxu0 0
  %75 = vmatprep.subr.bf16.mxu0 0
  %76 = vmatpush2.bf16.msra.mxu0 0
  %77 = vmatprep.subr.bf16.mxu0 0
  %78 = vmatpush2.bf16.msra.mxu0 0
  %79 = vmatprep.subr.bf16.mxu0 0
  %80 = vmatpush2.bf16.msra.mxu0 0
  %81 = vmatprep.subr.bf16.mxu0 0
  %82 = vmatpush2.bf16.msra.mxu0 0
  %83 = vmatprep.mubr.bf16.mxu0 0
  %84 = vmatmul.mubr.bf16.gmra.mxu0 %v49
  %v85 = vpop.f32.mrf.mxu0
  %v86 = vadd.f32 0.0, %v85
  %v87 = vpop.f32.mrf.mxu0
  %v88 = vpop.f32.mrf.mxu0
  %v89 = vadd.f32 0.0, %v88
  %v90 = vpop.f32.mrf.mxu0
  %91 = vdwg.mxu0
  %v92 = vadd.f32 %v22, %v86
  %v93 = vadd.f32 %v23, %v89
  %vm94 = vcmask 523264
  %95 = vst.msk [vmem:[#allocation2] sm:$0xff] %vm94, %v92
  %96 = vst.msk [vmem:[#allocation2 + $0x8] sm:$0xff] %vm94, %v93
  // Predicated region
  $region18: #{transformer_forward.46} parent=0 // pred_check
    %p97 = pneg %p15
  $region19: #{transformer_forward.46} parent=0 // pred_check_branch
    %99 = sbr.rel (%p97) target = $region21
  $region20: #{transformer_forward.46} parent=0 // pred_region
    %v100 = vld [vmem:[#allocation2] sm:$0xff]
    %v101 = vld [vmem:[#allocation2 + $0x8] sm:$0xff]
    %v102 = vld [vmem:[%s2] sm:$0x1]
    %v104 = vlaneseq
    %v105 = vshrl.u32 %v104, 7
    %v106 = vsub.s32 0, %v105
    %v107 = vrot.slane %v102, %v106
    %v109 = vadd.f32 %v100, %v107
    %v110 = vadd.f32 %v101, %v107
    %v111 = vpack.c.bf16 %v110, %v109
    %v113 = vunpack.c.l.b16 %v111
    %v114 = vunpack.c.h.b16 %v111
    %v115 = vpack.c.b16 %v113, %v113
    %v116 = vpack.c.b16 %v114, %v114
    %vm119 = vcmask 519168
    %120 = vst.msk [vmem:[%s3] sm:$0xf] %vm119, %v115
    %121 = vst.msk [vmem:[%s3 + $0x4] sm:$0xf] %vm119, %v116
  $region21: #{transformer_forward.46} parent=0 // pred_fallthru
    _
  // Predicated region
  $region22: #{transformer_forward.46} parent=0 // pred_check
    _
  $region23: #{transformer_forward.46} parent=0 // pred_check_branch
    %123 = sbr.rel (0) target = $region25
  $region24: #{transformer_forward.46} parent=0 // pred_region
    _
  $region25: #{transformer_forward.46} parent=0 // pred_fallthru
    _
  // Predicated region
  $region26: #{transformer_forward.46} parent=0 // pred_check
    _
  $region27: #{transformer_forward.46} parent=0 // pred_check_branch
    %125 = sbr.rel (0) target = $region29
  $region28: #{transformer_forward.46} parent=0 // pred_region
    _
  $region29: #{transformer_forward.46} parent=0 // pred_fallthru
    _

// kernel: transformer_forward.61
$region0: #{transformer_forward.61}
  #allocation0 [shape = 'u32[]', space=smem, size = 0x4, offset = 0x4, fixed_abs, tag = 'smem constant byte address 0x4 - core index']
  #allocation1 [shape = 'u32[144,128]{1,0:T(1,128)}', space=vmem, size = 0x12000, scoped, tag = 'internal scratch']
  #allocation2 [shape = 'f32[16,64]{1,0:T(8,128)}', space=vmem, size = 0x2000, scoped, tag = 'scratch operand']
  %s0 = inlined_call_operand.vmem [shape: bf16[16,32], index: 0, kind: input, shape index: {}]
  %s1 = inlined_call_operand.vmem [shape: bf16[32,64], index: 1, kind: input, shape index: {}]
  %s2 = inlined_call_operand.vmem [shape: f32[1,64], index: 2, kind: input, shape index: {}]
  %s3 = inlined_call_operand.hbm [shape: f32[16,64], index: 3, kind: output, shape index: {}]
  %s4 = sld [smem:[#allocation0]]
  $region30: #{transformer_forward.61} parent=0
    _
  %s6 = ssub.s32 1, %s4
  %s7 = scalar_select 0, %s6, %s4
  $region1: #{transformer_forward.61} parent=0
    #allocation3 [shape = 'u8[8192]{0}', space=vmem, size = 0x2000, scoped, tag = 'output window, operand 0, single buffered']
    #allocation4 [shape = 's32[1]{0}', space=sflag, size = 0x4, scoped, tag = 'scoped memory for transformer_forward.61']
    %8 = vsyncpa [#allocation4], 0
    // Predicated region
    $region2: #{transformer_forward.61} parent=1 // pred_check
      _
    $region3: #{transformer_forward.61} parent=1 // pred_check_branch
      %10 = sbr.rel (0) target = $region5
    $region4: #{transformer_forward.61} parent=1 // pred_region
      _
    $region5: #{transformer_forward.61} parent=1 // pred_fallthru
      _
    // Predicated region
    $region6: #{transformer_forward.61} parent=1 // pred_check
      _
    $region7: #{transformer_forward.61} parent=1 // pred_check_branch
      %12 = sbr.rel (0) target = $region9
    $region8: #{transformer_forward.61} parent=1 // pred_region
      _
    $region9: #{transformer_forward.61} parent=1 // pred_fallthru
      _
    // Predicated region
    $region10: #{transformer_forward.61} parent=1 // pred_check
      _
    $region11: #{transformer_forward.61} parent=1 // pred_check_branch
      %14 = sbr.rel (0) target = $region13
    $region12: #{transformer_forward.61} parent=1 // pred_region
      _
    $region13: #{transformer_forward.61} parent=1 // pred_fallthru
      _
    %p16 = scmp.eq.s32.totalorder 0, 0
    // Predicated region
    $region14: #{transformer_forward.61} parent=1 // pred_check
      %p17 = pneg %p16
    $region15: #{transformer_forward.61} parent=1 // pred_check_branch
      %19 = sbr.rel (%p17) target = $region17
    $region16: #{transformer_forward.61} parent=1 // pred_region
      %vm20 = vcmask 523264
      %21 = vst.msk [vmem:[#allocation2] sm:$0xff] %vm20, 0.0
      %22 = vst.msk [vmem:[#allocation2 + $0x8] sm:$0xff] %vm20, 0.0
    $region17: #{transformer_forward.61} parent=1 // pred_fallthru
      _
    %v23 = vld [vmem:[#allocation2] sm:$0xff]
    %v24 = vld [vmem:[#allocation2 + $0x8] sm:$0xff]
    %v25 = vld [vmem:[%s0] sm:$0xf]
    %v26 = vld [vmem:[%s0 + $0x4] sm:$0xf]
    %v27 = vld [vmem:[%s1] sm:$0xf]
    %v28 = vld [vmem:[%s1 + $0x4] sm:$0xf]
    %v29 = vld [vmem:[%s1 + $0x8] sm:$0xf]
    %v30 = vld [vmem:[%s1 + $0xc] sm:$0xf]
    %v33 = vunpack.c.l.b16 %v25
    %v34 = vunpack.c.l.b16 %v26
    %v35 = vpack.c.b16 %v34, %v33
    %v40 = vunpack.c.l.b16 %v27
    %v41 = vunpack.c.l.b16 %v28
    %v42 = vunpack.c.l.b16 %v29
    %v43 = vunpack.c.l.b16 %v30
    %v44 = vpack.c.b16 %v41, %v40
    %v45 = vpack.c.b16 %v43, %v42
    %vm48 = vcmask 261120
    %v50 = vsel %vm48, %v35, 0
    %52 = vmatprep.subr.bf16.mxu0 0
    %53 = vmatpush1.bf16.msra.mxu0 0
    %54 = vmatprep.subr.bf16.mxu0 0
    %55 = vmatpush1.bf16.msra.mxu0 0
    %56 = vmatprep.subr.bf16.mxu0 0
    %57 = vmatpush1.bf16.msra.mxu0 0
    %58 = vmatprep.subr.bf16.mxu0 0
    %59 = vmatpush1.bf16.msra.mxu0 0
    %60 = vmatprep.subr.bf16.mxu0 0
    %61 = vmatpush1.bf16.msra.mxu0 0
    %62 = vmatprep.subr.bf16.mxu0 0
    %63 = vmatpush1.bf16.msra.mxu0 0
    %64 = vmatprep.subr.bf16.mxu0 0
    %65 = vmatpush1.bf16.msra.mxu0 %v45
    %66 = vmatprep.subr.bf16.mxu0 0
    %67 = vmatpush1.bf16.msra.mxu0 %v44
    %68 = vmatprep.subr.bf16.mxu0 0
    %69 = vmatpush2.bf16.msra.mxu0 0
    %70 = vmatprep.subr.bf16.mxu0 0
    %71 = vmatpush2.bf16.msra.mxu0 0
    %72 = vmatprep.subr.bf16.mxu0 0
    %73 = vmatpush2.bf16.msra.mxu0 0
    %74 = vmatprep.subr.bf16.mxu0 0
    %75 = vmatpush2.bf16.msra.mxu0 0
    %76 = vmatprep.subr.bf16.mxu0 0
    %77 = vmatpush2.bf16.msra.mxu0 0
    %78 = vmatprep.subr.bf16.mxu0 0
    %79 = vmatpush2.bf16.msra.mxu0 0
    %80 = vmatprep.subr.bf16.mxu0 0
    %81 = vmatpush2.bf16.msra.mxu0 0
    %82 = vmatprep.subr.bf16.mxu0 0
    %83 = vmatpush2.bf16.msra.mxu0 0
    %84 = vmatprep.mubr.bf16.mxu0 0
    %85 = vmatmul.mubr.bf16.gmra.mxu0 %v50
    %v86 = vpop.f32.mrf.mxu0
    %v87 = vadd.f32 0.0, %v86
    %v88 = vpop.f32.mrf.mxu0
    %v89 = vpop.f32.mrf.mxu0
    %v90 = vadd.f32 0.0, %v89
    %v91 = vpop.f32.mrf.mxu0
    %92 = vdwg.mxu0
    %v93 = vadd.f32 %v23, %v87
    %v94 = vadd.f32 %v24, %v90
    %vm95 = vcmask 523264
    %96 = vst.msk [vmem:[#allocation2] sm:$0xff] %vm95, %v93
    %97 = vst.msk [vmem:[#allocation2 + $0x8] sm:$0xff] %vm95, %v94
    // Predicated region
    $region18: #{transformer_forward.61} parent=1 // pred_check
      %p98 = pneg %p16
    $region19: #{transformer_forward.61} parent=1 // pred_check_branch
      %100 = sbr.rel (%p98) target = $region21
    $region20: #{transformer_forward.61} parent=1 // pred_region
      %v101 = vld [vmem:[#allocation2] sm:$0xff]
      %v102 = vld [vmem:[#allocation2 + $0x8] sm:$0xff]
      %v103 = vld [vmem:[%s2] sm:$0x1]
      %v105 = vlaneseq
      %v106 = vshrl.u32 %v105, 7
      %v107 = vsub.s32 0, %v106
      %v108 = vrot.slane %v103, %v107
      %v110 = vadd.f32 %v101, %v108
      %v111 = vadd.f32 %v102, %v108
      %112 = vst.msk [vmem:[#allocation3] sm:$0xff] %vm95, %v110
      %113 = vst.msk [vmem:[#allocation3 + $0x8] sm:$0xff] %vm95, %v111
    $region21: #{transformer_forward.61} parent=1 // pred_fallthru
      _
    // Predicated region
    $region22: #{transformer_forward.61} parent=1 // pred_check
      _
    $region23: #{transformer_forward.61} parent=1 // pred_check_branch
      %115 = sbr.rel (0) target = $region25
    $region24: #{transformer_forward.61} parent=1 // pred_region
      %s117 = ssub.s32 256, 256
      %118 = vsyncadd [#allocation4], %s117
      %s119 = sshll.u32 [#allocation3], 4
      %s120 = int_to_ptr.vmem [resolvable:$true] %s119
      %125 = dma.vmem_to_hbm [thread:$0]  %s120, 256, %s3, [#allocation4], 128, 128, 8
    $region25: #{transformer_forward.61} parent=1 // pred_fallthru
      _
    // Predicated region
    $region26: #{transformer_forward.61} parent=1 // pred_check
      _
    $region27: #{transformer_forward.61} parent=1 // pred_check_branch
      %127 = sbr.rel (0) target = $region29
    $region28: #{transformer_forward.61} parent=1 // pred_region
      %128 = dma.done [#allocation4], 256
    $region29: #{transformer_forward.61} parent=1 // pred_fallthru
      _
    %129 = vsyncpa [#allocation4], 1

</llo_original>
